<compile_context>
chip_gen: v7x
topology: tpu7x:2x2x1
jax: 0.10.0
libtpu: 0.0.40
codegen_flags: <defaults>
</compile_context>

<pallas_src>
import numpy as np
import jax
import jax.numpy as jnp
from jax import lax
from jax.experimental import pallas as pl
from jax.experimental.pallas import tpu as pltpu

# --- module constants (from ShallowERPNet.__init__) ---
C1 = 20                   # channels of net_1 convs
KT1 = 15                  # conv1 kernel (1, 15)
KH2, KW2 = 8, 8           # conv2 kernel (8, 8)
KWF = KT1 + KW2 - 1       # fused conv1∘conv2 time-kernel width (22)
POOL_K, POOL_S = 75, 15   # AvgPool2d kernel / stride (time axis)
KW3 = 7                   # conv3 kernel (1, 7)
BN_EPS = 1e-5
CLAMP_MIN = 1e-6


def _erp_kernel(x_ref, wf_ref, pool_ref, w3_ref, bias_ref, o_ref):
    """One batch element per grid step.

    x_ref    : (1, H, W)          one batch element
    wf_ref   : (C2, KH2*KWF)      fused conv1∘conv2 (+BatchNorm) weights,
                                  column u*KH2+dh multiplies x[h2+dh, w2+u]
    pool_ref : (W2, WP)           AvgPool2d((1,75),(1,15)) as a matmul matrix
    w3_ref   : (KW3, K, C2)       conv3 weights per time offset
    bias_ref : (max(C2,K), 2)     col 0 = fused conv bias, col 1 = conv3 bias
    o_ref    : (1, H2, K, W3o)    log-softmax output
    """
    _, H, W = x_ref.shape
    C2 = wf_ref.shape[0]
    W2, WP = pool_ref.shape
    nKW3, K, _ = w3_ref.shape
    H2 = o_ref.shape[1]
    W3o = o_ref.shape[3]
    prec = lax.Precision.HIGHEST   # Mosaic supports DEFAULT/HIGHEST only; total
                                   # MXU work is tiny, so keep the tight f32 path.

    xb = x_ref[0]                                              # (H, W)

    for h2 in range(H2):  # unrolled at trace time (H2 == 1 for the canonical config)
        strip = xb[h2:h2 + KH2, :] if H2 > 1 else xb           # (KH2, W)

        # ---- fused conv1+conv2 (+folded BatchNorm): one im2col (22 lane-shifted
        # copies of the 8-row strip, each an 8-aligned sublane block) and ONE
        # MXU matmul.  No block-diag conv1 matmul, no 160-row operand shifts.
        cols = jnp.concatenate(
            [strip[:, u:u + W2] for u in range(KWF)], axis=0)   # (KH2*KWF, W2)
        z = jnp.dot(wf_ref[...], cols,
                    preferred_element_type=jnp.float32, precision=prec)
        z = z + bias_ref[:C2, 0:1]                              # (C2, W2)

        # ---- square, then AvgPool2d((1,75),(1,15)) as one small batch-invariant
        # matmul (W2 x WP, no O(B^2) growth, fetched once across grid steps).
        sq = z * z
        pooled = jnp.dot(sq, pool_ref[...],
                         preferred_element_type=jnp.float32, precision=prec)

        # ---- log(clamp(., 1e-6)); Dropout is identity in eval mode.
        logp = jnp.log(jnp.maximum(pooled, CLAMP_MIN))          # (C2, WP)
        # TODO(synk): train-mode Dropout / BatchNorm batch statistics not reproduced.

        # ---- conv3: KW3 tiny accumulating dots on the (C2, WP) pooled map
        # (only the valid columns are ever touched — no 128-wide padded filler).
        acc3 = jnp.dot(w3_ref[0], logp[:, 0:W3o],
                       preferred_element_type=jnp.float32, precision=prec)
        for dw in range(1, nKW3):
            acc3 = acc3 + jnp.dot(w3_ref[dw], logp[:, dw:dw + W3o],
                                  preferred_element_type=jnp.float32,
                                  precision=prec)
        acc3 = acc3 + bias_ref[:K, 1:2]                         # (K, W3o)

        # ---- LogSoftmax over the class axis.
        m = jnp.max(acc3, axis=0, keepdims=True)
        zc = acc3 - m
        logsm = zc - jnp.log(jnp.sum(jnp.exp(zc), axis=0, keepdims=True))

        o_ref[0, h2] = logsm


def prepare_erp_params(params, n_times):
    """One-time host-side weight packing (kept OUT of the per-call jit).

    params = (w1, b1, w2, b2, bn_scale, bn_shift, w3, b3) with PyTorch shapes.
    Returns (wf2d, pool_mat, w3_mat, bias_pack) ready for the Pallas call.
    """
    w1, b1, w2, b2, bn_scale, bn_shift, w3, b3 = (
        np.asarray(p, np.float32) for p in params)
    C2 = w2.shape[0]
    K = w3.shape[0]

    # Compose conv1 (1->C1,(1,KT1)) with conv2 (C1->C2,(KH2,KW2)) into one
    # (C2, KH2, KWF) kernel; fold b1 into the fused bias, then fold eval-mode BN.
    w1_2d = w1[:, 0, 0, :]                                      # (C1, KT1)
    wf = np.zeros((C2, KH2, KWF), np.float32)
    for dw in range(KW2):
        wf[:, :, dw:dw + KT1] += np.einsum('oih,it->oht', w2[:, :, :, dw], w1_2d)
    b_fused = b2 + np.einsum('oihw,i->o', w2, b1)
    wf = wf * bn_scale[:, None, None]
    b_fused = bn_scale * b_fused + bn_shift

    # Row order (u, dh) so it matches the kernel's im2col (piece u = strip[:, u:u+W2]).
    wf2d = np.transpose(wf, (0, 2, 1)).reshape(C2, KWF * KH2)

    # AvgPool2d((1,75),(1,15)) as a batch-invariant (W2, WP) matmul matrix.
    W2w = n_times - KWF + 1
    assert W2w >= POOL_K, "input time series too short for ShallowERPNet"
    WP = (W2w - POOL_K) // POOL_S + 1
    pool = np.zeros((W2w, WP), np.float32)
    for j in range(WP):
        pool[j * POOL_S:j * POOL_S + POOL_K, j] = 1.0 / POOL_K

    # conv3 per-offset weights; remaining small biases packed into one input.
    w3_mat = np.transpose(w3[:, :, 0, :], (2, 0, 1))            # (KW3, K, C2)
    nb = max(C2, K)
    bias_pack = np.zeros((nb, 2), np.float32)
    bias_pack[:C2, 0] = b_fused
    bias_pack[:K, 1] = b3

    return (jnp.asarray(wf2d), jnp.asarray(pool),
            jnp.asarray(w3_mat), jnp.asarray(bias_pack))


def shallow_erp_net_pallas(x, packed):
    """x: (B, n_electrodes, T) float32 in native layout. Returns squeezed log-probs."""
    wf2d, pool_mat, w3_mat, bias_pack = packed
    B, H, W = x.shape
    C2 = wf2d.shape[0]
    W2w, WP = pool_mat.shape
    K = w3_mat.shape[1]
    H2 = H - KH2 + 1
    W3o = WP - KW3 + 1
    assert wf2d.shape[1] == KH2 * KWF
    assert W2w == W - KWF + 1, "packed pool matrix does not match the input length"
    assert H2 >= 1 and W3o >= 1, "input too short / too few electrodes"

    raw = pl.pallas_call(
        _erp_kernel,
        out_shape=jax.ShapeDtypeStruct((B, H2, K, W3o), jnp.float32),
        grid=(B,),   # one batch element per step; "parallel" lets v7x's second
                     # TensorCore take half the batch (negligible cost on v5e/v6e).
        in_specs=[
            pl.BlockSpec((1, H, W), lambda b: (b, 0, 0)),
            pl.BlockSpec(wf2d.shape, lambda b: (0, 0)),
            pl.BlockSpec(pool_mat.shape, lambda b: (0, 0)),
            pl.BlockSpec(w3_mat.shape, lambda b: (0, 0, 0)),
            pl.BlockSpec(bias_pack.shape, lambda b: (0, 0)),
        ],
        out_specs=pl.BlockSpec((1, H2, K, W3o), lambda b: (b, 0, 0, 0)),
        compiler_params=pltpu.CompilerParams(dimension_semantics=("parallel",)),
    )(x, wf2d, pool_mat, w3_mat, bias_pack)

    if H2 > 1:  # restore torch (B, K, H2, W3o) layout; identical after squeeze when H2==1
        raw = jnp.transpose(raw, (0, 2, 1, 3))
    return jnp.squeeze(raw)                                     # torch.squeeze


def shallow_erp_net_ref(x, params):
    """Pure-JAX reference (matches the PyTorch forward in eval mode)."""
    (w1, b1, w2, b2, bn_scale, bn_shift, w3, b3) = params
    dn = ('NCHW', 'OIHW', 'NCHW')
    prec = lax.Precision.HIGHEST
    y = x[:, None, :, :]
    y = lax.conv_general_dilated(y, w1, (1, 1), 'VALID', dimension_numbers=dn,
                                 precision=prec) + b1[None, :, None, None]
    y = lax.conv_general_dilated(y, w2, (1, 1), 'VALID', dimension_numbers=dn,
                                 precision=prec) + b2[None, :, None, None]
    y = y * bn_scale[None, :, None, None] + bn_shift[None, :, None, None]
    y = y * y
    y = lax.reduce_window(y, 0.0, lax.add, (1, 1, 1, POOL_K),
                          (1, 1, 1, POOL_S), 'VALID') / POOL_K
    y = jnp.log(jnp.maximum(y, CLAMP_MIN))
    y = lax.conv_general_dilated(y, w3, (1, 1), 'VALID', dimension_numbers=dn,
                                 precision=prec) + b3[None, :, None, None]
    y = jax.nn.log_softmax(y, axis=1)
    return jnp.squeeze(y)


if __name__ == "__main__":
    # config: smallest temporal length the architecture accepts is 186 samples
    config = {'epoch_length': 1, 'sfreq': 186, 'n_electrodes': 8, 'DROP_OUT': 0.5}
    OUTPUT = 2
    B = 2
    H = config['n_electrodes']                              # 8
    W = int(config['epoch_length'] * config['sfreq'])       # 186

    key = jax.random.PRNGKey(0)
    kx, k1, k2, k3, k4, k5, k6, kg, kb, km, kv = jax.random.split(key, 11)
    x = jax.random.normal(kx, (B, H, W), dtype=jnp.float32)

    # Deterministic synthetic parameters (PyTorch shapes)
    w1 = 0.10 * jax.random.normal(k1, (C1, 1, 1, KT1), dtype=jnp.float32)
    b1 = 0.10 * jax.random.normal(k2, (C1,), dtype=jnp.float32)
    w2 = 0.05 * jax.random.normal(k3, (C1, C1, KH2, KW2), dtype=jnp.float32)
    b2 = 0.10 * jax.random.normal(k4, (C1,), dtype=jnp.float32)
    w3 = 0.10 * jax.random.normal(k5, (OUTPUT, C1, 1, KW3), dtype=jnp.float32)
    b3 = 0.10 * jax.random.normal(k6, (OUTPUT,), dtype=jnp.float32)

    # Non-trivial BatchNorm2d running stats, folded to eval-mode scale/shift
    # exactly as PyTorch does (so the conv-fusion path is actually exercised).
    gamma = 1.0 + 0.1 * jax.random.normal(kg, (C1,), dtype=jnp.float32)
    beta = 0.1 * jax.random.normal(kb, (C1,), dtype=jnp.float32)
    run_mean = 0.05 * jax.random.normal(km, (C1,), dtype=jnp.float32)
    run_var = 1.0 + 0.5 * jax.random.uniform(kv, (C1,), dtype=jnp.float32)
    bn_scale = gamma / jnp.sqrt(run_var + BN_EPS)
    bn_shift = beta - run_mean * bn_scale

    params = (w1, b1, w2, b2, bn_scale, bn_shift, w3, b3)

    packed = prepare_erp_params(params, W)       # one-time host-side packing
    fwd = jax.jit(shallow_erp_net_pallas)
    out = jax.block_until_ready(fwd(x, packed))

    ref = shallow_erp_net_ref(x, params)
    assert out.shape == ref.shape == (B, OUTPUT), (out.shape, ref.shape)
    assert jnp.allclose(out, ref, atol=2e-3, rtol=2e-3), \
        float(jnp.max(jnp.abs(out - ref)))
    print("KERNEL_OK")
</pallas_src>

<mosaic_0001>
module attributes {stable_mosaic.version = 11 : i64} {
  func.func @_erp_kernel(%arg0: i32, %arg1: memref<1x8x186xf32, #tpu.memory_space<vmem>>, %arg2: memref<20x176xf32, #tpu.memory_space<vmem>>, %arg3: memref<165x7xf32, #tpu.memory_space<vmem>>, %arg4: memref<7x2x20xf32, #tpu.memory_space<vmem>>, %arg5: memref<20x2xf32, #tpu.memory_space<vmem>>, %arg6: memref<1x1x2x1xf32, #tpu.memory_space<vmem>>) attributes {dimension_semantics = [#tpu.dimension_semantics<parallel>], iteration_bounds = array<i64: 2>, scalar_prefetch = 0 : i64, scratch_operands = 0 : i64, tpu.core_type = #tpu.core_type<tc>, window_params = [{transform_indices = @transform_0, window_bounds = array<i64: 1, 8, 186>}, {pipeline_mode = #tpu.pipeline_mode<synchronous>, transform_indices = @transform_1, window_bounds = array<i64: 20, 176>}, {pipeline_mode = #tpu.pipeline_mode<synchronous>, transform_indices = @transform_2, window_bounds = array<i64: 165, 7>}, {pipeline_mode = #tpu.pipeline_mode<synchronous>, transform_indices = @transform_3, window_bounds = array<i64: 7, 2, 20>}, {pipeline_mode = #tpu.pipeline_mode<synchronous>, transform_indices = @transform_4, window_bounds = array<i64: 20, 2>}, {transform_indices = @transform_5, window_bounds = array<i64: 1, 1, 2, 1>}]} {
    %c0 = arith.constant 0 : index
    %c0_0 = arith.constant 0 : index
    %c0_1 = arith.constant 0 : index
    %0 = vector.load %arg1[%c0, %c0_0, %c0_1] : memref<1x8x186xf32, #tpu.memory_space<vmem>>, vector<1x8x186xf32>
    %1 = vector.shape_cast %0 : vector<1x8x186xf32> to vector<8x186xf32>
    %2 = vector.extract_strided_slice %1 {offsets = [0, 0], sizes = [8, 165], strides = [1, 1]} : vector<8x186xf32> to vector<8x165xf32>
    %3 = vector.extract_strided_slice %1 {offsets = [0, 1], sizes = [8, 165], strides = [1, 1]} : vector<8x186xf32> to vector<8x165xf32>
    %4 = vector.extract_strided_slice %1 {offsets = [0, 2], sizes = [8, 165], strides = [1, 1]} : vector<8x186xf32> to vector<8x165xf32>
    %5 = vector.extract_strided_slice %1 {offsets = [0, 3], sizes = [8, 165], strides = [1, 1]} : vector<8x186xf32> to vector<8x165xf32>
    %6 = vector.extract_strided_slice %1 {offsets = [0, 4], sizes = [8, 165], strides = [1, 1]} : vector<8x186xf32> to vector<8x165xf32>
    %7 = vector.extract_strided_slice %1 {offsets = [0, 5], sizes = [8, 165], strides = [1, 1]} : vector<8x186xf32> to vector<8x165xf32>
    %8 = vector.extract_strided_slice %1 {offsets = [0, 6], sizes = [8, 165], strides = [1, 1]} : vector<8x186xf32> to vector<8x165xf32>
    %9 = vector.extract_strided_slice %1 {offsets = [0, 7], sizes = [8, 165], strides = [1, 1]} : vector<8x186xf32> to vector<8x165xf32>
    %10 = vector.extract_strided_slice %1 {offsets = [0, 8], sizes = [8, 165], strides = [1, 1]} : vector<8x186xf32> to vector<8x165xf32>
    %11 = vector.extract_strided_slice %1 {offsets = [0, 9], sizes = [8, 165], strides = [1, 1]} : vector<8x186xf32> to vector<8x165xf32>
    %12 = vector.extract_strided_slice %1 {offsets = [0, 10], sizes = [8, 165], strides = [1, 1]} : vector<8x186xf32> to vector<8x165xf32>
    %13 = vector.extract_strided_slice %1 {offsets = [0, 11], sizes = [8, 165], strides = [1, 1]} : vector<8x186xf32> to vector<8x165xf32>
    %14 = vector.extract_strided_slice %1 {offsets = [0, 12], sizes = [8, 165], strides = [1, 1]} : vector<8x186xf32> to vector<8x165xf32>
    %15 = vector.extract_strided_slice %1 {offsets = [0, 13], sizes = [8, 165], strides = [1, 1]} : vector<8x186xf32> to vector<8x165xf32>
    %16 = vector.extract_strided_slice %1 {offsets = [0, 14], sizes = [8, 165], strides = [1, 1]} : vector<8x186xf32> to vector<8x165xf32>
    %17 = vector.extract_strided_slice %1 {offsets = [0, 15], sizes = [8, 165], strides = [1, 1]} : vector<8x186xf32> to vector<8x165xf32>
    %18 = vector.extract_strided_slice %1 {offsets = [0, 16], sizes = [8, 165], strides = [1, 1]} : vector<8x186xf32> to vector<8x165xf32>
    %19 = vector.extract_strided_slice %1 {offsets = [0, 17], sizes = [8, 165], strides = [1, 1]} : vector<8x186xf32> to vector<8x165xf32>
    %20 = vector.extract_strided_slice %1 {offsets = [0, 18], sizes = [8, 165], strides = [1, 1]} : vector<8x186xf32> to vector<8x165xf32>
    %21 = vector.extract_strided_slice %1 {offsets = [0, 19], sizes = [8, 165], strides = [1, 1]} : vector<8x186xf32> to vector<8x165xf32>
    %22 = vector.extract_strided_slice %1 {offsets = [0, 20], sizes = [8, 165], strides = [1, 1]} : vector<8x186xf32> to vector<8x165xf32>
    %23 = vector.extract_strided_slice %1 {offsets = [0, 21], sizes = [8, 165], strides = [1, 1]} : vector<8x186xf32> to vector<8x165xf32>
    %24 = tpu.concatenate %2, %3, %4, %5, %6, %7, %8, %9, %10, %11, %12, %13, %14, %15, %16, %17 in 0 : vector<8x165xf32>, vector<8x165xf32>, vector<8x165xf32>, vector<8x165xf32>, vector<8x165xf32>, vector<8x165xf32>, vector<8x165xf32>, vector<8x165xf32>, vector<8x165xf32>, vector<8x165xf32>, vector<8x165xf32>, vector<8x165xf32>, vector<8x165xf32>, vector<8x165xf32>, vector<8x165xf32>, vector<8x165xf32> -> vector<128x165xf32>
    %25 = tpu.concatenate %18, %19, %20, %21, %22, %23 in 0 : vector<8x165xf32>, vector<8x165xf32>, vector<8x165xf32>, vector<8x165xf32>, vector<8x165xf32>, vector<8x165xf32> -> vector<48x165xf32>
    %26 = tpu.concatenate %24, %25 in 0 : vector<128x165xf32>, vector<48x165xf32> -> vector<176x165xf32>
    %c0_2 = arith.constant 0 : index
    %c0_3 = arith.constant 0 : index
    %27 = vector.load %arg2[%c0_2, %c0_3] : memref<20x176xf32, #tpu.memory_space<vmem>>, vector<20x176xf32>
    %cst = arith.constant dense<0.000000e+00> : vector<20x165xf32>
    %28 = tpu.matmul %27, %26, %cst {dimension_numbers = #tpu.dot_dimension_numbers<[1], [0], [0], [1], [0, 0, 1, 1], [], []>, precision = #tpu.contract_precision<fp32>} : vector<20x176xf32>, vector<176x165xf32>, vector<20x165xf32> -> vector<20x165xf32>
    %c0_4 = arith.constant 0 : index
    %c0_5 = arith.constant 0 : index
    %29 = vector.load %arg5[%c0_4, %c0_5] : memref<20x2xf32, #tpu.memory_space<vmem>>, vector<20x1xf32>
    %30 = vector.broadcast %29 : vector<20x1xf32> to vector<20x165xf32>
    %31 = arith.addf %28, %30 : vector<20x165xf32>
    %32 = arith.mulf %31, %31 : vector<20x165xf32>
    %c0_6 = arith.constant 0 : index
    %c0_7 = arith.constant 0 : index
    %33 = vector.load %arg3[%c0_6, %c0_7] : memref<165x7xf32, #tpu.memory_space<vmem>>, vector<165x7xf32>
    %cst_8 = arith.constant dense<0.000000e+00> : vector<20x7xf32>
    %34 = tpu.matmul %32, %33, %cst_8 {dimension_numbers = #tpu.dot_dimension_numbers<[1], [0], [0], [1], [0, 0, 1, 1], [], []>, precision = #tpu.contract_precision<fp32>} : vector<20x165xf32>, vector<165x7xf32>, vector<20x7xf32> -> vector<20x7xf32>
    %cst_9 = arith.constant 9.99999997E-7 : f32
    %35 = vector.broadcast %cst_9 : f32 to vector<20x7xf32>
    %36 = arith.maximumf %34, %35 : vector<20x7xf32>
    %37 = math.log %36 : vector<20x7xf32>
    %c0_10 = arith.constant 0 : index
    %c0_11 = arith.constant 0 : index
    %c0_12 = arith.constant 0 : index
    %38 = vector.load %arg4[%c0_10, %c0_11, %c0_12] : memref<7x2x20xf32, #tpu.memory_space<vmem>>, vector<1x2x20xf32>
    %39 = vector.shape_cast %38 : vector<1x2x20xf32> to vector<2x20xf32>
    %40 = vector.extract_strided_slice %37 {offsets = [0, 0], sizes = [20, 1], strides = [1, 1]} : vector<20x7xf32> to vector<20x1xf32>
    %cst_13 = arith.constant dense<0.000000e+00> : vector<2x1xf32>
    %41 = tpu.matmul %39, %40, %cst_13 {dimension_numbers = #tpu.dot_dimension_numbers<[1], [0], [0], [1], [0, 0, 1, 1], [], []>, precision = #tpu.contract_precision<fp32>} : vector<2x20xf32>, vector<20x1xf32>, vector<2x1xf32> -> vector<2x1xf32>
    %c1 = arith.constant 1 : index
    %c0_14 = arith.constant 0 : index
    %c0_15 = arith.constant 0 : index
    %42 = vector.load %arg4[%c1, %c0_14, %c0_15] : memref<7x2x20xf32, #tpu.memory_space<vmem>>, vector<1x2x20xf32>
    %43 = vector.shape_cast %42 : vector<1x2x20xf32> to vector<2x20xf32>
    %44 = vector.extract_strided_slice %37 {offsets = [0, 1], sizes = [20, 1], strides = [1, 1]} : vector<20x7xf32> to vector<20x1xf32>
    %cst_16 = arith.constant dense<0.000000e+00> : vector<2x1xf32>
    %45 = tpu.matmul %43, %44, %cst_16 {dimension_numbers = #tpu.dot_dimension_numbers<[1], [0], [0], [1], [0, 0, 1, 1], [], []>, precision = #tpu.contract_precision<fp32>} : vector<2x20xf32>, vector<20x1xf32>, vector<2x1xf32> -> vector<2x1xf32>
    %46 = arith.addf %41, %45 : vector<2x1xf32>
    %c2 = arith.constant 2 : index
    %c0_17 = arith.constant 0 : index
    %c0_18 = arith.constant 0 : index
    %47 = vector.load %arg4[%c2, %c0_17, %c0_18] : memref<7x2x20xf32, #tpu.memory_space<vmem>>, vector<1x2x20xf32>
    %48 = vector.shape_cast %47 : vector<1x2x20xf32> to vector<2x20xf32>
    %49 = vector.extract_strided_slice %37 {offsets = [0, 2], sizes = [20, 1], strides = [1, 1]} : vector<20x7xf32> to vector<20x1xf32>
    %cst_19 = arith.constant dense<0.000000e+00> : vector<2x1xf32>
    %50 = tpu.matmul %48, %49, %cst_19 {dimension_numbers = #tpu.dot_dimension_numbers<[1], [0], [0], [1], [0, 0, 1, 1], [], []>, precision = #tpu.contract_precision<fp32>} : vector<2x20xf32>, vector<20x1xf32>, vector<2x1xf32> -> vector<2x1xf32>
    %51 = arith.addf %46, %50 : vector<2x1xf32>
    %c3 = arith.constant 3 : index
    %c0_20 = arith.constant 0 : index
    %c0_21 = arith.constant 0 : index
    %52 = vector.load %arg4[%c3, %c0_20, %c0_21] : memref<7x2x20xf32, #tpu.memory_space<vmem>>, vector<1x2x20xf32>
    %53 = vector.shape_cast %52 : vector<1x2x20xf32> to vector<2x20xf32>
    %54 = vector.extract_strided_slice %37 {offsets = [0, 3], sizes = [20, 1], strides = [1, 1]} : vector<20x7xf32> to vector<20x1xf32>
    %cst_22 = arith.constant dense<0.000000e+00> : vector<2x1xf32>
    %55 = tpu.matmul %53, %54, %cst_22 {dimension_numbers = #tpu.dot_dimension_numbers<[1], [0], [0], [1], [0, 0, 1, 1], [], []>, precision = #tpu.contract_precision<fp32>} : vector<2x20xf32>, vector<20x1xf32>, vector<2x1xf32> -> vector<2x1xf32>
    %56 = arith.addf %51, %55 : vector<2x1xf32>
    %c4 = arith.constant 4 : index
    %c0_23 = arith.constant 0 : index
    %c0_24 = arith.constant 0 : index
    %57 = vector.load %arg4[%c4, %c0_23, %c0_24] : memref<7x2x20xf32, #tpu.memory_space<vmem>>, vector<1x2x20xf32>
    %58 = vector.shape_cast %57 : vector<1x2x20xf32> to vector<2x20xf32>
    %59 = vector.extract_strided_slice %37 {offsets = [0, 4], sizes = [20, 1], strides = [1, 1]} : vector<20x7xf32> to vector<20x1xf32>
    %cst_25 = arith.constant dense<0.000000e+00> : vector<2x1xf32>
    %60 = tpu.matmul %58, %59, %cst_25 {dimension_numbers = #tpu.dot_dimension_numbers<[1], [0], [0], [1], [0, 0, 1, 1], [], []>, precision = #tpu.contract_precision<fp32>} : vector<2x20xf32>, vector<20x1xf32>, vector<2x1xf32> -> vector<2x1xf32>
    %61 = arith.addf %56, %60 : vector<2x1xf32>
    %c5 = arith.constant 5 : index
    %c0_26 = arith.constant 0 : index
    %c0_27 = arith.constant 0 : index
    %62 = vector.load %arg4[%c5, %c0_26, %c0_27] : memref<7x2x20xf32, #tpu.memory_space<vmem>>, vector<1x2x20xf32>
    %63 = vector.shape_cast %62 : vector<1x2x20xf32> to vector<2x20xf32>
    %64 = vector.extract_strided_slice %37 {offsets = [0, 5], sizes = [20, 1], strides = [1, 1]} : vector<20x7xf32> to vector<20x1xf32>
    %cst_28 = arith.constant dense<0.000000e+00> : vector<2x1xf32>
    %65 = tpu.matmul %63, %64, %cst_28 {dimension_numbers = #tpu.dot_dimension_numbers<[1], [0], [0], [1], [0, 0, 1, 1], [], []>, precision = #tpu.contract_precision<fp32>} : vector<2x20xf32>, vector<20x1xf32>, vector<2x1xf32> -> vector<2x1xf32>
    %66 = arith.addf %61, %65 : vector<2x1xf32>
    %c6 = arith.constant 6 : index
    %c0_29 = arith.constant 0 : index
    %c0_30 = arith.constant 0 : index
    %67 = vector.load %arg4[%c6, %c0_29, %c0_30] : memref<7x2x20xf32, #tpu.memory_space<vmem>>, vector<1x2x20xf32>
    %68 = vector.shape_cast %67 : vector<1x2x20xf32> to vector<2x20xf32>
    %69 = vector.extract_strided_slice %37 {offsets = [0, 6], sizes = [20, 1], strides = [1, 1]} : vector<20x7xf32> to vector<20x1xf32>
    %cst_31 = arith.constant dense<0.000000e+00> : vector<2x1xf32>
    %70 = tpu.matmul %68, %69, %cst_31 {dimension_numbers = #tpu.dot_dimension_numbers<[1], [0], [0], [1], [0, 0, 1, 1], [], []>, precision = #tpu.contract_precision<fp32>} : vector<2x20xf32>, vector<20x1xf32>, vector<2x1xf32> -> vector<2x1xf32>
    %71 = arith.addf %66, %70 : vector<2x1xf32>
    %c0_32 = arith.constant 0 : index
    %c1_33 = arith.constant 1 : index
    %72 = vector.load %arg5[%c0_32, %c1_33] : memref<20x2xf32, #tpu.memory_space<vmem>>, vector<2x1xf32>
    %73 = arith.addf %71, %72 : vector<2x1xf32>
    %cst_34 = arith.constant dense<0xFF800000> : vector<1xf32>
    %74 = vector.multi_reduction <maximumf>, %73, %cst_34 [0] : vector<2x1xf32> to vector<1xf32>
    %75 = vector.shape_cast %74 : vector<1xf32> to vector<1x1xf32>
    %76 = vector.broadcast %75 : vector<1x1xf32> to vector<2x1xf32>
    %77 = arith.subf %73, %76 : vector<2x1xf32>
    %78 = math.exp %77 : vector<2x1xf32>
    %cst_35 = arith.constant dense<0.000000e+00> : vector<1xf32>
    %79 = vector.multi_reduction <add>, %78, %cst_35 [0] : vector<2x1xf32> to vector<1xf32>
    %80 = vector.shape_cast %79 : vector<1xf32> to vector<1x1xf32>
    %81 = math.log %80 : vector<1x1xf32>
    %82 = vector.broadcast %81 : vector<1x1xf32> to vector<2x1xf32>
    %83 = arith.subf %77, %82 : vector<2x1xf32>
    %c0_36 = arith.constant 0 : index
    %c0_37 = arith.constant 0 : index
    %c0_38 = arith.constant 0 : index
    %c0_39 = arith.constant 0 : index
    %84 = vector.load %arg6[%c0_36, %c0_37, %c0_38, %c0_39] : memref<1x1x2x1xf32, #tpu.memory_space<vmem>>, vector<1x1x2x1xf32>
    %85 = vector.shape_cast %84 : vector<1x1x2x1xf32> to vector<2x1xf32>
    %86 = vector.shape_cast %83 : vector<2x1xf32> to vector<1x1x2x1xf32>
    tpu.vector_store %arg6[%c0_36, %c0_37, %c0_38, %c0_39], %86 {strides = array<i32>} : memref<1x1x2x1xf32, #tpu.memory_space<vmem>>, vector<1x1x2x1xf32>,
    return
  }
  func.func @transform_0(%arg0: i32) -> (i32, i32, i32) {
    %c0_i32 = arith.constant 0 : i32
    %c0_i32_0 = arith.constant 0 : i32
    %c0_i32_1 = arith.constant 0 : i32
    return %arg0, %c0_i32, %c0_i32_0 : i32, i32, i32
  }
  func.func @transform_1(%arg0: i32) -> (i32, i32) {
    %c0_i32 = arith.constant 0 : i32
    %c0_i32_0 = arith.constant 0 : i32
    %c0_i32_1 = arith.constant 0 : i32
    return %c0_i32, %c0_i32_0 : i32, i32
  }
  func.func @transform_2(%arg0: i32) -> (i32, i32) {
    %c0_i32 = arith.constant 0 : i32
    %c0_i32_0 = arith.constant 0 : i32
    %c0_i32_1 = arith.constant 0 : i32
    return %c0_i32, %c0_i32_0 : i32, i32
  }
  func.func @transform_3(%arg0: i32) -> (i32, i32, i32) {
    %c0_i32 = arith.constant 0 : i32
    %c0_i32_0 = arith.constant 0 : i32
    %c0_i32_1 = arith.constant 0 : i32
    %c0_i32_2 = arith.constant 0 : i32
    return %c0_i32, %c0_i32_0, %c0_i32_1 : i32, i32, i32
  }
  func.func @transform_4(%arg0: i32) -> (i32, i32) {
    %c0_i32 = arith.constant 0 : i32
    %c0_i32_0 = arith.constant 0 : i32
    %c0_i32_1 = arith.constant 0 : i32
    return %c0_i32, %c0_i32_0 : i32, i32
  }
  func.func @transform_5(%arg0: i32) -> (i32, i32, i32, i32) {
    %c0_i32 = arith.constant 0 : i32
    %c0_i32_0 = arith.constant 0 : i32
    %c0_i32_1 = arith.constant 0 : i32
    %c0_i32_2 = arith.constant 0 : i32
    return %arg0, %c0_i32, %c0_i32_0, %c0_i32_1 : i32, i32, i32, i32
  }
}

</mosaic_0001>

<llo_original>
// kernel: shallow_erp_net_pallas.1
$region0: #{shallow_erp_net_pallas.1}
  #allocation0 [shape = 'u32[]', space=smem, size = 0x4, offset = 0x4, fixed_abs, tag = 'smem constant byte address 0x4 - core index']
  #allocation1 [shape = 'u32[144,128]{1,0:T(1,128)}', space=vmem, size = 0x12000, scoped, tag = 'internal scratch']
  %s0 = inlined_call_operand.vmem [shape: f32[2,8,186], index: 0, kind: input, shape index: {}]
  %s1 = inlined_call_operand.vmem [shape: f32[20,176], index: 1, kind: input, shape index: {}]
  %s2 = inlined_call_operand.vmem [shape: f32[165,7], index: 2, kind: input, shape index: {}]
  %s3 = inlined_call_operand.vmem [shape: f32[7,2,20], index: 3, kind: input, shape index: {}]
  %s4 = inlined_call_operand.vmem [shape: f32[20,2], index: 4, kind: input, shape index: {}]
  %s5 = inlined_call_operand.vmem [shape: f32[2,1,2,1], index: 5, kind: output, shape index: {}]
  %s6 = sld [smem:[#allocation0]]
  $region53: #{shallow_erp_net_pallas.1} parent=0
    _
  %s8 = ssub.s32 1, %s6
  %s9 = scalar_select 0, %s8, %s6
  loop: start=0, step=1, limit=4
  $region2: #{shallow_erp_net_pallas.1} parent=0 // loop_pre_header
    _
  $region3: #{shallow_erp_net_pallas.1} parent=0 // loop_header
    %s11 = sphi 0, %s15
    %p12 = scmp.ge.s32.totalorder %s11, 4
    %s21 = sphi 0, %s23
    %s24 = sphi 0, %s21
    %s25 = sphi 0, %s24
    %s41 = sphi 0, %s25
    %s45 = sphi 0, %s45
    %s47 = sphi 0, %s45
    %s48 = sphi 0, %s47
    %s62 = sphi 0, %s48
    %s66 = sphi 0, %s66
    %s68 = sphi 0, %s66
    %s69 = sphi 0, %s68
    %s83 = sphi 0, %s69
    %s87 = sphi 0, %s87
    %s89 = sphi 0, %s87
    %s90 = sphi 0, %s89
    %s104 = sphi 0, %s90
    %s108 = sphi 0, %s108
    %s110 = sphi 0, %s108
    %s111 = sphi 0, %s110
    %s125 = sphi 0, %s111
    %s131 = sphi 0, %s133
    %s134 = sphi 0, %s131
    %s135 = sphi 0, %s134
    %s151 = sphi 0, %s135
  $region4: #{shallow_erp_net_pallas.1} parent=0 // loop_header_branch
    %14 = sbr.rel (%p12) target = $region8
  $region5: #{shallow_erp_net_pallas.1} parent=0 // loop_body
    %s16 = ssub.s32 %s11, 1
    %s17 = ssub.s32 %s11, 2
    %s18 = sadd.s32 %s11, 1
    %s19 = ssub.s32 %s11, %s18
    %p20 = scmp.eq.s32.totalorder %s19, 0
    %s22 = sadd.s32 %s21, 1
    %s23 = scalar_select %p20, %s21, %s22
    %p26 = pneg %p20
    %p27 = scmp.eq.s32.totalorder %s11, 1
    %p28 = por %p26, %p27
    %p29 = scmp.ne.s32.totalorder %s21, %s24
    %p30 = scmp.eq.s32.totalorder %s11, 0
    %p31 = por %p29, %p30
    %p32 = scmp.ne.s32.totalorder %s21, %s24
    %p33 = scmp.eq.s32.totalorder %s16, 1
    %p34 = por %p32, %p33
    %p35 = scmp.ne.s32.totalorder %s24, %s25
    %p36 = scmp.eq.s32.totalorder %s16, 0
    %p37 = por %p35, %p36
    %p38 = scmp.ne.s32.totalorder %s24, %s25
    %p39 = scmp.eq.s32.totalorder %s17, 1
    %p40 = por %p38, %p39
    %p42 = scmp.ne.s32.totalorder %s25, %s41
    %p43 = scmp.eq.s32.totalorder %s17, 0
    %p44 = por %p42, %p43
    %s46 = sadd.s32 %s45, 1
    %p49 = scmp.eq.s32.totalorder %s11, 1
    %p50 = scmp.ne.s32.totalorder %s45, %s47
    %p51 = scmp.eq.s32.totalorder %s11, 0
    %p52 = por %p50, %p51
    %p53 = scmp.ne.s32.totalorder %s45, %s47
    %p54 = scmp.eq.s32.totalorder %s16, 1
    %p55 = por %p53, %p54
    %p56 = scmp.ne.s32.totalorder %s47, %s48
    %p57 = scmp.eq.s32.totalorder %s16, 0
    %p58 = por %p56, %p57
    %p59 = scmp.ne.s32.totalorder %s47, %s48
    %p60 = scmp.eq.s32.totalorder %s17, 1
    %p61 = por %p59, %p60
    %p63 = scmp.ne.s32.totalorder %s48, %s62
    %p64 = scmp.eq.s32.totalorder %s17, 0
    %p65 = por %p63, %p64
    %s67 = sadd.s32 %s66, 1
    %p70 = scmp.eq.s32.totalorder %s11, 1
    %p71 = scmp.ne.s32.totalorder %s66, %s68
    %p72 = scmp.eq.s32.totalorder %s11, 0
    %p73 = por %p71, %p72
    %p74 = scmp.ne.s32.totalorder %s66, %s68
    %p75 = scmp.eq.s32.totalorder %s16, 1
    %p76 = por %p74, %p75
    %p77 = scmp.ne.s32.totalorder %s68, %s69
    %p78 = scmp.eq.s32.totalorder %s16, 0
    %p79 = por %p77, %p78
    %p80 = scmp.ne.s32.totalorder %s68, %s69
    %p81 = scmp.eq.s32.totalorder %s17, 1
    %p82 = por %p80, %p81
    %p84 = scmp.ne.s32.totalorder %s69, %s83
    %p85 = scmp.eq.s32.totalorder %s17, 0
    %p86 = por %p84, %p85
    %s88 = sadd.s32 %s87, 1
    %p91 = scmp.eq.s32.totalorder %s11, 1
    %p92 = scmp.ne.s32.totalorder %s87, %s89
    %p93 = scmp.eq.s32.totalorder %s11, 0
    %p94 = por %p92, %p93
    %p95 = scmp.ne.s32.totalorder %s87, %s89
    %p96 = scmp.eq.s32.totalorder %s16, 1
    %p97 = por %p95, %p96
    %p98 = scmp.ne.s32.totalorder %s89, %s90
    %p99 = scmp.eq.s32.totalorder %s16, 0
    %p100 = por %p98, %p99
    %p101 = scmp.ne.s32.totalorder %s89, %s90
    %p102 = scmp.eq.s32.totalorder %s17, 1
    %p103 = por %p101, %p102
    %p105 = scmp.ne.s32.totalorder %s90, %s104
    %p106 = scmp.eq.s32.totalorder %s17, 0
    %p107 = por %p105, %p106
    %s109 = sadd.s32 %s108, 1
    %p112 = scmp.eq.s32.totalorder %s11, 1
    %p113 = scmp.ne.s32.totalorder %s108, %s110
    %p114 = scmp.eq.s32.totalorder %s11, 0
    %p115 = por %p113, %p114
    %p116 = scmp.ne.s32.totalorder %s108, %s110
    %p117 = scmp.eq.s32.totalorder %s16, 1
    %p118 = por %p116, %p117
    %p119 = scmp.ne.s32.totalorder %s110, %s111
    %p120 = scmp.eq.s32.totalorder %s16, 0
    %p121 = por %p119, %p120
    %p122 = scmp.ne.s32.totalorder %s110, %s111
    %p123 = scmp.eq.s32.totalorder %s17, 1
    %p124 = por %p122, %p123
    %p126 = scmp.ne.s32.totalorder %s111, %s125
    %p127 = scmp.eq.s32.totalorder %s17, 0
    %p128 = por %p126, %p127
    %s129 = ssub.s32 %s11, %s18
    %p130 = scmp.eq.s32.totalorder %s129, 0
    %s132 = sadd.s32 %s131, 1
    %s133 = scalar_select %p130, %s131, %s132
    %p136 = pneg %p130
    %p137 = scmp.eq.s32.totalorder %s11, 1
    %p138 = por %p136, %p137
    %p139 = scmp.ne.s32.totalorder %s131, %s134
    %p140 = scmp.eq.s32.totalorder %s11, 0
    %p141 = por %p139, %p140
    %p142 = scmp.ne.s32.totalorder %s131, %s134
    %p143 = scmp.eq.s32.totalorder %s16, 1
    %p144 = por %p142, %p143
    %p145 = scmp.ne.s32.totalorder %s134, %s135
    %p146 = scmp.eq.s32.totalorder %s16, 0
    %p147 = por %p145, %p146
    %p148 = scmp.ne.s32.totalorder %s134, %s135
    %p149 = scmp.eq.s32.totalorder %s17, 1
    %p150 = por %p148, %p149
    %p152 = scmp.ne.s32.totalorder %s135, %s151
    %p153 = scmp.eq.s32.totalorder %s17, 0
    %p154 = por %p152, %p153
    %p155 = scmp.le.s32.totalorder 1, %s11
    %p156 = scmp.lt.s32.totalorder %s11, 3
    %p157 = pnand %p155, %p156
    %p158 = pneg %p157
    // Predicated region
    $region9: #{shallow_erp_net_pallas.1} parent=5 // pred_check
      _
    $region10: #{shallow_erp_net_pallas.1} parent=5 // pred_check_branch
      %160 = sbr.rel (%p157) target = $region12
    $region11: #{shallow_erp_net_pallas.1} parent=5 // pred_region
      %s161 = ssub.s32 %s11, 1
      // Predicated region
      $region13: #{shallow_erp_net_pallas.1} parent=11 // pred_check
        %p162 = pneg %p58
      $region14: #{shallow_erp_net_pallas.1} parent=11 // pred_check_branch
        %164 = sbr.rel (%p162) target = $region16
      $region15: #{shallow_erp_net_pallas.1} parent=11 // pred_region
        _
      $region16: #{shallow_erp_net_pallas.1} parent=11 // pred_fallthru
        _
      // Predicated region
      $region17: #{shallow_erp_net_pallas.1} parent=11 // pred_check
        %p165 = pneg %p79
      $region18: #{shallow_erp_net_pallas.1} parent=11 // pred_check_branch
        %167 = sbr.rel (%p165) target = $region20
      $region19: #{shallow_erp_net_pallas.1} parent=11 // pred_region
        _
      $region20: #{shallow_erp_net_pallas.1} parent=11 // pred_fallthru
        _
      // Predicated region
      $region21: #{shallow_erp_net_pallas.1} parent=11 // pred_check
        %p168 = pneg %p100
      $region22: #{shallow_erp_net_pallas.1} parent=11 // pred_check_branch
        %170 = sbr.rel (%p168) target = $region24
      $region23: #{shallow_erp_net_pallas.1} parent=11 // pred_region
        _
      $region24: #{shallow_erp_net_pallas.1} parent=11 // pred_fallthru
        _
      // Predicated region
      $region25: #{shallow_erp_net_pallas.1} parent=11 // pred_check
        %p171 = pneg %p121
      $region26: #{shallow_erp_net_pallas.1} parent=11 // pred_check_branch
        %173 = sbr.rel (%p171) target = $region28
      $region27: #{shallow_erp_net_pallas.1} parent=11 // pred_region
        _
      $region28: #{shallow_erp_net_pallas.1} parent=11 // pred_fallthru
        _
    $region12: #{shallow_erp_net_pallas.1} parent=5 // pred_fallthru
      _
    %p174 = scmp.lt.s32.totalorder %s11, 2
    // Predicated region
    $region29: #{shallow_erp_net_pallas.1} parent=5 // pred_check
      %p175 = pneg %p174
    $region30: #{shallow_erp_net_pallas.1} parent=5 // pred_check_branch
      %177 = sbr.rel (%p175) target = $region32
    $region31: #{shallow_erp_net_pallas.1} parent=5 // pred_region
      // Predicated region
      $region33: #{shallow_erp_net_pallas.1} parent=31 // pred_check
        %p178 = pneg %p31
      $region34: #{shallow_erp_net_pallas.1} parent=31 // pred_check_branch
        %180 = sbr.rel (%p178) target = $region36
      $region35: #{shallow_erp_net_pallas.1} parent=31 // pred_region
        %p181 = scmp.lt.s32.totalorder %s11, 1
        %s182 = scalar_select %p181, %s11, 1
        %s183 = smul.addr %s182, 2
        %s184 = smul.addr %s183, 8
        %s185 = scalar_lea.vmem %s0, %s184
      $region36: #{shallow_erp_net_pallas.1} parent=31 // pred_fallthru
        _
    $region32: #{shallow_erp_net_pallas.1} parent=5 // pred_fallthru
      _
    %p186 = scmp.le.s32.totalorder 1, %s11
    %p187 = scmp.lt.s32.totalorder %s11, 3
    %p188 = pnand %p186, %p187
    %p189 = pneg %p188
    // Predicated region
    $region37: #{shallow_erp_net_pallas.1} parent=5 // pred_check
      _
    $region38: #{shallow_erp_net_pallas.1} parent=5 // pred_check_branch
      %191 = sbr.rel (%p188) target = $region40
    $region39: #{shallow_erp_net_pallas.1} parent=5 // pred_region
      %s192 = ssub.s32 %s11, 1
      %p193 = scmp.lt.s32.totalorder %s16, 1
      %s194 = scalar_select %p193, %s16, 1
      %s195 = smul.addr %s194, 2
      %s196 = smul.addr %s195, 8
      %s197 = scalar_lea.vmem %s0, %s196
      %p198 = pneg %p37
      %p199 = pneg %p34
      %p200 = pneg %p58
      %p201 = pneg %p55
      %p202 = pneg %p79
      %p203 = pneg %p76
      %p204 = pneg %p100
      %p205 = pneg %p97
      %p206 = pneg %p121
      %p207 = pneg %p118
      %p208 = pneg %p147
      %p209 = pneg %p144
      %p210 = scmp.lt.s32.totalorder %s16, 1
      %s211 = scalar_select %p210, %s16, 1
      %s212 = smul.addr %s211, 2
      %s213 = scalar_lea.vmem %s5, %s212
      %p214 = scmp.lt.s32.totalorder %s16, 1
      %s215 = scalar_select %p214, %s16, 1
      %s216 = smul.addr %s215, 2
      %s217 = smul.addr %s216, 8
      %s218 = scalar_lea.vmem %s0, %s217
      %p219 = scmp.lt.s32.totalorder %s16, 1
      %s220 = scalar_select %p219, %s16, 1
      %s221 = smul.addr %s220, 2
      %s222 = scalar_lea.vmem %s5, %s221
      %v223 = vld [vmem:[%s218] sm:$0xff]
      %v224 = vld [vmem:[%s218 + $0x8] sm:$0xff]
      %227 = vrot.lane.b32.xlu0 %v223, 127
      %v228 = vpop.permute.xlu0 %227
      %229 = vrot.lane.b32.xlu0 %v224, 127
      %v230 = vpop.permute.xlu0 %229
      %vm231 = vcmask 1039360
      %v232 = vsel %vm231, %v228, %v230
      %235 = vrot.lane.b32.xlu0 %v223, 126
      %v236 = vpop.permute.xlu0 %235
      %237 = vrot.lane.b32.xlu0 %v224, 126
      %v238 = vpop.permute.xlu0 %237
      %vm239 = vcmask 1031168
      %v240 = vsel %vm239, %v236, %v238
      %243 = vrot.lane.b32.xlu0 %v223, 125
      %v244 = vpop.permute.xlu0 %243
      %245 = vrot.lane.b32.xlu0 %v224, 125
      %v246 = vpop.permute.xlu0 %245
      %vm247 = vcmask 1022976
      %v248 = vsel %vm247, %v244, %v246
      %251 = vrot.lane.b32.xlu0 %v223, 124
      %v252 = vpop.permute.xlu0 %251
      %253 = vrot.lane.b32.xlu0 %v224, 124
      %v254 = vpop.permute.xlu0 %253
      %vm255 = vcmask 1014784
      %v256 = vsel %vm255, %v252, %v254
      %259 = vrot.lane.b32.xlu0 %v223, 123
      %v260 = vpop.permute.xlu0 %259
      %261 = vrot.lane.b32.xlu0 %v224, 123
      %v262 = vpop.permute.xlu0 %261
      %vm263 = vcmask 1006592
      %v264 = vsel %vm263, %v260, %v262
      %267 = vrot.lane.b32.xlu0 %v223, 122
      %v268 = vpop.permute.xlu0 %267
      %269 = vrot.lane.b32.xlu0 %v224, 122
      %v270 = vpop.permute.xlu0 %269
      %vm271 = vcmask 998400
      %v272 = vsel %vm271, %v268, %v270
      %275 = vrot.lane.b32.xlu0 %v223, 121
      %v276 = vpop.permute.xlu0 %275
      %277 = vrot.lane.b32.xlu0 %v224, 121
      %v278 = vpop.permute.xlu0 %277
      %vm279 = vcmask 990208
      %v280 = vsel %vm279, %v276, %v278
      %283 = vrot.lane.b32.xlu0 %v223, 120
      %v284 = vpop.permute.xlu0 %283
      %285 = vrot.lane.b32.xlu0 %v224, 120
      %v286 = vpop.permute.xlu0 %285
      %vm287 = vcmask 982016
      %v288 = vsel %vm287, %v284, %v286
      %291 = vrot.lane.b32.xlu0 %v223, 119
      %v292 = vpop.permute.xlu0 %291
      %293 = vrot.lane.b32.xlu0 %v224, 119
      %v294 = vpop.permute.xlu0 %293
      %vm295 = vcmask 973824
      %v296 = vsel %vm295, %v292, %v294
      %299 = vrot.lane.b32.xlu0 %v223, 118
      %v300 = vpop.permute.xlu0 %299
      %301 = vrot.lane.b32.xlu0 %v224, 118
      %v302 = vpop.permute.xlu0 %301
      %vm303 = vcmask 965632
      %v304 = vsel %vm303, %v300, %v302
      %307 = vrot.lane.b32.xlu0 %v223, 117
      %v308 = vpop.permute.xlu0 %307
      %309 = vrot.lane.b32.xlu0 %v224, 117
      %v310 = vpop.permute.xlu0 %309
      %vm311 = vcmask 957440
      %v312 = vsel %vm311, %v308, %v310
      %315 = vrot.lane.b32.xlu0 %v223, 116
      %v316 = vpop.permute.xlu0 %315
      %317 = vrot.lane.b32.xlu0 %v224, 116
      %v318 = vpop.permute.xlu0 %317
      %vm319 = vcmask 949248
      %v320 = vsel %vm319, %v316, %v318
      %323 = vrot.lane.b32.xlu0 %v223, 115
      %v324 = vpop.permute.xlu0 %323
      %325 = vrot.lane.b32.xlu0 %v224, 115
      %v326 = vpop.permute.xlu0 %325
      %vm327 = vcmask 941056
      %v328 = vsel %vm327, %v324, %v326
      %331 = vrot.lane.b32.xlu0 %v223, 114
      %v332 = vpop.permute.xlu0 %331
      %333 = vrot.lane.b32.xlu0 %v224, 114
      %v334 = vpop.permute.xlu0 %333
      %vm335 = vcmask 932864
      %v336 = vsel %vm335, %v332, %v334
      %339 = vrot.lane.b32.xlu0 %v223, 113
      %v340 = vpop.permute.xlu0 %339
      %341 = vrot.lane.b32.xlu0 %v224, 113
      %v342 = vpop.permute.xlu0 %341
      %vm343 = vcmask 924672
      %v344 = vsel %vm343, %v340, %v342
      %347 = vrot.lane.b32.xlu0 %v223, 112
      %v348 = vpop.permute.xlu0 %347
      %349 = vrot.lane.b32.xlu0 %v224, 112
      %v350 = vpop.permute.xlu0 %349
      %351 = vrot.lane.b32.xlu0 %v232, 112
      %v352 = vpop.permute.xlu0 %351
      %353 = vrot.lane.b32.xlu0 %v230, 112
      %v354 = vpop.permute.xlu0 %353
      %355 = vrot.lane.b32.xlu0 %v240, 112
      %v356 = vpop.permute.xlu0 %355
      %357 = vrot.lane.b32.xlu0 %v238, 112
      %v358 = vpop.permute.xlu0 %357
      %359 = vrot.lane.b32.xlu0 %v248, 112
      %v360 = vpop.permute.xlu0 %359
      %361 = vrot.lane.b32.xlu0 %v246, 112
      %v362 = vpop.permute.xlu0 %361
      %363 = vrot.lane.b32.xlu0 %v256, 112
      %v364 = vpop.permute.xlu0 %363
      %365 = vrot.lane.b32.xlu0 %v254, 112
      %v366 = vpop.permute.xlu0 %365
      %367 = vrot.lane.b32.xlu0 %v264, 112
      %v368 = vpop.permute.xlu0 %367
      %369 = vrot.lane.b32.xlu0 %v262, 112
      %v370 = vpop.permute.xlu0 %369
      %vm371 = vcmask 916480
      %v372 = vsel %vm371, %v348, %v350
      %v373 = vsel %vm371, %v352, %v354
      %v374 = vsel %vm371, %v356, %v358
      %v375 = vsel %vm371, %v360, %v362
      %v376 = vsel %vm371, %v364, %v366
      %v377 = vsel %vm371, %v368, %v370
      %v390 = vld [vmem:[%s1] sm:$0xff]
      %v391 = vld [vmem:[%s1 + $0x8] sm:$0xff]
      %v392 = vld [vmem:[%s1 + $0x10] sm:$0xff]
      %v393 = vld [vmem:[%s1 + $0x18] sm:$0xff]
      %v394 = vld [vmem:[%s1 + $0x20] sm:$0xf]
      %v395 = vld [vmem:[%s1 + $0x28] sm:$0xf]
      %v396 = vld [vmem:[%s4] sm:$0xff]
      %v397 = vld [vmem:[%s4 + $0x8] sm:$0xff]
      %v398 = vld [vmem:[%s4 + $0x10] sm:$0xf]
      %400 = vset.pattern.permute.xlu0 0
      %401 = vperm.xlu0 %400, %v396
      %v402 = vpop.permute.xlu0 %401
      %405 = vset.pattern.permute.xlu0 0
      %406 = vperm.xlu0 %405, %v397
      %v407 = vpop.permute.xlu0 %406
      %410 = vset.pattern.permute.xlu0 0
      %411 = vperm.xlu0 %410, %v398
      %v412 = vpop.permute.xlu0 %411
      %vm414 = vcmask 392192
      %v416 = vsel %vm414, %v391, 0
      %v419 = vsel %vm414, %v393, 0
      %v422 = vsel %vm414, %v395, 0
      %v424 = vand.u32 %v224, 4294901760
      %425 = vmatprep.subr.mxu0 %v424
      %v426 = vand.u32 %v223, 4294901760
      %427 = vmatpush1.msra.mxu0 %v426
      %v428 = vand.u32 %v230, 4294901760
      %429 = vmatprep.subr.mxu0 %v428
      %v430 = vand.u32 %v232, 4294901760
      %431 = vmatpush1.msra.mxu0 %v430
      %v432 = vand.u32 %v238, 4294901760
      %433 = vmatprep.subr.mxu0 %v432
      %v434 = vand.u32 %v240, 4294901760
      %435 = vmatpush1.msra.mxu0 %v434
      %v436 = vand.u32 %v246, 4294901760
      %437 = vmatprep.subr.mxu0 %v436
      %v438 = vand.u32 %v248, 4294901760
      %439 = vmatpush1.msra.mxu0 %v438
      %v440 = vand.u32 %v254, 4294901760
      %441 = vmatprep.subr.mxu0 %v440
      %v442 = vand.u32 %v256, 4294901760
      %443 = vmatpush1.msra.mxu0 %v442
      %v444 = vand.u32 %v262, 4294901760
      %445 = vmatprep.subr.mxu0 %v444
      %v446 = vand.u32 %v264, 4294901760
      %447 = vmatpush1.msra.mxu0 %v446
      %v448 = vand.u32 %v270, 4294901760
      %449 = vmatprep.subr.mxu0 %v448
      %v450 = vand.u32 %v272, 4294901760
      %451 = vmatpush1.msra.mxu0 %v450
      %v452 = vand.u32 %v278, 4294901760
      %453 = vmatprep.subr.mxu0 %v452
      %v454 = vand.u32 %v280, 4294901760
      %455 = vmatpush1.msra.mxu0 %v454
      %v456 = vand.u32 %v286, 4294901760
      %457 = vmatprep.subr.mxu0 %v456
      %v458 = vand.u32 %v288, 4294901760
      %459 = vmatpush1.msra.mxu0 %v458
      %v460 = vand.u32 %v294, 4294901760
      %461 = vmatprep.subr.mxu0 %v460
      %v462 = vand.u32 %v296, 4294901760
      %463 = vmatpush1.msra.mxu0 %v462
      %v464 = vand.u32 %v302, 4294901760
      %465 = vmatprep.subr.mxu0 %v464
      %v466 = vand.u32 %v304, 4294901760
      %467 = vmatpush1.msra.mxu0 %v466
      %v468 = vand.u32 %v310, 4294901760
      %469 = vmatprep.subr.mxu0 %v468
      %v470 = vand.u32 %v312, 4294901760
      %471 = vmatpush1.msra.mxu0 %v470
      %v472 = vand.u32 %v318, 4294901760
      %473 = vmatprep.subr.mxu0 %v472
      %v474 = vand.u32 %v320, 4294901760
      %475 = vmatpush1.msra.mxu0 %v474
      %v476 = vand.u32 %v326, 4294901760
      %477 = vmatprep.subr.mxu0 %v476
      %v478 = vand.u32 %v328, 4294901760
      %479 = vmatpush1.msra.mxu0 %v478
      %v480 = vand.u32 %v334, 4294901760
      %481 = vmatprep.subr.mxu0 %v480
      %v482 = vand.u32 %v336, 4294901760
      %483 = vmatpush1.msra.mxu0 %v482
      %v484 = vand.u32 %v342, 4294901760
      %485 = vmatprep.subr.mxu0 %v484
      %v486 = vand.u32 %v344, 4294901760
      %487 = vmatpush1.msra.mxu0 %v486
      %v488 = vand.u32 %v350, 4294901760
      %489 = vmatprep.subr.mxu0 %v488
      %v490 = vand.u32 %v372, 4294901760
      %491 = vmatpush1.msra.mxu0 %v490
      %v492 = vand.u32 %v354, 4294901760
      %493 = vmatprep.subr.mxu0 %v492
      %v494 = vand.u32 %v373, 4294901760
      %495 = vmatpush1.msra.mxu0 %v494
      %v496 = vand.u32 %v358, 4294901760
      %497 = vmatprep.subr.mxu0 %v496
      %v498 = vand.u32 %v374, 4294901760
      %499 = vmatpush1.msra.mxu0 %v498
      %v500 = vand.u32 %v362, 4294901760
      %501 = vmatprep.subr.mxu0 %v500
      %v502 = vand.u32 %v375, 4294901760
      %503 = vmatpush1.msra.mxu0 %v502
      %v504 = vand.u32 %v366, 4294901760
      %505 = vmatprep.subr.mxu0 %v504
      %v506 = vand.u32 %v376, 4294901760
      %507 = vmatpush1.msra.mxu0 %v506
      %v508 = vand.u32 %v370, 4294901760
      %509 = vmatprep.subr.mxu0 %v508
      %v510 = vand.u32 %v377, 4294901760
      %511 = vmatpush1.msra.mxu0 %v510
      %512 = vmatprep.subr.mxu0 0.0
      %513 = vmatpush1.msra.mxu0 0.0
      %514 = vmatprep.subr.mxu0 0.0
      %515 = vmatpush1.msra.mxu0 0.0
      %516 = vmatprep.subr.mxu0 0.0
      %517 = vmatpush1.msra.mxu0 0.0
      %518 = vmatprep.subr.mxu0 0.0
      %519 = vmatpush1.msra.mxu0 0.0
      %520 = vmatprep.subr.mxu0 0.0
      %521 = vmatpush1.msra.mxu0 0.0
      %522 = vmatprep.subr.mxu0 0.0
      %523 = vmatpush1.msra.mxu0 0.0
      %524 = vmatprep.subr.mxu0 0.0
      %525 = vmatpush1.msra.mxu0 0.0
      %526 = vmatprep.subr.mxu0 0.0
      %527 = vmatpush1.msra.mxu0 0.0
      %528 = vmatprep.subr.mxu0 0.0
      %529 = vmatpush1.msra.mxu0 0.0
      %530 = vmatprep.subr.mxu0 0.0
      %531 = vmatpush1.msra.mxu0 0.0
      %v532 = vand.u32 %v416, 4294901760
      %v533 = vsub.f32 %v416, %v532
      %v534 = vand.u32 %v533, 4294901760
      %v535 = vsub.f32 %v533, %v534
      %v536 = vand.u32 %v535, 4294901760
      %537 = vmatprep.mubr.f32.mxu0 %v536
      %v538 = vand.u32 %v390, 4294901760
      %v539 = vsub.f32 %v390, %v538
      %v540 = vand.u32 %v539, 4294901760
      %v541 = vsub.f32 %v539, %v540
      %v542 = vand.u32 %v541, 4294901760
      %543 = vmatmul.mubr.f32.gmra.mrb[0].mxu0 %v542
      %v544 = vpop.f32.mrb[0].mxu0
      %v545 = vadd.f32 %v402, %v544
      %v546 = vpop.f32.mrb[0].mxu0
      %v547 = vadd.f32 %v402, %v546
      %v548 = vand.u32 %v419, 4294901760
      %v549 = vsub.f32 %v419, %v548
      %v550 = vand.u32 %v549, 4294901760
      %v551 = vsub.f32 %v549, %v550
      %v552 = vand.u32 %v551, 4294901760
      %553 = vmatprep.mubr.f32.mxu0 %v552
      %v554 = vand.u32 %v392, 4294901760
      %v555 = vsub.f32 %v392, %v554
      %v556 = vand.u32 %v555, 4294901760
      %v557 = vsub.f32 %v555, %v556
      %v558 = vand.u32 %v557, 4294901760
      %559 = vmatmul.mubr.f32.gmra.mrb[0].mxu0 %v558
      %v560 = vpop.f32.mrb[0].mxu0
      %v561 = vadd.f32 %v407, %v560
      %v562 = vpop.f32.mrb[0].mxu0
      %v563 = vadd.f32 %v407, %v562
      %v564 = vand.u32 %v422, 4294901760
      %v565 = vsub.f32 %v422, %v564
      %v566 = vand.u32 %v565, 4294901760
      %v567 = vsub.f32 %v565, %v566
      %v568 = vand.u32 %v567, 4294901760
      %569 = vmatprep.mubr.f32.mxu0 %v568
      %v570 = vand.u32 %v394, 4294901760
      %v571 = vsub.f32 %v394, %v570
      %v572 = vand.u32 %v571, 4294901760
      %v573 = vsub.f32 %v571, %v572
      %v574 = vand.u32 %v573, 4294901760
      %575 = vmatmul.mubr.f32.gmra.mrb[0].mxu0 %v574
      %v576 = vpop.f32.mrb[0].mxu0
      %v577 = vadd.f32 %v412, %v576
      %v578 = vpop.f32.mrb[0].mxu0
      %v579 = vadd.f32 %v412, %v578
      %580 = vdwg.mxu0
      %v581 = vand.u32 %v224, 4294901760
      %v582 = vsub.f32 %v224, %v581
      %v583 = vand.u32 %v582, 4294901760
      %v584 = vsub.f32 %v582, %v583
      %v585 = vand.u32 %v584, 4294901760
      %586 = vmatprep.subr.mxu0 %v585
      %v587 = vand.u32 %v223, 4294901760
      %v588 = vsub.f32 %v223, %v587
      %v589 = vand.u32 %v588, 4294901760
      %v590 = vsub.f32 %v588, %v589
      %v591 = vand.u32 %v590, 4294901760
      %592 = vmatpush1.msra.mxu0 %v591
      %v593 = vand.u32 %v230, 4294901760
      %v594 = vsub.f32 %v230, %v593
      %v595 = vand.u32 %v594, 4294901760
      %v596 = vsub.f32 %v594, %v595
      %v597 = vand.u32 %v596, 4294901760
      %598 = vmatprep.subr.mxu0 %v597
      %v599 = vand.u32 %v232, 4294901760
      %v600 = vsub.f32 %v232, %v599
      %v601 = vand.u32 %v600, 4294901760
      %v602 = vsub.f32 %v600, %v601
      %v603 = vand.u32 %v602, 4294901760
      %604 = vmatpush1.msra.mxu0 %v603
      %v605 = vand.u32 %v238, 4294901760
      %v606 = vsub.f32 %v238, %v605
      %v607 = vand.u32 %v606, 4294901760
      %v608 = vsub.f32 %v606, %v607
      %v609 = vand.u32 %v608, 4294901760
      %610 = vmatprep.subr.mxu0 %v609
      %v611 = vand.u32 %v240, 4294901760
      %v612 = vsub.f32 %v240, %v611
      %v613 = vand.u32 %v612, 4294901760
      %v614 = vsub.f32 %v612, %v613
      %v615 = vand.u32 %v614, 4294901760
      %616 = vmatpush1.msra.mxu0 %v615
      %v617 = vand.u32 %v246, 4294901760
      %v618 = vsub.f32 %v246, %v617
      %v619 = vand.u32 %v618, 4294901760
      %v620 = vsub.f32 %v618, %v619
      %v621 = vand.u32 %v620, 4294901760
      %622 = vmatprep.subr.mxu0 %v621
      %v623 = vand.u32 %v248, 4294901760
      %v624 = vsub.f32 %v248, %v623
      %v625 = vand.u32 %v624, 4294901760
      %v626 = vsub.f32 %v624, %v625
      %v627 = vand.u32 %v626, 4294901760
      %628 = vmatpush1.msra.mxu0 %v627
      %v629 = vand.u32 %v254, 4294901760
      %v630 = vsub.f32 %v254, %v629
      %v631 = vand.u32 %v630, 4294901760
      %v632 = vsub.f32 %v630, %v631
      %v633 = vand.u32 %v632, 4294901760
      %634 = vmatprep.subr.mxu0 %v633
      %v635 = vand.u32 %v256, 4294901760
      %v636 = vsub.f32 %v256, %v635
      %v637 = vand.u32 %v636, 4294901760
      %v638 = vsub.f32 %v636, %v637
      %v639 = vand.u32 %v638, 4294901760
      %640 = vmatpush1.msra.mxu0 %v639
      %v641 = vand.u32 %v262, 4294901760
      %v642 = vsub.f32 %v262, %v641
      %v643 = vand.u32 %v642, 4294901760
      %v644 = vsub.f32 %v642, %v643
      %v645 = vand.u32 %v644, 4294901760
      %646 = vmatprep.subr.mxu0 %v645
      %v647 = vand.u32 %v264, 4294901760
      %v648 = vsub.f32 %v264, %v647
      %v649 = vand.u32 %v648, 4294901760
      %v650 = vsub.f32 %v648, %v649
      %v651 = vand.u32 %v650, 4294901760
      %652 = vmatpush1.msra.mxu0 %v651
      %v653 = vand.u32 %v270, 4294901760
      %v654 = vsub.f32 %v270, %v653
      %v655 = vand.u32 %v654, 4294901760
      %v656 = vsub.f32 %v654, %v655
      %v657 = vand.u32 %v656, 4294901760
      %658 = vmatprep.subr.mxu0 %v657
      %v659 = vand.u32 %v272, 4294901760
      %v660 = vsub.f32 %v272, %v659
      %v661 = vand.u32 %v660, 4294901760
      %v662 = vsub.f32 %v660, %v661
      %v663 = vand.u32 %v662, 4294901760
      %664 = vmatpush1.msra.mxu0 %v663
      %v665 = vand.u32 %v278, 4294901760
      %v666 = vsub.f32 %v278, %v665
      %v667 = vand.u32 %v666, 4294901760
      %v668 = vsub.f32 %v666, %v667
      %v669 = vand.u32 %v668, 4294901760
      %670 = vmatprep.subr.mxu0 %v669
      %v671 = vand.u32 %v280, 4294901760
      %v672 = vsub.f32 %v280, %v671
      %v673 = vand.u32 %v672, 4294901760
      %v674 = vsub.f32 %v672, %v673
      %v675 = vand.u32 %v674, 4294901760
      %676 = vmatpush1.msra.mxu0 %v675
      %v677 = vand.u32 %v286, 4294901760
      %v678 = vsub.f32 %v286, %v677
      %v679 = vand.u32 %v678, 4294901760
      %v680 = vsub.f32 %v678, %v679
      %v681 = vand.u32 %v680, 4294901760
      %682 = vmatprep.subr.mxu0 %v681
      %v683 = vand.u32 %v288, 4294901760
      %v684 = vsub.f32 %v288, %v683
      %v685 = vand.u32 %v684, 4294901760
      %v686 = vsub.f32 %v684, %v685
      %v687 = vand.u32 %v686, 4294901760
      %688 = vmatpush1.msra.mxu0 %v687
      %v689 = vand.u32 %v294, 4294901760
      %v690 = vsub.f32 %v294, %v689
      %v691 = vand.u32 %v690, 4294901760
      %v692 = vsub.f32 %v690, %v691
      %v693 = vand.u32 %v692, 4294901760
      %694 = vmatprep.subr.mxu0 %v693
      %v695 = vand.u32 %v296, 4294901760
      %v696 = vsub.f32 %v296, %v695
      %v697 = vand.u32 %v696, 4294901760
      %v698 = vsub.f32 %v696, %v697
      %v699 = vand.u32 %v698, 4294901760
      %700 = vmatpush1.msra.mxu0 %v699
      %v701 = vand.u32 %v302, 4294901760
      %v702 = vsub.f32 %v302, %v701
      %v703 = vand.u32 %v702, 4294901760
      %v704 = vsub.f32 %v702, %v703
      %v705 = vand.u32 %v704, 4294901760
      %706 = vmatprep.subr.mxu0 %v705
      %v707 = vand.u32 %v304, 4294901760
      %v708 = vsub.f32 %v304, %v707
      %v709 = vand.u32 %v708, 4294901760
      %v710 = vsub.f32 %v708, %v709
      %v711 = vand.u32 %v710, 4294901760
      %712 = vmatpush1.msra.mxu0 %v711
      %v713 = vand.u32 %v310, 4294901760
      %v714 = vsub.f32 %v310, %v713
      %v715 = vand.u32 %v714, 4294901760
      %v716 = vsub.f32 %v714, %v715
      %v717 = vand.u32 %v716, 4294901760
      %718 = vmatprep.subr.mxu0 %v717
      %v719 = vand.u32 %v312, 4294901760
      %v720 = vsub.f32 %v312, %v719
      %v721 = vand.u32 %v720, 4294901760
      %v722 = vsub.f32 %v720, %v721
      %v723 = vand.u32 %v722, 4294901760
      %724 = vmatpush1.msra.mxu0 %v723
      %v725 = vand.u32 %v318, 4294901760
      %v726 = vsub.f32 %v318, %v725
      %v727 = vand.u32 %v726, 4294901760
      %v728 = vsub.f32 %v726, %v727
      %v729 = vand.u32 %v728, 4294901760
      %730 = vmatprep.subr.mxu0 %v729
      %v731 = vand.u32 %v320, 4294901760
      %v732 = vsub.f32 %v320, %v731
      %v733 = vand.u32 %v732, 4294901760
      %v734 = vsub.f32 %v732, %v733
      %v735 = vand.u32 %v734, 4294901760
      %736 = vmatpush1.msra.mxu0 %v735
      %v737 = vand.u32 %v326, 4294901760
      %v738 = vsub.f32 %v326, %v737
      %v739 = vand.u32 %v738, 4294901760
      %v740 = vsub.f32 %v738, %v739
      %v741 = vand.u32 %v740, 4294901760
      %742 = vmatprep.subr.mxu0 %v741
      %v743 = vand.u32 %v328, 4294901760
      %v744 = vsub.f32 %v328, %v743
      %v745 = vand.u32 %v744, 4294901760
      %v746 = vsub.f32 %v744, %v745
      %v747 = vand.u32 %v746, 4294901760
      %748 = vmatpush1.msra.mxu0 %v747
      %v749 = vand.u32 %v334, 4294901760
      %v750 = vsub.f32 %v334, %v749
      %v751 = vand.u32 %v750, 4294901760
      %v752 = vsub.f32 %v750, %v751
      %v753 = vand.u32 %v752, 4294901760
      %754 = vmatprep.subr.mxu0 %v753
      %v755 = vand.u32 %v336, 4294901760
      %v756 = vsub.f32 %v336, %v755
      %v757 = vand.u32 %v756, 4294901760
      %v758 = vsub.f32 %v756, %v757
      %v759 = vand.u32 %v758, 4294901760
      %760 = vmatpush1.msra.mxu0 %v759
      %v761 = vand.u32 %v342, 4294901760
      %v762 = vsub.f32 %v342, %v761
      %v763 = vand.u32 %v762, 4294901760
      %v764 = vsub.f32 %v762, %v763
      %v765 = vand.u32 %v764, 4294901760
      %766 = vmatprep.subr.mxu0 %v765
      %v767 = vand.u32 %v344, 4294901760
      %v768 = vsub.f32 %v344, %v767
      %v769 = vand.u32 %v768, 4294901760
      %v770 = vsub.f32 %v768, %v769
      %v771 = vand.u32 %v770, 4294901760
      %772 = vmatpush1.msra.mxu0 %v771
      %v773 = vand.u32 %v350, 4294901760
      %v774 = vsub.f32 %v350, %v773
      %v775 = vand.u32 %v774, 4294901760
      %v776 = vsub.f32 %v774, %v775
      %v777 = vand.u32 %v776, 4294901760
      %778 = vmatprep.subr.mxu0 %v777
      %v779 = vand.u32 %v372, 4294901760
      %v780 = vsub.f32 %v372, %v779
      %v781 = vand.u32 %v780, 4294901760
      %v782 = vsub.f32 %v780, %v781
      %v783 = vand.u32 %v782, 4294901760
      %784 = vmatpush1.msra.mxu0 %v783
      %v785 = vand.u32 %v354, 4294901760
      %v786 = vsub.f32 %v354, %v785
      %v787 = vand.u32 %v786, 4294901760
      %v788 = vsub.f32 %v786, %v787
      %v789 = vand.u32 %v788, 4294901760
      %790 = vmatprep.subr.mxu0 %v789
      %v791 = vand.u32 %v373, 4294901760
      %v792 = vsub.f32 %v373, %v791
      %v793 = vand.u32 %v792, 4294901760
      %v794 = vsub.f32 %v792, %v793
      %v795 = vand.u32 %v794, 4294901760
      %796 = vmatpush1.msra.mxu0 %v795
      %v797 = vand.u32 %v358, 4294901760
      %v798 = vsub.f32 %v358, %v797
      %v799 = vand.u32 %v798, 4294901760
      %v800 = vsub.f32 %v798, %v799
      %v801 = vand.u32 %v800, 4294901760
      %802 = vmatprep.subr.mxu0 %v801
      %v803 = vand.u32 %v374, 4294901760
      %v804 = vsub.f32 %v374, %v803
      %v805 = vand.u32 %v804, 4294901760
      %v806 = vsub.f32 %v804, %v805
      %v807 = vand.u32 %v806, 4294901760
      %808 = vmatpush1.msra.mxu0 %v807
      %v809 = vand.u32 %v362, 4294901760
      %v810 = vsub.f32 %v362, %v809
      %v811 = vand.u32 %v810, 4294901760
      %v812 = vsub.f32 %v810, %v811
      %v813 = vand.u32 %v812, 4294901760
      %814 = vmatprep.subr.mxu0 %v813
      %v815 = vand.u32 %v375, 4294901760
      %v816 = vsub.f32 %v375, %v815
      %v817 = vand.u32 %v816, 4294901760
      %v818 = vsub.f32 %v816, %v817
      %v819 = vand.u32 %v818, 4294901760
      %820 = vmatpush1.msra.mxu0 %v819
      %v821 = vand.u32 %v366, 4294901760
      %v822 = vsub.f32 %v366, %v821
      %v823 = vand.u32 %v822, 4294901760
      %v824 = vsub.f32 %v822, %v823
      %v825 = vand.u32 %v824, 4294901760
      %826 = vmatprep.subr.mxu0 %v825
      %v827 = vand.u32 %v376, 4294901760
      %v828 = vsub.f32 %v376, %v827
      %v829 = vand.u32 %v828, 4294901760
      %v830 = vsub.f32 %v828, %v829
      %v831 = vand.u32 %v830, 4294901760
      %832 = vmatpush1.msra.mxu0 %v831
      %v833 = vand.u32 %v370, 4294901760
      %v834 = vsub.f32 %v370, %v833
      %v835 = vand.u32 %v834, 4294901760
      %v836 = vsub.f32 %v834, %v835
      %v837 = vand.u32 %v836, 4294901760
      %838 = vmatprep.subr.mxu0 %v837
      %v839 = vand.u32 %v377, 4294901760
      %v840 = vsub.f32 %v377, %v839
      %v841 = vand.u32 %v840, 4294901760
      %v842 = vsub.f32 %v840, %v841
      %v843 = vand.u32 %v842, 4294901760
      %844 = vmatpush1.msra.mxu0 %v843
      %845 = vmatprep.subr.mxu0 0.0
      %846 = vmatpush1.msra.mxu0 0.0
      %847 = vmatprep.subr.mxu0 0.0
      %848 = vmatpush1.msra.mxu0 0.0
      %849 = vmatprep.subr.mxu0 0.0
      %850 = vmatpush1.msra.mxu0 0.0
      %851 = vmatprep.subr.mxu0 0.0
      %852 = vmatpush1.msra.mxu0 0.0
      %853 = vmatprep.subr.mxu0 0.0
      %854 = vmatpush1.msra.mxu0 0.0
      %855 = vmatprep.subr.mxu0 0.0
      %856 = vmatpush1.msra.mxu0 0.0
      %857 = vmatprep.subr.mxu0 0.0
      %858 = vmatpush1.msra.mxu0 0.0
      %859 = vmatprep.subr.mxu0 0.0
      %860 = vmatpush1.msra.mxu0 0.0
      %861 = vmatprep.subr.mxu0 0.0
      %862 = vmatpush1.msra.mxu0 0.0
      %863 = vmatprep.subr.mxu0 0.0
      %864 = vmatpush1.msra.mxu0 0.0
      %v865 = vand.u32 %v416, 4294901760
      %866 = vmatprep.mubr.f32.mxu0 %v865
      %v867 = vand.u32 %v390, 4294901760
      %868 = vmatmul.mubr.f32.gmra.mrb[0].mxu0 %v867
      %v869 = vpop.f32.mrb[0].mxu0
      %v870 = vadd.f32 %v545, %v869
      %v871 = vpop.f32.mrb[0].mxu0
      %v872 = vadd.f32 %v547, %v871
      %v873 = vand.u32 %v419, 4294901760
      %874 = vmatprep.mubr.f32.mxu0 %v873
      %v875 = vand.u32 %v392, 4294901760
      %876 = vmatmul.mubr.f32.gmra.mrb[0].mxu0 %v875
      %v877 = vpop.f32.mrb[0].mxu0
      %v878 = vadd.f32 %v561, %v877
      %v879 = vpop.f32.mrb[0].mxu0
      %v880 = vadd.f32 %v563, %v879
      %v881 = vand.u32 %v422, 4294901760
      %882 = vmatprep.mubr.f32.mxu0 %v881
      %v883 = vand.u32 %v394, 4294901760
      %884 = vmatmul.mubr.f32.gmra.mrb[0].mxu0 %v883
      %v885 = vpop.f32.mrb[0].mxu0
      %v886 = vadd.f32 %v577, %v885
      %v887 = vpop.f32.mrb[0].mxu0
      %v888 = vadd.f32 %v579, %v887
      %889 = vdwg.mxu0
      %v890 = vand.u32 %v224, 4294901760
      %v891 = vsub.f32 %v224, %v890
      %892 = vmatprep.subr.mxu0 %v891
      %v893 = vand.u32 %v223, 4294901760
      %v894 = vsub.f32 %v223, %v893
      %895 = vmatpush1.msra.mxu0 %v894
      %v896 = vand.u32 %v230, 4294901760
      %v897 = vsub.f32 %v230, %v896
      %898 = vmatprep.subr.mxu0 %v897
      %v899 = vand.u32 %v232, 4294901760
      %v900 = vsub.f32 %v232, %v899
      %901 = vmatpush1.msra.mxu0 %v900
      %v902 = vand.u32 %v238, 4294901760
      %v903 = vsub.f32 %v238, %v902
      %904 = vmatprep.subr.mxu0 %v903
      %v905 = vand.u32 %v240, 4294901760
      %v906 = vsub.f32 %v240, %v905
      %907 = vmatpush1.msra.mxu0 %v906
      %v908 = vand.u32 %v246, 4294901760
      %v909 = vsub.f32 %v246, %v908
      %910 = vmatprep.subr.mxu0 %v909
      %v911 = vand.u32 %v248, 4294901760
      %v912 = vsub.f32 %v248, %v911
      %913 = vmatpush1.msra.mxu0 %v912
      %v914 = vand.u32 %v254, 4294901760
      %v915 = vsub.f32 %v254, %v914
      %916 = vmatprep.subr.mxu0 %v915
      %v917 = vand.u32 %v256, 4294901760
      %v918 = vsub.f32 %v256, %v917
      %919 = vmatpush1.msra.mxu0 %v918
      %v920 = vand.u32 %v262, 4294901760
      %v921 = vsub.f32 %v262, %v920
      %922 = vmatprep.subr.mxu0 %v921
      %v923 = vand.u32 %v264, 4294901760
      %v924 = vsub.f32 %v264, %v923
      %925 = vmatpush1.msra.mxu0 %v924
      %v926 = vand.u32 %v270, 4294901760
      %v927 = vsub.f32 %v270, %v926
      %928 = vmatprep.subr.mxu0 %v927
      %v929 = vand.u32 %v272, 4294901760
      %v930 = vsub.f32 %v272, %v929
      %931 = vmatpush1.msra.mxu0 %v930
      %v932 = vand.u32 %v278, 4294901760
      %v933 = vsub.f32 %v278, %v932
      %934 = vmatprep.subr.mxu0 %v933
      %v935 = vand.u32 %v280, 4294901760
      %v936 = vsub.f32 %v280, %v935
      %937 = vmatpush1.msra.mxu0 %v936
      %v938 = vand.u32 %v286, 4294901760
      %v939 = vsub.f32 %v286, %v938
      %940 = vmatprep.subr.mxu0 %v939
      %v941 = vand.u32 %v288, 4294901760
      %v942 = vsub.f32 %v288, %v941
      %943 = vmatpush1.msra.mxu0 %v942
      %v944 = vand.u32 %v294, 4294901760
      %v945 = vsub.f32 %v294, %v944
      %946 = vmatprep.subr.mxu0 %v945
      %v947 = vand.u32 %v296, 4294901760
      %v948 = vsub.f32 %v296, %v947
      %949 = vmatpush1.msra.mxu0 %v948
      %v950 = vand.u32 %v302, 4294901760
      %v951 = vsub.f32 %v302, %v950
      %952 = vmatprep.subr.mxu0 %v951
      %v953 = vand.u32 %v304, 4294901760
      %v954 = vsub.f32 %v304, %v953
      %955 = vmatpush1.msra.mxu0 %v954
      %v956 = vand.u32 %v310, 4294901760
      %v957 = vsub.f32 %v310, %v956
      %958 = vmatprep.subr.mxu0 %v957
      %v959 = vand.u32 %v312, 4294901760
      %v960 = vsub.f32 %v312, %v959
      %961 = vmatpush1.msra.mxu0 %v960
      %v962 = vand.u32 %v318, 4294901760
      %v963 = vsub.f32 %v318, %v962
      %964 = vmatprep.subr.mxu0 %v963
      %v965 = vand.u32 %v320, 4294901760
      %v966 = vsub.f32 %v320, %v965
      %967 = vmatpush1.msra.mxu0 %v966
      %v968 = vand.u32 %v326, 4294901760
      %v969 = vsub.f32 %v326, %v968
      %970 = vmatprep.subr.mxu0 %v969
      %v971 = vand.u32 %v328, 4294901760
      %v972 = vsub.f32 %v328, %v971
      %973 = vmatpush1.msra.mxu0 %v972
      %v974 = vand.u32 %v334, 4294901760
      %v975 = vsub.f32 %v334, %v974
      %976 = vmatprep.subr.mxu0 %v975
      %v977 = vand.u32 %v336, 4294901760
      %v978 = vsub.f32 %v336, %v977
      %979 = vmatpush1.msra.mxu0 %v978
      %v980 = vand.u32 %v342, 4294901760
      %v981 = vsub.f32 %v342, %v980
      %982 = vmatprep.subr.mxu0 %v981
      %v983 = vand.u32 %v344, 4294901760
      %v984 = vsub.f32 %v344, %v983
      %985 = vmatpush1.msra.mxu0 %v984
      %v986 = vand.u32 %v350, 4294901760
      %v987 = vsub.f32 %v350, %v986
      %988 = vmatprep.subr.mxu0 %v987
      %v989 = vand.u32 %v372, 4294901760
      %v990 = vsub.f32 %v372, %v989
      %991 = vmatpush1.msra.mxu0 %v990
      %v992 = vand.u32 %v354, 4294901760
      %v993 = vsub.f32 %v354, %v992
      %994 = vmatprep.subr.mxu0 %v993
      %v995 = vand.u32 %v373, 4294901760
      %v996 = vsub.f32 %v373, %v995
      %997 = vmatpush1.msra.mxu0 %v996
      %v998 = vand.u32 %v358, 4294901760
      %v999 = vsub.f32 %v358, %v998
      %1000 = vmatprep.subr.mxu0 %v999
      %v1001 = vand.u32 %v374, 4294901760
      %v1002 = vsub.f32 %v374, %v1001
      %1003 = vmatpush1.msra.mxu0 %v1002
      %v1004 = vand.u32 %v362, 4294901760
      %v1005 = vsub.f32 %v362, %v1004
      %1006 = vmatprep.subr.mxu0 %v1005
      %v1007 = vand.u32 %v375, 4294901760
      %v1008 = vsub.f32 %v375, %v1007
      %1009 = vmatpush1.msra.mxu0 %v1008
      %v1010 = vand.u32 %v366, 4294901760
      %v1011 = vsub.f32 %v366, %v1010
      %1012 = vmatprep.subr.mxu0 %v1011
      %v1013 = vand.u32 %v376, 4294901760
      %v1014 = vsub.f32 %v376, %v1013
      %1015 = vmatpush1.msra.mxu0 %v1014
      %v1016 = vand.u32 %v370, 4294901760
      %v1017 = vsub.f32 %v370, %v1016
      %1018 = vmatprep.subr.mxu0 %v1017
      %v1019 = vand.u32 %v377, 4294901760
      %v1020 = vsub.f32 %v377, %v1019
      %1021 = vmatpush1.msra.mxu0 %v1020
      %1022 = vmatprep.subr.mxu0 0.0
      %1023 = vmatpush1.msra.mxu0 0.0
      %1024 = vmatprep.subr.mxu0 0.0
      %1025 = vmatpush1.msra.mxu0 0.0
      %1026 = vmatprep.subr.mxu0 0.0
      %1027 = vmatpush1.msra.mxu0 0.0
      %1028 = vmatprep.subr.mxu0 0.0
      %1029 = vmatpush1.msra.mxu0 0.0
      %1030 = vmatprep.subr.mxu0 0.0
      %1031 = vmatpush1.msra.mxu0 0.0
      %1032 = vmatprep.subr.mxu0 0.0
      %1033 = vmatpush1.msra.mxu0 0.0
      %1034 = vmatprep.subr.mxu0 0.0
      %1035 = vmatpush1.msra.mxu0 0.0
      %1036 = vmatprep.subr.mxu0 0.0
      %1037 = vmatpush1.msra.mxu0 0.0
      %1038 = vmatprep.subr.mxu0 0.0
      %1039 = vmatpush1.msra.mxu0 0.0
      %1040 = vmatprep.subr.mxu0 0.0
      %1041 = vmatpush1.msra.mxu0 0.0
      %v1042 = vand.u32 %v416, 4294901760
      %v1043 = vsub.f32 %v416, %v1042
      %1044 = vmatprep.mubr.f32.mxu0 %v1043
      %v1045 = vand.u32 %v390, 4294901760
      %v1046 = vsub.f32 %v390, %v1045
      %1047 = vmatmul.mubr.f32.gmra.mrb[0].mxu0 %v1046
      %v1048 = vpop.f32.mrb[0].mxu0
      %v1049 = vadd.f32 %v870, %v1048
      %v1050 = vpop.f32.mrb[0].mxu0
      %v1051 = vadd.f32 %v872, %v1050
      %v1052 = vand.u32 %v419, 4294901760
      %v1053 = vsub.f32 %v419, %v1052
      %1054 = vmatprep.mubr.f32.mxu0 %v1053
      %v1055 = vand.u32 %v392, 4294901760
      %v1056 = vsub.f32 %v392, %v1055
      %1057 = vmatmul.mubr.f32.gmra.mrb[0].mxu0 %v1056
      %v1058 = vpop.f32.mrb[0].mxu0
      %v1059 = vadd.f32 %v878, %v1058
      %v1060 = vpop.f32.mrb[0].mxu0
      %v1061 = vadd.f32 %v880, %v1060
      %v1062 = vand.u32 %v422, 4294901760
      %v1063 = vsub.f32 %v422, %v1062
      %1064 = vmatprep.mubr.f32.mxu0 %v1063
      %v1065 = vand.u32 %v394, 4294901760
      %v1066 = vsub.f32 %v394, %v1065
      %1067 = vmatmul.mubr.f32.gmra.mrb[0].mxu0 %v1066
      %v1068 = vpop.f32.mrb[0].mxu0
      %v1069 = vadd.f32 %v886, %v1068
      %v1070 = vpop.f32.mrb[0].mxu0
      %v1071 = vadd.f32 %v888, %v1070
      %1072 = vdwg.mxu0
      %v1073 = vand.u32 %v224, 4294901760
      %1074 = vmatprep.subr.mxu0 %v1073
      %v1075 = vand.u32 %v223, 4294901760
      %1076 = vmatpush1.msra.mxu0 %v1075
      %v1077 = vand.u32 %v230, 4294901760
      %1078 = vmatprep.subr.mxu0 %v1077
      %v1079 = vand.u32 %v232, 4294901760
      %1080 = vmatpush1.msra.mxu0 %v1079
      %v1081 = vand.u32 %v238, 4294901760
      %1082 = vmatprep.subr.mxu0 %v1081
      %v1083 = vand.u32 %v240, 4294901760
      %1084 = vmatpush1.msra.mxu0 %v1083
      %v1085 = vand.u32 %v246, 4294901760
      %1086 = vmatprep.subr.mxu0 %v1085
      %v1087 = vand.u32 %v248, 4294901760
      %1088 = vmatpush1.msra.mxu0 %v1087
      %v1089 = vand.u32 %v254, 4294901760
      %1090 = vmatprep.subr.mxu0 %v1089
      %v1091 = vand.u32 %v256, 4294901760
      %1092 = vmatpush1.msra.mxu0 %v1091
      %v1093 = vand.u32 %v262, 4294901760
      %1094 = vmatprep.subr.mxu0 %v1093
      %v1095 = vand.u32 %v264, 4294901760
      %1096 = vmatpush1.msra.mxu0 %v1095
      %v1097 = vand.u32 %v270, 4294901760
      %1098 = vmatprep.subr.mxu0 %v1097
      %v1099 = vand.u32 %v272, 4294901760
      %1100 = vmatpush1.msra.mxu0 %v1099
      %v1101 = vand.u32 %v278, 4294901760
      %1102 = vmatprep.subr.mxu0 %v1101
      %v1103 = vand.u32 %v280, 4294901760
      %1104 = vmatpush1.msra.mxu0 %v1103
      %v1105 = vand.u32 %v286, 4294901760
      %1106 = vmatprep.subr.mxu0 %v1105
      %v1107 = vand.u32 %v288, 4294901760
      %1108 = vmatpush1.msra.mxu0 %v1107
      %v1109 = vand.u32 %v294, 4294901760
      %1110 = vmatprep.subr.mxu0 %v1109
      %v1111 = vand.u32 %v296, 4294901760
      %1112 = vmatpush1.msra.mxu0 %v1111
      %v1113 = vand.u32 %v302, 4294901760
      %1114 = vmatprep.subr.mxu0 %v1113
      %v1115 = vand.u32 %v304, 4294901760
      %1116 = vmatpush1.msra.mxu0 %v1115
      %v1117 = vand.u32 %v310, 4294901760
      %1118 = vmatprep.subr.mxu0 %v1117
      %v1119 = vand.u32 %v312, 4294901760
      %1120 = vmatpush1.msra.mxu0 %v1119
      %v1121 = vand.u32 %v318, 4294901760
      %1122 = vmatprep.subr.mxu0 %v1121
      %v1123 = vand.u32 %v320, 4294901760
      %1124 = vmatpush1.msra.mxu0 %v1123
      %v1125 = vand.u32 %v326, 4294901760
      %1126 = vmatprep.subr.mxu0 %v1125
      %v1127 = vand.u32 %v328, 4294901760
      %1128 = vmatpush1.msra.mxu0 %v1127
      %v1129 = vand.u32 %v334, 4294901760
      %1130 = vmatprep.subr.mxu0 %v1129
      %v1131 = vand.u32 %v336, 4294901760
      %1132 = vmatpush1.msra.mxu0 %v1131
      %v1133 = vand.u32 %v342, 4294901760
      %1134 = vmatprep.subr.mxu0 %v1133
      %v1135 = vand.u32 %v344, 4294901760
      %1136 = vmatpush1.msra.mxu0 %v1135
      %v1137 = vand.u32 %v350, 4294901760
      %1138 = vmatprep.subr.mxu0 %v1137
      %v1139 = vand.u32 %v372, 4294901760
      %1140 = vmatpush1.msra.mxu0 %v1139
      %v1141 = vand.u32 %v354, 4294901760
      %1142 = vmatprep.subr.mxu0 %v1141
      %v1143 = vand.u32 %v373, 4294901760
      %1144 = vmatpush1.msra.mxu0 %v1143
      %v1145 = vand.u32 %v358, 4294901760
      %1146 = vmatprep.subr.mxu0 %v1145
      %v1147 = vand.u32 %v374, 4294901760
      %1148 = vmatpush1.msra.mxu0 %v1147
      %v1149 = vand.u32 %v362, 4294901760
      %1150 = vmatprep.subr.mxu0 %v1149
      %v1151 = vand.u32 %v375, 4294901760
      %1152 = vmatpush1.msra.mxu0 %v1151
      %v1153 = vand.u32 %v366, 4294901760
      %1154 = vmatprep.subr.mxu0 %v1153
      %v1155 = vand.u32 %v376, 4294901760
      %1156 = vmatpush1.msra.mxu0 %v1155
      %v1157 = vand.u32 %v370, 4294901760
      %1158 = vmatprep.subr.mxu0 %v1157
      %v1159 = vand.u32 %v377, 4294901760
      %1160 = vmatpush1.msra.mxu0 %v1159
      %1161 = vmatprep.subr.mxu0 0.0
      %1162 = vmatpush1.msra.mxu0 0.0
      %1163 = vmatprep.subr.mxu0 0.0
      %1164 = vmatpush1.msra.mxu0 0.0
      %1165 = vmatprep.subr.mxu0 0.0
      %1166 = vmatpush1.msra.mxu0 0.0
      %1167 = vmatprep.subr.mxu0 0.0
      %1168 = vmatpush1.msra.mxu0 0.0
      %1169 = vmatprep.subr.mxu0 0.0
      %1170 = vmatpush1.msra.mxu0 0.0
      %1171 = vmatprep.subr.mxu0 0.0
      %1172 = vmatpush1.msra.mxu0 0.0
      %1173 = vmatprep.subr.mxu0 0.0
      %1174 = vmatpush1.msra.mxu0 0.0
      %1175 = vmatprep.subr.mxu0 0.0
      %1176 = vmatpush1.msra.mxu0 0.0
      %1177 = vmatprep.subr.mxu0 0.0
      %1178 = vmatpush1.msra.mxu0 0.0
      %1179 = vmatprep.subr.mxu0 0.0
      %1180 = vmatpush1.msra.mxu0 0.0
      %v1181 = vand.u32 %v416, 4294901760
      %v1182 = vsub.f32 %v416, %v1181
      %v1183 = vand.u32 %v1182, 4294901760
      %1184 = vmatprep.mubr.f32.mxu0 %v1183
      %v1185 = vand.u32 %v390, 4294901760
      %v1186 = vsub.f32 %v390, %v1185
      %v1187 = vand.u32 %v1186, 4294901760
      %1188 = vmatmul.mubr.f32.gmra.mrb[0].mxu0 %v1187
      %v1189 = vpop.f32.mrb[0].mxu0
      %v1190 = vadd.f32 %v1049, %v1189
      %v1191 = vpop.f32.mrb[0].mxu0
      %v1192 = vadd.f32 %v1051, %v1191
      %v1193 = vand.u32 %v419, 4294901760
      %v1194 = vsub.f32 %v419, %v1193
      %v1195 = vand.u32 %v1194, 4294901760
      %1196 = vmatprep.mubr.f32.mxu0 %v1195
      %v1197 = vand.u32 %v392, 4294901760
      %v1198 = vsub.f32 %v392, %v1197
      %v1199 = vand.u32 %v1198, 4294901760
      %1200 = vmatmul.mubr.f32.gmra.mrb[0].mxu0 %v1199
      %v1201 = vpop.f32.mrb[0].mxu0
      %v1202 = vadd.f32 %v1059, %v1201
      %v1203 = vpop.f32.mrb[0].mxu0
      %v1204 = vadd.f32 %v1061, %v1203
      %v1205 = vand.u32 %v422, 4294901760
      %v1206 = vsub.f32 %v422, %v1205
      %v1207 = vand.u32 %v1206, 4294901760
      %1208 = vmatprep.mubr.f32.mxu0 %v1207
      %v1209 = vand.u32 %v394, 4294901760
      %v1210 = vsub.f32 %v394, %v1209
      %v1211 = vand.u32 %v1210, 4294901760
      %1212 = vmatmul.mubr.f32.gmra.mrb[0].mxu0 %v1211
      %v1213 = vpop.f32.mrb[0].mxu0
      %v1214 = vadd.f32 %v1069, %v1213
      %v1215 = vpop.f32.mrb[0].mxu0
      %v1216 = vadd.f32 %v1071, %v1215
      %1217 = vdwg.mxu0
      %v1218 = vand.u32 %v224, 4294901760
      %v1219 = vsub.f32 %v224, %v1218
      %v1220 = vand.u32 %v1219, 4294901760
      %1221 = vmatprep.subr.mxu0 %v1220
      %v1222 = vand.u32 %v223, 4294901760
      %v1223 = vsub.f32 %v223, %v1222
      %v1224 = vand.u32 %v1223, 4294901760
      %1225 = vmatpush1.msra.mxu0 %v1224
      %v1226 = vand.u32 %v230, 4294901760
      %v1227 = vsub.f32 %v230, %v1226
      %v1228 = vand.u32 %v1227, 4294901760
      %1229 = vmatprep.subr.mxu0 %v1228
      %v1230 = vand.u32 %v232, 4294901760
      %v1231 = vsub.f32 %v232, %v1230
      %v1232 = vand.u32 %v1231, 4294901760
      %1233 = vmatpush1.msra.mxu0 %v1232
      %v1234 = vand.u32 %v238, 4294901760
      %v1235 = vsub.f32 %v238, %v1234
      %v1236 = vand.u32 %v1235, 4294901760
      %1237 = vmatprep.subr.mxu0 %v1236
      %v1238 = vand.u32 %v240, 4294901760
      %v1239 = vsub.f32 %v240, %v1238
      %v1240 = vand.u32 %v1239, 4294901760
      %1241 = vmatpush1.msra.mxu0 %v1240
      %v1242 = vand.u32 %v246, 4294901760
      %v1243 = vsub.f32 %v246, %v1242
      %v1244 = vand.u32 %v1243, 4294901760
      %1245 = vmatprep.subr.mxu0 %v1244
      %v1246 = vand.u32 %v248, 4294901760
      %v1247 = vsub.f32 %v248, %v1246
      %v1248 = vand.u32 %v1247, 4294901760
      %1249 = vmatpush1.msra.mxu0 %v1248
      %v1250 = vand.u32 %v254, 4294901760
      %v1251 = vsub.f32 %v254, %v1250
      %v1252 = vand.u32 %v1251, 4294901760
      %1253 = vmatprep.subr.mxu0 %v1252
      %v1254 = vand.u32 %v256, 4294901760
      %v1255 = vsub.f32 %v256, %v1254
      %v1256 = vand.u32 %v1255, 4294901760
      %1257 = vmatpush1.msra.mxu0 %v1256
      %v1258 = vand.u32 %v262, 4294901760
      %v1259 = vsub.f32 %v262, %v1258
      %v1260 = vand.u32 %v1259, 4294901760
      %1261 = vmatprep.subr.mxu0 %v1260
      %v1262 = vand.u32 %v264, 4294901760
      %v1263 = vsub.f32 %v264, %v1262
      %v1264 = vand.u32 %v1263, 4294901760
      %1265 = vmatpush1.msra.mxu0 %v1264
      %v1266 = vand.u32 %v270, 4294901760
      %v1267 = vsub.f32 %v270, %v1266
      %v1268 = vand.u32 %v1267, 4294901760
      %1269 = vmatprep.subr.mxu0 %v1268
      %v1270 = vand.u32 %v272, 4294901760
      %v1271 = vsub.f32 %v272, %v1270
      %v1272 = vand.u32 %v1271, 4294901760
      %1273 = vmatpush1.msra.mxu0 %v1272
      %v1274 = vand.u32 %v278, 4294901760
      %v1275 = vsub.f32 %v278, %v1274
      %v1276 = vand.u32 %v1275, 4294901760
      %1277 = vmatprep.subr.mxu0 %v1276
      %v1278 = vand.u32 %v280, 4294901760
      %v1279 = vsub.f32 %v280, %v1278
      %v1280 = vand.u32 %v1279, 4294901760
      %1281 = vmatpush1.msra.mxu0 %v1280
      %v1282 = vand.u32 %v286, 4294901760
      %v1283 = vsub.f32 %v286, %v1282
      %v1284 = vand.u32 %v1283, 4294901760
      %1285 = vmatprep.subr.mxu0 %v1284
      %v1286 = vand.u32 %v288, 4294901760
      %v1287 = vsub.f32 %v288, %v1286
      %v1288 = vand.u32 %v1287, 4294901760
      %1289 = vmatpush1.msra.mxu0 %v1288
      %v1290 = vand.u32 %v294, 4294901760
      %v1291 = vsub.f32 %v294, %v1290
      %v1292 = vand.u32 %v1291, 4294901760
      %1293 = vmatprep.subr.mxu0 %v1292
      %v1294 = vand.u32 %v296, 4294901760
      %v1295 = vsub.f32 %v296, %v1294
      %v1296 = vand.u32 %v1295, 4294901760
      %1297 = vmatpush1.msra.mxu0 %v1296
      %v1298 = vand.u32 %v302, 4294901760
      %v1299 = vsub.f32 %v302, %v1298
      %v1300 = vand.u32 %v1299, 4294901760
      %1301 = vmatprep.subr.mxu0 %v1300
      %v1302 = vand.u32 %v304, 4294901760
      %v1303 = vsub.f32 %v304, %v1302
      %v1304 = vand.u32 %v1303, 4294901760
      %1305 = vmatpush1.msra.mxu0 %v1304
      %v1306 = vand.u32 %v310, 4294901760
      %v1307 = vsub.f32 %v310, %v1306
      %v1308 = vand.u32 %v1307, 4294901760
      %1309 = vmatprep.subr.mxu0 %v1308
      %v1310 = vand.u32 %v312, 4294901760
      %v1311 = vsub.f32 %v312, %v1310
      %v1312 = vand.u32 %v1311, 4294901760
      %1313 = vmatpush1.msra.mxu0 %v1312
      %v1314 = vand.u32 %v318, 4294901760
      %v1315 = vsub.f32 %v318, %v1314
      %v1316 = vand.u32 %v1315, 4294901760
      %1317 = vmatprep.subr.mxu0 %v1316
      %v1318 = vand.u32 %v320, 4294901760
      %v1319 = vsub.f32 %v320, %v1318
      %v1320 = vand.u32 %v1319, 4294901760
      %1321 = vmatpush1.msra.mxu0 %v1320
      %v1322 = vand.u32 %v326, 4294901760
      %v1323 = vsub.f32 %v326, %v1322
      %v1324 = vand.u32 %v1323, 4294901760
      %1325 = vmatprep.subr.mxu0 %v1324
      %v1326 = vand.u32 %v328, 4294901760
      %v1327 = vsub.f32 %v328, %v1326
      %v1328 = vand.u32 %v1327, 4294901760
      %1329 = vmatpush1.msra.mxu0 %v1328
      %v1330 = vand.u32 %v334, 4294901760
      %v1331 = vsub.f32 %v334, %v1330
      %v1332 = vand.u32 %v1331, 4294901760
      %1333 = vmatprep.subr.mxu0 %v1332
      %v1334 = vand.u32 %v336, 4294901760
      %v1335 = vsub.f32 %v336, %v1334
      %v1336 = vand.u32 %v1335, 4294901760
      %1337 = vmatpush1.msra.mxu0 %v1336
      %v1338 = vand.u32 %v342, 4294901760
      %v1339 = vsub.f32 %v342, %v1338
      %v1340 = vand.u32 %v1339, 4294901760
      %1341 = vmatprep.subr.mxu0 %v1340
      %v1342 = vand.u32 %v344, 4294901760
      %v1343 = vsub.f32 %v344, %v1342
      %v1344 = vand.u32 %v1343, 4294901760
      %1345 = vmatpush1.msra.mxu0 %v1344
      %v1346 = vand.u32 %v350, 4294901760
      %v1347 = vsub.f32 %v350, %v1346
      %v1348 = vand.u32 %v1347, 4294901760
      %1349 = vmatprep.subr.mxu0 %v1348
      %v1350 = vand.u32 %v372, 4294901760
      %v1351 = vsub.f32 %v372, %v1350
      %v1352 = vand.u32 %v1351, 4294901760
      %1353 = vmatpush1.msra.mxu0 %v1352
      %v1354 = vand.u32 %v354, 4294901760
      %v1355 = vsub.f32 %v354, %v1354
      %v1356 = vand.u32 %v1355, 4294901760
      %1357 = vmatprep.subr.mxu0 %v1356
      %v1358 = vand.u32 %v373, 4294901760
      %v1359 = vsub.f32 %v373, %v1358
      %v1360 = vand.u32 %v1359, 4294901760
      %1361 = vmatpush1.msra.mxu0 %v1360
      %v1362 = vand.u32 %v358, 4294901760
      %v1363 = vsub.f32 %v358, %v1362
      %v1364 = vand.u32 %v1363, 4294901760
      %1365 = vmatprep.subr.mxu0 %v1364
      %v1366 = vand.u32 %v374, 4294901760
      %v1367 = vsub.f32 %v374, %v1366
      %v1368 = vand.u32 %v1367, 4294901760
      %1369 = vmatpush1.msra.mxu0 %v1368
      %v1370 = vand.u32 %v362, 4294901760
      %v1371 = vsub.f32 %v362, %v1370
      %v1372 = vand.u32 %v1371, 4294901760
      %1373 = vmatprep.subr.mxu0 %v1372
      %v1374 = vand.u32 %v375, 4294901760
      %v1375 = vsub.f32 %v375, %v1374
      %v1376 = vand.u32 %v1375, 4294901760
      %1377 = vmatpush1.msra.mxu0 %v1376
      %v1378 = vand.u32 %v366, 4294901760
      %v1379 = vsub.f32 %v366, %v1378
      %v1380 = vand.u32 %v1379, 4294901760
      %1381 = vmatprep.subr.mxu0 %v1380
      %v1382 = vand.u32 %v376, 4294901760
      %v1383 = vsub.f32 %v376, %v1382
      %v1384 = vand.u32 %v1383, 4294901760
      %1385 = vmatpush1.msra.mxu0 %v1384
      %v1386 = vand.u32 %v370, 4294901760
      %v1387 = vsub.f32 %v370, %v1386
      %v1388 = vand.u32 %v1387, 4294901760
      %1389 = vmatprep.subr.mxu0 %v1388
      %v1390 = vand.u32 %v377, 4294901760
      %v1391 = vsub.f32 %v377, %v1390
      %v1392 = vand.u32 %v1391, 4294901760
      %1393 = vmatpush1.msra.mxu0 %v1392
      %1394 = vmatprep.subr.mxu0 0.0
      %1395 = vmatpush1.msra.mxu0 0.0
      %1396 = vmatprep.subr.mxu0 0.0
      %1397 = vmatpush1.msra.mxu0 0.0
      %1398 = vmatprep.subr.mxu0 0.0
      %1399 = vmatpush1.msra.mxu0 0.0
      %1400 = vmatprep.subr.mxu0 0.0
      %1401 = vmatpush1.msra.mxu0 0.0
      %1402 = vmatprep.subr.mxu0 0.0
      %1403 = vmatpush1.msra.mxu0 0.0
      %1404 = vmatprep.subr.mxu0 0.0
      %1405 = vmatpush1.msra.mxu0 0.0
      %1406 = vmatprep.subr.mxu0 0.0
      %1407 = vmatpush1.msra.mxu0 0.0
      %1408 = vmatprep.subr.mxu0 0.0
      %1409 = vmatpush1.msra.mxu0 0.0
      %1410 = vmatprep.subr.mxu0 0.0
      %1411 = vmatpush1.msra.mxu0 0.0
      %1412 = vmatprep.subr.mxu0 0.0
      %1413 = vmatpush1.msra.mxu0 0.0
      %v1414 = vand.u32 %v416, 4294901760
      %1415 = vmatprep.mubr.f32.mxu0 %v1414
      %v1416 = vand.u32 %v390, 4294901760
      %1417 = vmatmul.mubr.f32.gmra.mrb[0].mxu0 %v1416
      %v1418 = vpop.f32.mrb[0].mxu0
      %v1419 = vadd.f32 %v1190, %v1418
      %v1420 = vpop.f32.mrb[0].mxu0
      %v1421 = vadd.f32 %v1192, %v1420
      %v1422 = vand.u32 %v419, 4294901760
      %1423 = vmatprep.mubr.f32.mxu0 %v1422
      %v1424 = vand.u32 %v392, 4294901760
      %1425 = vmatmul.mubr.f32.gmra.mrb[0].mxu0 %v1424
      %v1426 = vpop.f32.mrb[0].mxu0
      %v1427 = vadd.f32 %v1202, %v1426
      %v1428 = vpop.f32.mrb[0].mxu0
      %v1429 = vadd.f32 %v1204, %v1428
      %v1430 = vand.u32 %v422, 4294901760
      %1431 = vmatprep.mubr.f32.mxu0 %v1430
      %v1432 = vand.u32 %v394, 4294901760
      %1433 = vmatmul.mubr.f32.gmra.mrb[0].mxu0 %v1432
      %v1434 = vpop.f32.mrb[0].mxu0
      %v1435 = vadd.f32 %v1214, %v1434
      %v1436 = vpop.f32.mrb[0].mxu0
      %v1437 = vadd.f32 %v1216, %v1436
      %1438 = vdwg.mxu0
      %v1439 = vand.u32 %v224, 4294901760
      %1440 = vmatprep.subr.mxu0 %v1439
      %v1441 = vand.u32 %v223, 4294901760
      %1442 = vmatpush1.msra.mxu0 %v1441
      %v1443 = vand.u32 %v230, 4294901760
      %1444 = vmatprep.subr.mxu0 %v1443
      %v1445 = vand.u32 %v232, 4294901760
      %1446 = vmatpush1.msra.mxu0 %v1445
      %v1447 = vand.u32 %v238, 4294901760
      %1448 = vmatprep.subr.mxu0 %v1447
      %v1449 = vand.u32 %v240, 4294901760
      %1450 = vmatpush1.msra.mxu0 %v1449
      %v1451 = vand.u32 %v246, 4294901760
      %1452 = vmatprep.subr.mxu0 %v1451
      %v1453 = vand.u32 %v248, 4294901760
      %1454 = vmatpush1.msra.mxu0 %v1453
      %v1455 = vand.u32 %v254, 4294901760
      %1456 = vmatprep.subr.mxu0 %v1455
      %v1457 = vand.u32 %v256, 4294901760
      %1458 = vmatpush1.msra.mxu0 %v1457
      %v1459 = vand.u32 %v262, 4294901760
      %1460 = vmatprep.subr.mxu0 %v1459
      %v1461 = vand.u32 %v264, 4294901760
      %1462 = vmatpush1.msra.mxu0 %v1461
      %v1463 = vand.u32 %v270, 4294901760
      %1464 = vmatprep.subr.mxu0 %v1463
      %v1465 = vand.u32 %v272, 4294901760
      %1466 = vmatpush1.msra.mxu0 %v1465
      %v1467 = vand.u32 %v278, 4294901760
      %1468 = vmatprep.subr.mxu0 %v1467
      %v1469 = vand.u32 %v280, 4294901760
      %1470 = vmatpush1.msra.mxu0 %v1469
      %v1471 = vand.u32 %v286, 4294901760
      %1472 = vmatprep.subr.mxu0 %v1471
      %v1473 = vand.u32 %v288, 4294901760
      %1474 = vmatpush1.msra.mxu0 %v1473
      %v1475 = vand.u32 %v294, 4294901760
      %1476 = vmatprep.subr.mxu0 %v1475
      %v1477 = vand.u32 %v296, 4294901760
      %1478 = vmatpush1.msra.mxu0 %v1477
      %v1479 = vand.u32 %v302, 4294901760
      %1480 = vmatprep.subr.mxu0 %v1479
      %v1481 = vand.u32 %v304, 4294901760
      %1482 = vmatpush1.msra.mxu0 %v1481
      %v1483 = vand.u32 %v310, 4294901760
      %1484 = vmatprep.subr.mxu0 %v1483
      %v1485 = vand.u32 %v312, 4294901760
      %1486 = vmatpush1.msra.mxu0 %v1485
      %v1487 = vand.u32 %v318, 4294901760
      %1488 = vmatprep.subr.mxu0 %v1487
      %v1489 = vand.u32 %v320, 4294901760
      %1490 = vmatpush1.msra.mxu0 %v1489
      %v1491 = vand.u32 %v326, 4294901760
      %1492 = vmatprep.subr.mxu0 %v1491
      %v1493 = vand.u32 %v328, 4294901760
      %1494 = vmatpush1.msra.mxu0 %v1493
      %v1495 = vand.u32 %v334, 4294901760
      %1496 = vmatprep.subr.mxu0 %v1495
      %v1497 = vand.u32 %v336, 4294901760
      %1498 = vmatpush1.msra.mxu0 %v1497
      %v1499 = vand.u32 %v342, 4294901760
      %1500 = vmatprep.subr.mxu0 %v1499
      %v1501 = vand.u32 %v344, 4294901760
      %1502 = vmatpush1.msra.mxu0 %v1501
      %v1503 = vand.u32 %v350, 4294901760
      %1504 = vmatprep.subr.mxu0 %v1503
      %v1505 = vand.u32 %v372, 4294901760
      %1506 = vmatpush1.msra.mxu0 %v1505
      %v1507 = vand.u32 %v354, 4294901760
      %1508 = vmatprep.subr.mxu0 %v1507
      %v1509 = vand.u32 %v373, 4294901760
      %1510 = vmatpush1.msra.mxu0 %v1509
      %v1511 = vand.u32 %v358, 4294901760
      %1512 = vmatprep.subr.mxu0 %v1511
      %v1513 = vand.u32 %v374, 4294901760
      %1514 = vmatpush1.msra.mxu0 %v1513
      %v1515 = vand.u32 %v362, 4294901760
      %1516 = vmatprep.subr.mxu0 %v1515
      %v1517 = vand.u32 %v375, 4294901760
      %1518 = vmatpush1.msra.mxu0 %v1517
      %v1519 = vand.u32 %v366, 4294901760
      %1520 = vmatprep.subr.mxu0 %v1519
      %v1521 = vand.u32 %v376, 4294901760
      %1522 = vmatpush1.msra.mxu0 %v1521
      %v1523 = vand.u32 %v370, 4294901760
      %1524 = vmatprep.subr.mxu0 %v1523
      %v1525 = vand.u32 %v377, 4294901760
      %1526 = vmatpush1.msra.mxu0 %v1525
      %1527 = vmatprep.subr.mxu0 0.0
      %1528 = vmatpush1.msra.mxu0 0.0
      %1529 = vmatprep.subr.mxu0 0.0
      %1530 = vmatpush1.msra.mxu0 0.0
      %1531 = vmatprep.subr.mxu0 0.0
      %1532 = vmatpush1.msra.mxu0 0.0
      %1533 = vmatprep.subr.mxu0 0.0
      %1534 = vmatpush1.msra.mxu0 0.0
      %1535 = vmatprep.subr.mxu0 0.0
      %1536 = vmatpush1.msra.mxu0 0.0
      %1537 = vmatprep.subr.mxu0 0.0
      %1538 = vmatpush1.msra.mxu0 0.0
      %1539 = vmatprep.subr.mxu0 0.0
      %1540 = vmatpush1.msra.mxu0 0.0
      %1541 = vmatprep.subr.mxu0 0.0
      %1542 = vmatpush1.msra.mxu0 0.0
      %1543 = vmatprep.subr.mxu0 0.0
      %1544 = vmatpush1.msra.mxu0 0.0
      %1545 = vmatprep.subr.mxu0 0.0
      %1546 = vmatpush1.msra.mxu0 0.0
      %v1547 = vand.u32 %v416, 4294901760
      %1548 = vmatprep.mubr.f32.mxu0 %v1547
      %v1549 = vand.u32 %v390, 4294901760
      %1550 = vmatmul.mubr.f32.gmra.mrb[0].mxu0 %v1549
      %v1551 = vpop.f32.mrb[0].mxu0
      %v1552 = vadd.f32 %v1419, %v1551
      %v1553 = vpop.f32.mrb[0].mxu0
      %v1554 = vadd.f32 %v1421, %v1553
      %v1555 = vand.u32 %v419, 4294901760
      %1556 = vmatprep.mubr.f32.mxu0 %v1555
      %v1557 = vand.u32 %v392, 4294901760
      %1558 = vmatmul.mubr.f32.gmra.mrb[0].mxu0 %v1557
      %v1559 = vpop.f32.mrb[0].mxu0
      %v1560 = vadd.f32 %v1427, %v1559
      %v1561 = vpop.f32.mrb[0].mxu0
      %v1562 = vadd.f32 %v1429, %v1561
      %v1563 = vand.u32 %v422, 4294901760
      %1564 = vmatprep.mubr.f32.mxu0 %v1563
      %v1565 = vand.u32 %v394, 4294901760
      %1566 = vmatmul.mubr.f32.gmra.mrb[0].mxu0 %v1565
      %v1567 = vpop.f32.mrb[0].mxu0
      %v1568 = vadd.f32 %v1435, %v1567
      %v1569 = vpop.f32.mrb[0].mxu0
      %v1570 = vadd.f32 %v1437, %v1569
      %1571 = vdwg.mxu0
      %v1572 = vmul.f32 %v1552, %v1552
      %v1573 = vmul.f32 %v1554, %v1554
      %v1574 = vmul.f32 %v1560, %v1560
      %v1575 = vmul.f32 %v1562, %v1562
      %v1576 = vmul.f32 %v1568, %v1568
      %v1577 = vmul.f32 %v1570, %v1570
      %v1578 = vld [vmem:[%s2] sm:$0xff]
      %v1579 = vld [vmem:[%s2 + $0x8] sm:$0xff]
      %v1580 = vld [vmem:[%s2 + $0x10] sm:$0xff]
      %v1581 = vld [vmem:[%s2 + $0x18] sm:$0xff]
      %v1582 = vld [vmem:[%s2 + $0x20] sm:$0xff]
      %v1583 = vld [vmem:[%s2 + $0x28] sm:$0xff]
      %v1584 = vld [vmem:[%s2 + $0x30] sm:$0xff]
      %v1585 = vld [vmem:[%s2 + $0x38] sm:$0xff]
      %v1586 = vld [vmem:[%s2 + $0x40] sm:$0xff]
      %v1587 = vld [vmem:[%s2 + $0x48] sm:$0xff]
      %v1588 = vld [vmem:[%s2 + $0x50] sm:$0xff]
      %v1589 = vld [vmem:[%s2 + $0x58] sm:$0xff]
      %v1590 = vld [vmem:[%s2 + $0x60] sm:$0xff]
      %v1591 = vld [vmem:[%s2 + $0x68] sm:$0xff]
      %v1592 = vld [vmem:[%s2 + $0x70] sm:$0xff]
      %v1593 = vld [vmem:[%s2 + $0x78] sm:$0xff]
      %v1594 = vld [vmem:[%s2 + $0x80] sm:$0xff]
      %v1595 = vld [vmem:[%s2 + $0x88] sm:$0xff]
      %v1596 = vld [vmem:[%s2 + $0x90] sm:$0xff]
      %v1597 = vld [vmem:[%s2 + $0x98] sm:$0xff]
      %v1598 = vld [vmem:[%s2 + $0xa0] sm:$0x1f]
      %vm1599 = vcmask 302080
      %v1601 = vsel %vm1599, %v1573, 0
      %v1604 = vsel %vm1599, %v1575, 0
      %v1607 = vsel %vm1599, %v1577, 0
      %vm1609 = vcmask 1044480
      %v1611 = vsel %vm1609, %v1598, 0
      %1613 = vmatprep.subr.mxu0 0.0
      %v1614 = vand.u32 %v1578, 4294901760
      %1615 = vmatpush1.msra.mxu0 %v1614
      %1616 = vmatprep.subr.mxu0 0.0
      %v1617 = vand.u32 %v1579, 4294901760
      %1618 = vmatpush1.msra.mxu0 %v1617
      %1619 = vmatprep.subr.mxu0 0.0
      %v1620 = vand.u32 %v1580, 4294901760
      %1621 = vmatpush1.msra.mxu0 %v1620
      %1622 = vmatprep.subr.mxu0 0.0
      %v1623 = vand.u32 %v1581, 4294901760
      %1624 = vmatpush1.msra.mxu0 %v1623
      %1625 = vmatprep.subr.mxu0 0.0
      %v1626 = vand.u32 %v1582, 4294901760
      %1627 = vmatpush1.msra.mxu0 %v1626
      %1628 = vmatprep.subr.mxu0 0.0
      %v1629 = vand.u32 %v1583, 4294901760
      %1630 = vmatpush1.msra.mxu0 %v1629
      %1631 = vmatprep.subr.mxu0 0.0
      %v1632 = vand.u32 %v1584, 4294901760
      %1633 = vmatpush1.msra.mxu0 %v1632
      %1634 = vmatprep.subr.mxu0 0.0
      %v1635 = vand.u32 %v1585, 4294901760
      %1636 = vmatpush1.msra.mxu0 %v1635
      %1637 = vmatprep.subr.mxu0 0.0
      %v1638 = vand.u32 %v1586, 4294901760
      %1639 = vmatpush1.msra.mxu0 %v1638
      %1640 = vmatprep.subr.mxu0 0.0
      %v1641 = vand.u32 %v1587, 4294901760
      %1642 = vmatpush1.msra.mxu0 %v1641
      %1643 = vmatprep.subr.mxu0 0.0
      %v1644 = vand.u32 %v1588, 4294901760
      %1645 = vmatpush1.msra.mxu0 %v1644
      %1646 = vmatprep.subr.mxu0 0.0
      %v1647 = vand.u32 %v1589, 4294901760
      %1648 = vmatpush1.msra.mxu0 %v1647
      %1649 = vmatprep.subr.mxu0 0.0
      %v1650 = vand.u32 %v1590, 4294901760
      %1651 = vmatpush1.msra.mxu0 %v1650
      %1652 = vmatprep.subr.mxu0 0.0
      %v1653 = vand.u32 %v1591, 4294901760
      %1654 = vmatpush1.msra.mxu0 %v1653
      %1655 = vmatprep.subr.mxu0 0.0
      %v1656 = vand.u32 %v1592, 4294901760
      %1657 = vmatpush1.msra.mxu0 %v1656
      %1658 = vmatprep.subr.mxu0 0.0
      %v1659 = vand.u32 %v1593, 4294901760
      %1660 = vmatpush1.msra.mxu0 %v1659
      %1661 = vmatprep.subr.mxu0 0.0
      %v1662 = vand.u32 %v1594, 4294901760
      %1663 = vmatpush1.msra.mxu0 %v1662
      %1664 = vmatprep.subr.mxu0 0.0
      %v1665 = vand.u32 %v1595, 4294901760
      %1666 = vmatpush1.msra.mxu0 %v1665
      %1667 = vmatprep.subr.mxu0 0.0
      %v1668 = vand.u32 %v1596, 4294901760
      %1669 = vmatpush1.msra.mxu0 %v1668
      %1670 = vmatprep.subr.mxu0 0.0
      %v1671 = vand.u32 %v1597, 4294901760
      %1672 = vmatpush1.msra.mxu0 %v1671
      %1673 = vmatprep.subr.mxu0 0.0
      %v1674 = vand.u32 %v1611, 4294901760
      %1675 = vmatpush1.msra.mxu0 %v1674
      %1676 = vmatprep.subr.mxu0 0.0
      %1677 = vmatpush1.msra.mxu0 0.0
      %1678 = vmatprep.subr.mxu0 0.0
      %1679 = vmatpush1.msra.mxu0 0.0
      %1680 = vmatprep.subr.mxu0 0.0
      %1681 = vmatpush1.msra.mxu0 0.0
      %1682 = vmatprep.subr.mxu0 0.0
      %1683 = vmatpush1.msra.mxu0 0.0
      %1684 = vmatprep.subr.mxu0 0.0
      %1685 = vmatpush1.msra.mxu0 0.0
      %1686 = vmatprep.subr.mxu0 0.0
      %1687 = vmatpush1.msra.mxu0 0.0
      %1688 = vmatprep.subr.mxu0 0.0
      %1689 = vmatpush1.msra.mxu0 0.0
      %1690 = vmatprep.subr.mxu0 0.0
      %1691 = vmatpush1.msra.mxu0 0.0
      %1692 = vmatprep.subr.mxu0 0.0
      %1693 = vmatpush1.msra.mxu0 0.0
      %1694 = vmatprep.subr.mxu0 0.0
      %1695 = vmatpush1.msra.mxu0 0.0
      %1696 = vmatprep.subr.mxu0 0.0
      %1697 = vmatpush1.msra.mxu0 0.0
      %v1698 = vand.u32 %v1601, 4294901760
      %v1699 = vsub.f32 %v1601, %v1698
      %v1700 = vand.u32 %v1699, 4294901760
      %v1701 = vsub.f32 %v1699, %v1700
      %v1702 = vand.u32 %v1701, 4294901760
      %1703 = vmatprep.mubr.f32.mxu0 %v1702
      %v1704 = vand.u32 %v1572, 4294901760
      %v1705 = vsub.f32 %v1572, %v1704
      %v1706 = vand.u32 %v1705, 4294901760
      %v1707 = vsub.f32 %v1705, %v1706
      %v1708 = vand.u32 %v1707, 4294901760
      %1709 = vmatmul.mubr.f32.gmra.mrb[0].mxu0 %v1708
      %v1710 = vpop.f32.mrb[0].mxu0
      %v1711 = vadd.f32 0.0, %v1710
      %v1712 = vpop.f32.mrb[0].mxu0
      %v1713 = vand.u32 %v1604, 4294901760
      %v1714 = vsub.f32 %v1604, %v1713
      %v1715 = vand.u32 %v1714, 4294901760
      %v1716 = vsub.f32 %v1714, %v1715
      %v1717 = vand.u32 %v1716, 4294901760
      %1718 = vmatprep.mubr.f32.mxu0 %v1717
      %v1719 = vand.u32 %v1574, 4294901760
      %v1720 = vsub.f32 %v1574, %v1719
      %v1721 = vand.u32 %v1720, 4294901760
      %v1722 = vsub.f32 %v1720, %v1721
      %v1723 = vand.u32 %v1722, 4294901760
      %1724 = vmatmul.mubr.f32.gmra.mrb[0].mxu0 %v1723
      %v1725 = vpop.f32.mrb[0].mxu0
      %v1726 = vadd.f32 0.0, %v1725
      %v1727 = vpop.f32.mrb[0].mxu0
      %v1728 = vand.u32 %v1607, 4294901760
      %v1729 = vsub.f32 %v1607, %v1728
      %v1730 = vand.u32 %v1729, 4294901760
      %v1731 = vsub.f32 %v1729, %v1730
      %v1732 = vand.u32 %v1731, 4294901760
      %1733 = vmatprep.mubr.f32.mxu0 %v1732
      %v1734 = vand.u32 %v1576, 4294901760
      %v1735 = vsub.f32 %v1576, %v1734
      %v1736 = vand.u32 %v1735, 4294901760
      %v1737 = vsub.f32 %v1735, %v1736
      %v1738 = vand.u32 %v1737, 4294901760
      %1739 = vmatmul.mubr.f32.gmra.mrb[0].mxu0 %v1738
      %v1740 = vpop.f32.mrb[0].mxu0
      %v1741 = vadd.f32 0.0, %v1740
      %v1742 = vpop.f32.mrb[0].mxu0
      %1743 = vdwg.mxu0
      %1744 = vmatprep.subr.mxu0 0.0
      %v1745 = vand.u32 %v1578, 4294901760
      %v1746 = vsub.f32 %v1578, %v1745
      %v1747 = vand.u32 %v1746, 4294901760
      %v1748 = vsub.f32 %v1746, %v1747
      %v1749 = vand.u32 %v1748, 4294901760
      %1750 = vmatpush1.msra.mxu0 %v1749
      %1751 = vmatprep.subr.mxu0 0.0
      %v1752 = vand.u32 %v1579, 4294901760
      %v1753 = vsub.f32 %v1579, %v1752
      %v1754 = vand.u32 %v1753, 4294901760
      %v1755 = vsub.f32 %v1753, %v1754
      %v1756 = vand.u32 %v1755, 4294901760
      %1757 = vmatpush1.msra.mxu0 %v1756
      %1758 = vmatprep.subr.mxu0 0.0
      %v1759 = vand.u32 %v1580, 4294901760
      %v1760 = vsub.f32 %v1580, %v1759
      %v1761 = vand.u32 %v1760, 4294901760
      %v1762 = vsub.f32 %v1760, %v1761
      %v1763 = vand.u32 %v1762, 4294901760
      %1764 = vmatpush1.msra.mxu0 %v1763
      %1765 = vmatprep.subr.mxu0 0.0
      %v1766 = vand.u32 %v1581, 4294901760
      %v1767 = vsub.f32 %v1581, %v1766
      %v1768 = vand.u32 %v1767, 4294901760
      %v1769 = vsub.f32 %v1767, %v1768
      %v1770 = vand.u32 %v1769, 4294901760
      %1771 = vmatpush1.msra.mxu0 %v1770
      %1772 = vmatprep.subr.mxu0 0.0
      %v1773 = vand.u32 %v1582, 4294901760
      %v1774 = vsub.f32 %v1582, %v1773
      %v1775 = vand.u32 %v1774, 4294901760
      %v1776 = vsub.f32 %v1774, %v1775
      %v1777 = vand.u32 %v1776, 4294901760
      %1778 = vmatpush1.msra.mxu0 %v1777
      %1779 = vmatprep.subr.mxu0 0.0
      %v1780 = vand.u32 %v1583, 4294901760
      %v1781 = vsub.f32 %v1583, %v1780
      %v1782 = vand.u32 %v1781, 4294901760
      %v1783 = vsub.f32 %v1781, %v1782
      %v1784 = vand.u32 %v1783, 4294901760
      %1785 = vmatpush1.msra.mxu0 %v1784
      %1786 = vmatprep.subr.mxu0 0.0
      %v1787 = vand.u32 %v1584, 4294901760
      %v1788 = vsub.f32 %v1584, %v1787
      %v1789 = vand.u32 %v1788, 4294901760
      %v1790 = vsub.f32 %v1788, %v1789
      %v1791 = vand.u32 %v1790, 4294901760
      %1792 = vmatpush1.msra.mxu0 %v1791
      %1793 = vmatprep.subr.mxu0 0.0
      %v1794 = vand.u32 %v1585, 4294901760
      %v1795 = vsub.f32 %v1585, %v1794
      %v1796 = vand.u32 %v1795, 4294901760
      %v1797 = vsub.f32 %v1795, %v1796
      %v1798 = vand.u32 %v1797, 4294901760
      %1799 = vmatpush1.msra.mxu0 %v1798
      %1800 = vmatprep.subr.mxu0 0.0
      %v1801 = vand.u32 %v1586, 4294901760
      %v1802 = vsub.f32 %v1586, %v1801
      %v1803 = vand.u32 %v1802, 4294901760
      %v1804 = vsub.f32 %v1802, %v1803
      %v1805 = vand.u32 %v1804, 4294901760
      %1806 = vmatpush1.msra.mxu0 %v1805
      %1807 = vmatprep.subr.mxu0 0.0
      %v1808 = vand.u32 %v1587, 4294901760
      %v1809 = vsub.f32 %v1587, %v1808
      %v1810 = vand.u32 %v1809, 4294901760
      %v1811 = vsub.f32 %v1809, %v1810
      %v1812 = vand.u32 %v1811, 4294901760
      %1813 = vmatpush1.msra.mxu0 %v1812
      %1814 = vmatprep.subr.mxu0 0.0
      %v1815 = vand.u32 %v1588, 4294901760
      %v1816 = vsub.f32 %v1588, %v1815
      %v1817 = vand.u32 %v1816, 4294901760
      %v1818 = vsub.f32 %v1816, %v1817
      %v1819 = vand.u32 %v1818, 4294901760
      %1820 = vmatpush1.msra.mxu0 %v1819
      %1821 = vmatprep.subr.mxu0 0.0
      %v1822 = vand.u32 %v1589, 4294901760
      %v1823 = vsub.f32 %v1589, %v1822
      %v1824 = vand.u32 %v1823, 4294901760
      %v1825 = vsub.f32 %v1823, %v1824
      %v1826 = vand.u32 %v1825, 4294901760
      %1827 = vmatpush1.msra.mxu0 %v1826
      %1828 = vmatprep.subr.mxu0 0.0
      %v1829 = vand.u32 %v1590, 4294901760
      %v1830 = vsub.f32 %v1590, %v1829
      %v1831 = vand.u32 %v1830, 4294901760
      %v1832 = vsub.f32 %v1830, %v1831
      %v1833 = vand.u32 %v1832, 4294901760
      %1834 = vmatpush1.msra.mxu0 %v1833
      %1835 = vmatprep.subr.mxu0 0.0
      %v1836 = vand.u32 %v1591, 4294901760
      %v1837 = vsub.f32 %v1591, %v1836
      %v1838 = vand.u32 %v1837, 4294901760
      %v1839 = vsub.f32 %v1837, %v1838
      %v1840 = vand.u32 %v1839, 4294901760
      %1841 = vmatpush1.msra.mxu0 %v1840
      %1842 = vmatprep.subr.mxu0 0.0
      %v1843 = vand.u32 %v1592, 4294901760
      %v1844 = vsub.f32 %v1592, %v1843
      %v1845 = vand.u32 %v1844, 4294901760
      %v1846 = vsub.f32 %v1844, %v1845
      %v1847 = vand.u32 %v1846, 4294901760
      %1848 = vmatpush1.msra.mxu0 %v1847
      %1849 = vmatprep.subr.mxu0 0.0
      %v1850 = vand.u32 %v1593, 4294901760
      %v1851 = vsub.f32 %v1593, %v1850
      %v1852 = vand.u32 %v1851, 4294901760
      %v1853 = vsub.f32 %v1851, %v1852
      %v1854 = vand.u32 %v1853, 4294901760
      %1855 = vmatpush1.msra.mxu0 %v1854
      %1856 = vmatprep.subr.mxu0 0.0
      %v1857 = vand.u32 %v1594, 4294901760
      %v1858 = vsub.f32 %v1594, %v1857
      %v1859 = vand.u32 %v1858, 4294901760
      %v1860 = vsub.f32 %v1858, %v1859
      %v1861 = vand.u32 %v1860, 4294901760
      %1862 = vmatpush1.msra.mxu0 %v1861
      %1863 = vmatprep.subr.mxu0 0.0
      %v1864 = vand.u32 %v1595, 4294901760
      %v1865 = vsub.f32 %v1595, %v1864
      %v1866 = vand.u32 %v1865, 4294901760
      %v1867 = vsub.f32 %v1865, %v1866
      %v1868 = vand.u32 %v1867, 4294901760
      %1869 = vmatpush1.msra.mxu0 %v1868
      %1870 = vmatprep.subr.mxu0 0.0
      %v1871 = vand.u32 %v1596, 4294901760
      %v1872 = vsub.f32 %v1596, %v1871
      %v1873 = vand.u32 %v1872, 4294901760
      %v1874 = vsub.f32 %v1872, %v1873
      %v1875 = vand.u32 %v1874, 4294901760
      %1876 = vmatpush1.msra.mxu0 %v1875
      %1877 = vmatprep.subr.mxu0 0.0
      %v1878 = vand.u32 %v1597, 4294901760
      %v1879 = vsub.f32 %v1597, %v1878
      %v1880 = vand.u32 %v1879, 4294901760
      %v1881 = vsub.f32 %v1879, %v1880
      %v1882 = vand.u32 %v1881, 4294901760
      %1883 = vmatpush1.msra.mxu0 %v1882
      %1884 = vmatprep.subr.mxu0 0.0
      %v1885 = vand.u32 %v1611, 4294901760
      %v1886 = vsub.f32 %v1611, %v1885
      %v1887 = vand.u32 %v1886, 4294901760
      %v1888 = vsub.f32 %v1886, %v1887
      %v1889 = vand.u32 %v1888, 4294901760
      %1890 = vmatpush1.msra.mxu0 %v1889
      %1891 = vmatprep.subr.mxu0 0.0
      %1892 = vmatpush1.msra.mxu0 0.0
      %1893 = vmatprep.subr.mxu0 0.0
      %1894 = vmatpush1.msra.mxu0 0.0
      %1895 = vmatprep.subr.mxu0 0.0
      %1896 = vmatpush1.msra.mxu0 0.0
      %1897 = vmatprep.subr.mxu0 0.0
      %1898 = vmatpush1.msra.mxu0 0.0
      %1899 = vmatprep.subr.mxu0 0.0
      %1900 = vmatpush1.msra.mxu0 0.0
      %1901 = vmatprep.subr.mxu0 0.0
      %1902 = vmatpush1.msra.mxu0 0.0
      %1903 = vmatprep.subr.mxu0 0.0
      %1904 = vmatpush1.msra.mxu0 0.0
      %1905 = vmatprep.subr.mxu0 0.0
      %1906 = vmatpush1.msra.mxu0 0.0
      %1907 = vmatprep.subr.mxu0 0.0
      %1908 = vmatpush1.msra.mxu0 0.0
      %1909 = vmatprep.subr.mxu0 0.0
      %1910 = vmatpush1.msra.mxu0 0.0
      %1911 = vmatprep.subr.mxu0 0.0
      %1912 = vmatpush1.msra.mxu0 0.0
      %v1913 = vand.u32 %v1601, 4294901760
      %1914 = vmatprep.mubr.f32.mxu0 %v1913
      %v1915 = vand.u32 %v1572, 4294901760
      %1916 = vmatmul.mubr.f32.gmra.mrb[0].mxu0 %v1915
      %v1917 = vpop.f32.mrb[0].mxu0
      %v1918 = vadd.f32 %v1711, %v1917
      %v1919 = vpop.f32.mrb[0].mxu0
      %v1920 = vand.u32 %v1604, 4294901760
      %1921 = vmatprep.mubr.f32.mxu0 %v1920
      %v1922 = vand.u32 %v1574, 4294901760
      %1923 = vmatmul.mubr.f32.gmra.mrb[0].mxu0 %v1922
      %v1924 = vpop.f32.mrb[0].mxu0
      %v1925 = vadd.f32 %v1726, %v1924
      %v1926 = vpop.f32.mrb[0].mxu0
      %v1927 = vand.u32 %v1607, 4294901760
      %1928 = vmatprep.mubr.f32.mxu0 %v1927
      %v1929 = vand.u32 %v1576, 4294901760
      %1930 = vmatmul.mubr.f32.gmra.mrb[0].mxu0 %v1929
      %v1931 = vpop.f32.mrb[0].mxu0
      %v1932 = vadd.f32 %v1741, %v1931
      %v1933 = vpop.f32.mrb[0].mxu0
      %1934 = vdwg.mxu0
      %1935 = vmatprep.subr.mxu0 0.0
      %v1936 = vand.u32 %v1578, 4294901760
      %v1937 = vsub.f32 %v1578, %v1936
      %1938 = vmatpush1.msra.mxu0 %v1937
      %1939 = vmatprep.subr.mxu0 0.0
      %v1940 = vand.u32 %v1579, 4294901760
      %v1941 = vsub.f32 %v1579, %v1940
      %1942 = vmatpush1.msra.mxu0 %v1941
      %1943 = vmatprep.subr.mxu0 0.0
      %v1944 = vand.u32 %v1580, 4294901760
      %v1945 = vsub.f32 %v1580, %v1944
      %1946 = vmatpush1.msra.mxu0 %v1945
      %1947 = vmatprep.subr.mxu0 0.0
      %v1948 = vand.u32 %v1581, 4294901760
      %v1949 = vsub.f32 %v1581, %v1948
      %1950 = vmatpush1.msra.mxu0 %v1949
      %1951 = vmatprep.subr.mxu0 0.0
      %v1952 = vand.u32 %v1582, 4294901760
      %v1953 = vsub.f32 %v1582, %v1952
      %1954 = vmatpush1.msra.mxu0 %v1953
      %1955 = vmatprep.subr.mxu0 0.0
      %v1956 = vand.u32 %v1583, 4294901760
      %v1957 = vsub.f32 %v1583, %v1956
      %1958 = vmatpush1.msra.mxu0 %v1957
      %1959 = vmatprep.subr.mxu0 0.0
      %v1960 = vand.u32 %v1584, 4294901760
      %v1961 = vsub.f32 %v1584, %v1960
      %1962 = vmatpush1.msra.mxu0 %v1961
      %1963 = vmatprep.subr.mxu0 0.0
      %v1964 = vand.u32 %v1585, 4294901760
      %v1965 = vsub.f32 %v1585, %v1964
      %1966 = vmatpush1.msra.mxu0 %v1965
      %1967 = vmatprep.subr.mxu0 0.0
      %v1968 = vand.u32 %v1586, 4294901760
      %v1969 = vsub.f32 %v1586, %v1968
      %1970 = vmatpush1.msra.mxu0 %v1969
      %1971 = vmatprep.subr.mxu0 0.0
      %v1972 = vand.u32 %v1587, 4294901760
      %v1973 = vsub.f32 %v1587, %v1972
      %1974 = vmatpush1.msra.mxu0 %v1973
      %1975 = vmatprep.subr.mxu0 0.0
      %v1976 = vand.u32 %v1588, 4294901760
      %v1977 = vsub.f32 %v1588, %v1976
      %1978 = vmatpush1.msra.mxu0 %v1977
      %1979 = vmatprep.subr.mxu0 0.0
      %v1980 = vand.u32 %v1589, 4294901760
      %v1981 = vsub.f32 %v1589, %v1980
      %1982 = vmatpush1.msra.mxu0 %v1981
      %1983 = vmatprep.subr.mxu0 0.0
      %v1984 = vand.u32 %v1590, 4294901760
      %v1985 = vsub.f32 %v1590, %v1984
      %1986 = vmatpush1.msra.mxu0 %v1985
      %1987 = vmatprep.subr.mxu0 0.0
      %v1988 = vand.u32 %v1591, 4294901760
      %v1989 = vsub.f32 %v1591, %v1988
      %1990 = vmatpush1.msra.mxu0 %v1989
      %1991 = vmatprep.subr.mxu0 0.0
      %v1992 = vand.u32 %v1592, 4294901760
      %v1993 = vsub.f32 %v1592, %v1992
      %1994 = vmatpush1.msra.mxu0 %v1993
      %1995 = vmatprep.subr.mxu0 0.0
      %v1996 = vand.u32 %v1593, 4294901760
      %v1997 = vsub.f32 %v1593, %v1996
      %1998 = vmatpush1.msra.mxu0 %v1997
      %1999 = vmatprep.subr.mxu0 0.0
      %v2000 = vand.u32 %v1594, 4294901760
      %v2001 = vsub.f32 %v1594, %v2000
      %2002 = vmatpush1.msra.mxu0 %v2001
      %2003 = vmatprep.subr.mxu0 0.0
      %v2004 = vand.u32 %v1595, 4294901760
      %v2005 = vsub.f32 %v1595, %v2004
      %2006 = vmatpush1.msra.mxu0 %v2005
      %2007 = vmatprep.subr.mxu0 0.0
      %v2008 = vand.u32 %v1596, 4294901760
      %v2009 = vsub.f32 %v1596, %v2008
      %2010 = vmatpush1.msra.mxu0 %v2009
      %2011 = vmatprep.subr.mxu0 0.0
      %v2012 = vand.u32 %v1597, 4294901760
      %v2013 = vsub.f32 %v1597, %v2012
      %2014 = vmatpush1.msra.mxu0 %v2013
      %2015 = vmatprep.subr.mxu0 0.0
      %v2016 = vand.u32 %v1611, 4294901760
      %v2017 = vsub.f32 %v1611, %v2016
      %2018 = vmatpush1.msra.mxu0 %v2017
      %2019 = vmatprep.subr.mxu0 0.0
      %2020 = vmatpush1.msra.mxu0 0.0
      %2021 = vmatprep.subr.mxu0 0.0
      %2022 = vmatpush1.msra.mxu0 0.0
      %2023 = vmatprep.subr.mxu0 0.0
      %2024 = vmatpush1.msra.mxu0 0.0
      %2025 = vmatprep.subr.mxu0 0.0
      %2026 = vmatpush1.msra.mxu0 0.0
      %2027 = vmatprep.subr.mxu0 0.0
      %2028 = vmatpush1.msra.mxu0 0.0
      %2029 = vmatprep.subr.mxu0 0.0
      %2030 = vmatpush1.msra.mxu0 0.0
      %2031 = vmatprep.subr.mxu0 0.0
      %2032 = vmatpush1.msra.mxu0 0.0
      %2033 = vmatprep.subr.mxu0 0.0
      %2034 = vmatpush1.msra.mxu0 0.0
      %2035 = vmatprep.subr.mxu0 0.0
      %2036 = vmatpush1.msra.mxu0 0.0
      %2037 = vmatprep.subr.mxu0 0.0
      %2038 = vmatpush1.msra.mxu0 0.0
      %2039 = vmatprep.subr.mxu0 0.0
      %2040 = vmatpush1.msra.mxu0 0.0
      %v2041 = vand.u32 %v1601, 4294901760
      %v2042 = vsub.f32 %v1601, %v2041
      %2043 = vmatprep.mubr.f32.mxu0 %v2042
      %v2044 = vand.u32 %v1572, 4294901760
      %v2045 = vsub.f32 %v1572, %v2044
      %2046 = vmatmul.mubr.f32.gmra.mrb[0].mxu0 %v2045
      %v2047 = vpop.f32.mrb[0].mxu0
      %v2048 = vadd.f32 %v1918, %v2047
      %v2049 = vpop.f32.mrb[0].mxu0
      %v2050 = vand.u32 %v1604, 4294901760
      %v2051 = vsub.f32 %v1604, %v2050
      %2052 = vmatprep.mubr.f32.mxu0 %v2051
      %v2053 = vand.u32 %v1574, 4294901760
      %v2054 = vsub.f32 %v1574, %v2053
      %2055 = vmatmul.mubr.f32.gmra.mrb[0].mxu0 %v2054
      %v2056 = vpop.f32.mrb[0].mxu0
      %v2057 = vadd.f32 %v1925, %v2056
      %v2058 = vpop.f32.mrb[0].mxu0
      %v2059 = vand.u32 %v1607, 4294901760
      %v2060 = vsub.f32 %v1607, %v2059
      %2061 = vmatprep.mubr.f32.mxu0 %v2060
      %v2062 = vand.u32 %v1576, 4294901760
      %v2063 = vsub.f32 %v1576, %v2062
      %2064 = vmatmul.mubr.f32.gmra.mrb[0].mxu0 %v2063
      %v2065 = vpop.f32.mrb[0].mxu0
      %v2066 = vadd.f32 %v1932, %v2065
      %v2067 = vpop.f32.mrb[0].mxu0
      %2068 = vdwg.mxu0
      %2069 = vmatprep.subr.mxu0 0.0
      %v2070 = vand.u32 %v1578, 4294901760
      %2071 = vmatpush1.msra.mxu0 %v2070
      %2072 = vmatprep.subr.mxu0 0.0
      %v2073 = vand.u32 %v1579, 4294901760
      %2074 = vmatpush1.msra.mxu0 %v2073
      %2075 = vmatprep.subr.mxu0 0.0
      %v2076 = vand.u32 %v1580, 4294901760
      %2077 = vmatpush1.msra.mxu0 %v2076
      %2078 = vmatprep.subr.mxu0 0.0
      %v2079 = vand.u32 %v1581, 4294901760
      %2080 = vmatpush1.msra.mxu0 %v2079
      %2081 = vmatprep.subr.mxu0 0.0
      %v2082 = vand.u32 %v1582, 4294901760
      %2083 = vmatpush1.msra.mxu0 %v2082
      %2084 = vmatprep.subr.mxu0 0.0
      %v2085 = vand.u32 %v1583, 4294901760
      %2086 = vmatpush1.msra.mxu0 %v2085
      %2087 = vmatprep.subr.mxu0 0.0
      %v2088 = vand.u32 %v1584, 4294901760
      %2089 = vmatpush1.msra.mxu0 %v2088
      %2090 = vmatprep.subr.mxu0 0.0
      %v2091 = vand.u32 %v1585, 4294901760
      %2092 = vmatpush1.msra.mxu0 %v2091
      %2093 = vmatprep.subr.mxu0 0.0
      %v2094 = vand.u32 %v1586, 4294901760
      %2095 = vmatpush1.msra.mxu0 %v2094
      %2096 = vmatprep.subr.mxu0 0.0
      %v2097 = vand.u32 %v1587, 4294901760
      %2098 = vmatpush1.msra.mxu0 %v2097
      %2099 = vmatprep.subr.mxu0 0.0
      %v2100 = vand.u32 %v1588, 4294901760
      %2101 = vmatpush1.msra.mxu0 %v2100
      %2102 = vmatprep.subr.mxu0 0.0
      %v2103 = vand.u32 %v1589, 4294901760
      %2104 = vmatpush1.msra.mxu0 %v2103
      %2105 = vmatprep.subr.mxu0 0.0
      %v2106 = vand.u32 %v1590, 4294901760
      %2107 = vmatpush1.msra.mxu0 %v2106
      %2108 = vmatprep.subr.mxu0 0.0
      %v2109 = vand.u32 %v1591, 4294901760
      %2110 = vmatpush1.msra.mxu0 %v2109
      %2111 = vmatprep.subr.mxu0 0.0
      %v2112 = vand.u32 %v1592, 4294901760
      %2113 = vmatpush1.msra.mxu0 %v2112
      %2114 = vmatprep.subr.mxu0 0.0
      %v2115 = vand.u32 %v1593, 4294901760
      %2116 = vmatpush1.msra.mxu0 %v2115
      %2117 = vmatprep.subr.mxu0 0.0
      %v2118 = vand.u32 %v1594, 4294901760
      %2119 = vmatpush1.msra.mxu0 %v2118
      %2120 = vmatprep.subr.mxu0 0.0
      %v2121 = vand.u32 %v1595, 4294901760
      %2122 = vmatpush1.msra.mxu0 %v2121
      %2123 = vmatprep.subr.mxu0 0.0
      %v2124 = vand.u32 %v1596, 4294901760
      %2125 = vmatpush1.msra.mxu0 %v2124
      %2126 = vmatprep.subr.mxu0 0.0
      %v2127 = vand.u32 %v1597, 4294901760
      %2128 = vmatpush1.msra.mxu0 %v2127
      %2129 = vmatprep.subr.mxu0 0.0
      %v2130 = vand.u32 %v1611, 4294901760
      %2131 = vmatpush1.msra.mxu0 %v2130
      %2132 = vmatprep.subr.mxu0 0.0
      %2133 = vmatpush1.msra.mxu0 0.0
      %2134 = vmatprep.subr.mxu0 0.0
      %2135 = vmatpush1.msra.mxu0 0.0
      %2136 = vmatprep.subr.mxu0 0.0
      %2137 = vmatpush1.msra.mxu0 0.0
      %2138 = vmatprep.subr.mxu0 0.0
      %2139 = vmatpush1.msra.mxu0 0.0
      %2140 = vmatprep.subr.mxu0 0.0
      %2141 = vmatpush1.msra.mxu0 0.0
      %2142 = vmatprep.subr.mxu0 0.0
      %2143 = vmatpush1.msra.mxu0 0.0
      %2144 = vmatprep.subr.mxu0 0.0
      %2145 = vmatpush1.msra.mxu0 0.0
      %2146 = vmatprep.subr.mxu0 0.0
      %2147 = vmatpush1.msra.mxu0 0.0
      %2148 = vmatprep.subr.mxu0 0.0
      %2149 = vmatpush1.msra.mxu0 0.0
      %2150 = vmatprep.subr.mxu0 0.0
      %2151 = vmatpush1.msra.mxu0 0.0
      %2152 = vmatprep.subr.mxu0 0.0
      %2153 = vmatpush1.msra.mxu0 0.0
      %v2154 = vand.u32 %v1601, 4294901760
      %v2155 = vsub.f32 %v1601, %v2154
      %v2156 = vand.u32 %v2155, 4294901760
      %2157 = vmatprep.mubr.f32.mxu0 %v2156
      %v2158 = vand.u32 %v1572, 4294901760
      %v2159 = vsub.f32 %v1572, %v2158
      %v2160 = vand.u32 %v2159, 4294901760
      %2161 = vmatmul.mubr.f32.gmra.mrb[0].mxu0 %v2160
      %v2162 = vpop.f32.mrb[0].mxu0
      %v2163 = vadd.f32 %v2048, %v2162
      %v2164 = vpop.f32.mrb[0].mxu0
      %v2165 = vand.u32 %v1604, 4294901760
      %v2166 = vsub.f32 %v1604, %v2165
      %v2167 = vand.u32 %v2166, 4294901760
      %2168 = vmatprep.mubr.f32.mxu0 %v2167
      %v2169 = vand.u32 %v1574, 4294901760
      %v2170 = vsub.f32 %v1574, %v2169
      %v2171 = vand.u32 %v2170, 4294901760
      %2172 = vmatmul.mubr.f32.gmra.mrb[0].mxu0 %v2171
      %v2173 = vpop.f32.mrb[0].mxu0
      %v2174 = vadd.f32 %v2057, %v2173
      %v2175 = vpop.f32.mrb[0].mxu0
      %v2176 = vand.u32 %v1607, 4294901760
      %v2177 = vsub.f32 %v1607, %v2176
      %v2178 = vand.u32 %v2177, 4294901760
      %2179 = vmatprep.mubr.f32.mxu0 %v2178
      %v2180 = vand.u32 %v1576, 4294901760
      %v2181 = vsub.f32 %v1576, %v2180
      %v2182 = vand.u32 %v2181, 4294901760
      %2183 = vmatmul.mubr.f32.gmra.mrb[0].mxu0 %v2182
      %v2184 = vpop.f32.mrb[0].mxu0
      %v2185 = vadd.f32 %v2066, %v2184
      %v2186 = vpop.f32.mrb[0].mxu0
      %2187 = vdwg.mxu0
      %2188 = vmatprep.subr.mxu0 0.0
      %v2189 = vand.u32 %v1578, 4294901760
      %v2190 = vsub.f32 %v1578, %v2189
      %v2191 = vand.u32 %v2190, 4294901760
      %2192 = vmatpush1.msra.mxu0 %v2191
      %2193 = vmatprep.subr.mxu0 0.0
      %v2194 = vand.u32 %v1579, 4294901760
      %v2195 = vsub.f32 %v1579, %v2194
      %v2196 = vand.u32 %v2195, 4294901760
      %2197 = vmatpush1.msra.mxu0 %v2196
      %2198 = vmatprep.subr.mxu0 0.0
      %v2199 = vand.u32 %v1580, 4294901760
      %v2200 = vsub.f32 %v1580, %v2199
      %v2201 = vand.u32 %v2200, 4294901760
      %2202 = vmatpush1.msra.mxu0 %v2201
      %2203 = vmatprep.subr.mxu0 0.0
      %v2204 = vand.u32 %v1581, 4294901760
      %v2205 = vsub.f32 %v1581, %v2204
      %v2206 = vand.u32 %v2205, 4294901760
      %2207 = vmatpush1.msra.mxu0 %v2206
      %2208 = vmatprep.subr.mxu0 0.0
      %v2209 = vand.u32 %v1582, 4294901760
      %v2210 = vsub.f32 %v1582, %v2209
      %v2211 = vand.u32 %v2210, 4294901760
      %2212 = vmatpush1.msra.mxu0 %v2211
      %2213 = vmatprep.subr.mxu0 0.0
      %v2214 = vand.u32 %v1583, 4294901760
      %v2215 = vsub.f32 %v1583, %v2214
      %v2216 = vand.u32 %v2215, 4294901760
      %2217 = vmatpush1.msra.mxu0 %v2216
      %2218 = vmatprep.subr.mxu0 0.0
      %v2219 = vand.u32 %v1584, 4294901760
      %v2220 = vsub.f32 %v1584, %v2219
      %v2221 = vand.u32 %v2220, 4294901760
      %2222 = vmatpush1.msra.mxu0 %v2221
      %2223 = vmatprep.subr.mxu0 0.0
      %v2224 = vand.u32 %v1585, 4294901760
      %v2225 = vsub.f32 %v1585, %v2224
      %v2226 = vand.u32 %v2225, 4294901760
      %2227 = vmatpush1.msra.mxu0 %v2226
      %2228 = vmatprep.subr.mxu0 0.0
      %v2229 = vand.u32 %v1586, 4294901760
      %v2230 = vsub.f32 %v1586, %v2229
      %v2231 = vand.u32 %v2230, 4294901760
      %2232 = vmatpush1.msra.mxu0 %v2231
      %2233 = vmatprep.subr.mxu0 0.0
      %v2234 = vand.u32 %v1587, 4294901760
      %v2235 = vsub.f32 %v1587, %v2234
      %v2236 = vand.u32 %v2235, 4294901760
      %2237 = vmatpush1.msra.mxu0 %v2236
      %2238 = vmatprep.subr.mxu0 0.0
      %v2239 = vand.u32 %v1588, 4294901760
      %v2240 = vsub.f32 %v1588, %v2239
      %v2241 = vand.u32 %v2240, 4294901760
      %2242 = vmatpush1.msra.mxu0 %v2241
      %2243 = vmatprep.subr.mxu0 0.0
      %v2244 = vand.u32 %v1589, 4294901760
      %v2245 = vsub.f32 %v1589, %v2244
      %v2246 = vand.u32 %v2245, 4294901760
      %2247 = vmatpush1.msra.mxu0 %v2246
      %2248 = vmatprep.subr.mxu0 0.0
      %v2249 = vand.u32 %v1590, 4294901760
      %v2250 = vsub.f32 %v1590, %v2249
      %v2251 = vand.u32 %v2250, 4294901760
      %2252 = vmatpush1.msra.mxu0 %v2251
      %2253 = vmatprep.subr.mxu0 0.0
      %v2254 = vand.u32 %v1591, 4294901760
      %v2255 = vsub.f32 %v1591, %v2254
      %v2256 = vand.u32 %v2255, 4294901760
      %2257 = vmatpush1.msra.mxu0 %v2256
      %2258 = vmatprep.subr.mxu0 0.0
      %v2259 = vand.u32 %v1592, 4294901760
      %v2260 = vsub.f32 %v1592, %v2259
      %v2261 = vand.u32 %v2260, 4294901760
      %2262 = vmatpush1.msra.mxu0 %v2261
      %2263 = vmatprep.subr.mxu0 0.0
      %v2264 = vand.u32 %v1593, 4294901760
      %v2265 = vsub.f32 %v1593, %v2264
      %v2266 = vand.u32 %v2265, 4294901760
      %2267 = vmatpush1.msra.mxu0 %v2266
      %2268 = vmatprep.subr.mxu0 0.0
      %v2269 = vand.u32 %v1594, 4294901760
      %v2270 = vsub.f32 %v1594, %v2269
      %v2271 = vand.u32 %v2270, 4294901760
      %2272 = vmatpush1.msra.mxu0 %v2271
      %2273 = vmatprep.subr.mxu0 0.0
      %v2274 = vand.u32 %v1595, 4294901760
      %v2275 = vsub.f32 %v1595, %v2274
      %v2276 = vand.u32 %v2275, 4294901760
      %2277 = vmatpush1.msra.mxu0 %v2276
      %2278 = vmatprep.subr.mxu0 0.0
      %v2279 = vand.u32 %v1596, 4294901760
      %v2280 = vsub.f32 %v1596, %v2279
      %v2281 = vand.u32 %v2280, 4294901760
      %2282 = vmatpush1.msra.mxu0 %v2281
      %2283 = vmatprep.subr.mxu0 0.0
      %v2284 = vand.u32 %v1597, 4294901760
      %v2285 = vsub.f32 %v1597, %v2284
      %v2286 = vand.u32 %v2285, 4294901760
      %2287 = vmatpush1.msra.mxu0 %v2286
      %2288 = vmatprep.subr.mxu0 0.0
      %v2289 = vand.u32 %v1611, 4294901760
      %v2290 = vsub.f32 %v1611, %v2289
      %v2291 = vand.u32 %v2290, 4294901760
      %2292 = vmatpush1.msra.mxu0 %v2291
      %2293 = vmatprep.subr.mxu0 0.0
      %2294 = vmatpush1.msra.mxu0 0.0
      %2295 = vmatprep.subr.mxu0 0.0
      %2296 = vmatpush1.msra.mxu0 0.0
      %2297 = vmatprep.subr.mxu0 0.0
      %2298 = vmatpush1.msra.mxu0 0.0
      %2299 = vmatprep.subr.mxu0 0.0
      %2300 = vmatpush1.msra.mxu0 0.0
      %2301 = vmatprep.subr.mxu0 0.0
      %2302 = vmatpush1.msra.mxu0 0.0
      %2303 = vmatprep.subr.mxu0 0.0
      %2304 = vmatpush1.msra.mxu0 0.0
      %2305 = vmatprep.subr.mxu0 0.0
      %2306 = vmatpush1.msra.mxu0 0.0
      %2307 = vmatprep.subr.mxu0 0.0
      %2308 = vmatpush1.msra.mxu0 0.0
      %2309 = vmatprep.subr.mxu0 0.0
      %2310 = vmatpush1.msra.mxu0 0.0
      %2311 = vmatprep.subr.mxu0 0.0
      %2312 = vmatpush1.msra.mxu0 0.0
      %2313 = vmatprep.subr.mxu0 0.0
      %2314 = vmatpush1.msra.mxu0 0.0
      %v2315 = vand.u32 %v1601, 4294901760
      %2316 = vmatprep.mubr.f32.mxu0 %v2315
      %v2317 = vand.u32 %v1572, 4294901760
      %2318 = vmatmul.mubr.f32.gmra.mrb[0].mxu0 %v2317
      %v2319 = vpop.f32.mrb[0].mxu0
      %v2320 = vadd.f32 %v2163, %v2319
      %v2321 = vpop.f32.mrb[0].mxu0
      %v2322 = vand.u32 %v1604, 4294901760
      %2323 = vmatprep.mubr.f32.mxu0 %v2322
      %v2324 = vand.u32 %v1574, 4294901760
      %2325 = vmatmul.mubr.f32.gmra.mrb[0].mxu0 %v2324
      %v2326 = vpop.f32.mrb[0].mxu0
      %v2327 = vadd.f32 %v2174, %v2326
      %v2328 = vpop.f32.mrb[0].mxu0
      %v2329 = vand.u32 %v1607, 4294901760
      %2330 = vmatprep.mubr.f32.mxu0 %v2329
      %v2331 = vand.u32 %v1576, 4294901760
      %2332 = vmatmul.mubr.f32.gmra.mrb[0].mxu0 %v2331
      %v2333 = vpop.f32.mrb[0].mxu0
      %v2334 = vadd.f32 %v2185, %v2333
      %v2335 = vpop.f32.mrb[0].mxu0
      %2336 = vdwg.mxu0
      %2337 = vmatprep.subr.mxu0 0.0
      %v2338 = vand.u32 %v1578, 4294901760
      %2339 = vmatpush1.msra.mxu0 %v2338
      %2340 = vmatprep.subr.mxu0 0.0
      %v2341 = vand.u32 %v1579, 4294901760
      %2342 = vmatpush1.msra.mxu0 %v2341
      %2343 = vmatprep.subr.mxu0 0.0
      %v2344 = vand.u32 %v1580, 4294901760
      %2345 = vmatpush1.msra.mxu0 %v2344
      %2346 = vmatprep.subr.mxu0 0.0
      %v2347 = vand.u32 %v1581, 4294901760
      %2348 = vmatpush1.msra.mxu0 %v2347
      %2349 = vmatprep.subr.mxu0 0.0
      %v2350 = vand.u32 %v1582, 4294901760
      %2351 = vmatpush1.msra.mxu0 %v2350
      %2352 = vmatprep.subr.mxu0 0.0
      %v2353 = vand.u32 %v1583, 4294901760
      %2354 = vmatpush1.msra.mxu0 %v2353
      %2355 = vmatprep.subr.mxu0 0.0
      %v2356 = vand.u32 %v1584, 4294901760
      %2357 = vmatpush1.msra.mxu0 %v2356
      %2358 = vmatprep.subr.mxu0 0.0
      %v2359 = vand.u32 %v1585, 4294901760
      %2360 = vmatpush1.msra.mxu0 %v2359
      %2361 = vmatprep.subr.mxu0 0.0
      %v2362 = vand.u32 %v1586, 4294901760
      %2363 = vmatpush1.msra.mxu0 %v2362
      %2364 = vmatprep.subr.mxu0 0.0
      %v2365 = vand.u32 %v1587, 4294901760
      %2366 = vmatpush1.msra.mxu0 %v2365
      %2367 = vmatprep.subr.mxu0 0.0
      %v2368 = vand.u32 %v1588, 4294901760
      %2369 = vmatpush1.msra.mxu0 %v2368
      %2370 = vmatprep.subr.mxu0 0.0
      %v2371 = vand.u32 %v1589, 4294901760
      %2372 = vmatpush1.msra.mxu0 %v2371
      %2373 = vmatprep.subr.mxu0 0.0
      %v2374 = vand.u32 %v1590, 4294901760
      %2375 = vmatpush1.msra.mxu0 %v2374
      %2376 = vmatprep.subr.mxu0 0.0
      %v2377 = vand.u32 %v1591, 4294901760
      %2378 = vmatpush1.msra.mxu0 %v2377
      %2379 = vmatprep.subr.mxu0 0.0
      %v2380 = vand.u32 %v1592, 4294901760
      %2381 = vmatpush1.msra.mxu0 %v2380
      %2382 = vmatprep.subr.mxu0 0.0
      %v2383 = vand.u32 %v1593, 4294901760
      %2384 = vmatpush1.msra.mxu0 %v2383
      %2385 = vmatprep.subr.mxu0 0.0
      %v2386 = vand.u32 %v1594, 4294901760
      %2387 = vmatpush1.msra.mxu0 %v2386
      %2388 = vmatprep.subr.mxu0 0.0
      %v2389 = vand.u32 %v1595, 4294901760
      %2390 = vmatpush1.msra.mxu0 %v2389
      %2391 = vmatprep.subr.mxu0 0.0
      %v2392 = vand.u32 %v1596, 4294901760
      %2393 = vmatpush1.msra.mxu0 %v2392
      %2394 = vmatprep.subr.mxu0 0.0
      %v2395 = vand.u32 %v1597, 4294901760
      %2396 = vmatpush1.msra.mxu0 %v2395
      %2397 = vmatprep.subr.mxu0 0.0
      %v2398 = vand.u32 %v1611, 4294901760
      %2399 = vmatpush1.msra.mxu0 %v2398
      %2400 = vmatprep.subr.mxu0 0.0
      %2401 = vmatpush1.msra.mxu0 0.0
      %2402 = vmatprep.subr.mxu0 0.0
      %2403 = vmatpush1.msra.mxu0 0.0
      %2404 = vmatprep.subr.mxu0 0.0
      %2405 = vmatpush1.msra.mxu0 0.0
      %2406 = vmatprep.subr.mxu0 0.0
      %2407 = vmatpush1.msra.mxu0 0.0
      %2408 = vmatprep.subr.mxu0 0.0
      %2409 = vmatpush1.msra.mxu0 0.0
      %2410 = vmatprep.subr.mxu0 0.0
      %2411 = vmatpush1.msra.mxu0 0.0
      %2412 = vmatprep.subr.mxu0 0.0
      %2413 = vmatpush1.msra.mxu0 0.0
      %2414 = vmatprep.subr.mxu0 0.0
      %2415 = vmatpush1.msra.mxu0 0.0
      %2416 = vmatprep.subr.mxu0 0.0
      %2417 = vmatpush1.msra.mxu0 0.0
      %2418 = vmatprep.subr.mxu0 0.0
      %2419 = vmatpush1.msra.mxu0 0.0
      %2420 = vmatprep.subr.mxu0 0.0
      %2421 = vmatpush1.msra.mxu0 0.0
      %v2422 = vand.u32 %v1601, 4294901760
      %2423 = vmatprep.mubr.f32.mxu0 %v2422
      %v2424 = vand.u32 %v1572, 4294901760
      %2425 = vmatmul.mubr.f32.gmra.mrb[0].mxu0 %v2424
      %v2426 = vpop.f32.mrb[0].mxu0
      %v2427 = vadd.f32 %v2320, %v2426
      %v2428 = vpop.f32.mrb[0].mxu0
      %v2429 = vand.u32 %v1604, 4294901760
      %2430 = vmatprep.mubr.f32.mxu0 %v2429
      %v2431 = vand.u32 %v1574, 4294901760
      %2432 = vmatmul.mubr.f32.gmra.mrb[0].mxu0 %v2431
      %v2433 = vpop.f32.mrb[0].mxu0
      %v2434 = vadd.f32 %v2327, %v2433
      %v2435 = vpop.f32.mrb[0].mxu0
      %v2436 = vand.u32 %v1607, 4294901760
      %2437 = vmatprep.mubr.f32.mxu0 %v2436
      %v2438 = vand.u32 %v1576, 4294901760
      %2439 = vmatmul.mubr.f32.gmra.mrb[0].mxu0 %v2438
      %v2440 = vpop.f32.mrb[0].mxu0
      %v2441 = vadd.f32 %v2334, %v2440
      %v2442 = vpop.f32.mrb[0].mxu0
      %2443 = vdwg.mxu0
      %v2444 = vmax.f32 %v2427, 1e-06
      %v2445 = vmax.f32 %v2434, 1e-06
      %v2446 = vmax.f32 %v2441, 1e-06
      %v2447 = vlog2.pop %v2444
      %v2448 = vmul.f32 %v2447, 0.6931472
      %v2449 = vlog2.pop %v2445
      %v2450 = vmul.f32 %v2449, 0.6931472
      %v2451 = vlog2.pop %v2446
      %v2452 = vmul.f32 %v2451, 0.6931472
      %v2453 = vld [vmem:[%s3] sm:$0x3]
      %s2454 = scalar_lea.vmem %s3, 2
      %v2455 = vld [vmem:[%s2454] sm:$0x3]
      %2459 = vrot.lane.b32.xlu0 %v2448, 127
      %v2460 = vpop.permute.xlu0 %2459
      %2461 = vrot.lane.b32.xlu0 %v2450, 127
      %v2462 = vpop.permute.xlu0 %2461
      %2463 = vrot.lane.b32.xlu0 %v2452, 127
      %v2464 = vpop.permute.xlu0 %2463
      %vm2467 = vcmask 162816
      %v2469 = vsel %vm2467, %v2455, 0
      %vm2471 = vcmask 1043456
      %v2472 = vsel %vm2471, %v2464, 0
      %2474 = vmatprep.subr.mxu0 0.0
      %v2475 = vand.u32 %v2460, 4294901760
      %2476 = vmatpush1.msra.mxu0 %v2475
      %2477 = vmatprep.subr.mxu0 0.0
      %v2478 = vand.u32 %v2462, 4294901760
      %2479 = vmatpush1.msra.mxu0 %v2478
      %2480 = vmatprep.subr.mxu0 0.0
      %v2481 = vand.u32 %v2472, 4294901760
      %2482 = vmatpush1.msra.mxu0 %v2481
      %2483 = vmatprep.subr.mxu0 0.0
      %2484 = vmatpush1.msra.mxu0 0.0
      %2485 = vmatprep.subr.mxu0 0.0
      %2486 = vmatpush1.msra.mxu0 0.0
      %2487 = vmatprep.subr.mxu0 0.0
      %2488 = vmatpush1.msra.mxu0 0.0
      %2489 = vmatprep.subr.mxu0 0.0
      %2490 = vmatpush1.msra.mxu0 0.0
      %2491 = vmatprep.subr.mxu0 0.0
      %2492 = vmatpush1.msra.mxu0 0.0
      %2493 = vmatprep.subr.mxu0 0.0
      %2494 = vmatpush1.msra.mxu0 0.0
      %2495 = vmatprep.subr.mxu0 0.0
      %2496 = vmatpush1.msra.mxu0 0.0
      %2497 = vmatprep.subr.mxu0 0.0
      %2498 = vmatpush1.msra.mxu0 0.0
      %2499 = vmatprep.subr.mxu0 0.0
      %2500 = vmatpush1.msra.mxu0 0.0
      %2501 = vmatprep.subr.mxu0 0.0
      %2502 = vmatpush1.msra.mxu0 0.0
      %2503 = vmatprep.subr.mxu0 0.0
      %2504 = vmatpush1.msra.mxu0 0.0
      %2505 = vmatprep.subr.mxu0 0.0
      %2506 = vmatpush1.msra.mxu0 0.0
      %2507 = vmatprep.subr.mxu0 0.0
      %2508 = vmatpush1.msra.mxu0 0.0
      %2509 = vmatprep.subr.mxu0 0.0
      %2510 = vmatpush1.msra.mxu0 0.0
      %2511 = vmatprep.subr.mxu0 0.0
      %2512 = vmatpush1.msra.mxu0 0.0
      %2513 = vmatprep.subr.mxu0 0.0
      %2514 = vmatpush1.msra.mxu0 0.0
      %2515 = vmatprep.subr.mxu0 0.0
      %2516 = vmatpush1.msra.mxu0 0.0
      %2517 = vmatprep.subr.mxu0 0.0
      %2518 = vmatpush1.msra.mxu0 0.0
      %2519 = vmatprep.subr.mxu0 0.0
      %2520 = vmatpush1.msra.mxu0 0.0
      %2521 = vmatprep.subr.mxu0 0.0
      %2522 = vmatpush1.msra.mxu0 0.0
      %2523 = vmatprep.subr.mxu0 0.0
      %2524 = vmatpush1.msra.mxu0 0.0
      %2525 = vmatprep.subr.mxu0 0.0
      %2526 = vmatpush1.msra.mxu0 0.0
      %2527 = vmatprep.subr.mxu0 0.0
      %2528 = vmatpush1.msra.mxu0 0.0
      %2529 = vmatprep.subr.mxu0 0.0
      %2530 = vmatpush1.msra.mxu0 0.0
      %2531 = vmatprep.subr.mxu0 0.0
      %2532 = vmatpush1.msra.mxu0 0.0
      %2533 = vmatprep.subr.mxu0 0.0
      %2534 = vmatpush1.msra.mxu0 0.0
      %2535 = vmatprep.subr.mxu0 0.0
      %2536 = vmatpush1.msra.mxu0 0.0
      %2537 = vmatprep.subr.mxu0 0.0
      %2538 = vmatpush1.msra.mxu0 0.0
      %2539 = vmatprep.subr.mxu0 0.0
      %2540 = vmatpush1.msra.mxu0 0.0
      %2541 = vmatprep.mubr.f32.mxu0 0.0
      %v2542 = vand.u32 %v2469, 4294901760
      %v2543 = vsub.f32 %v2469, %v2542
      %v2544 = vand.u32 %v2543, 4294901760
      %v2545 = vsub.f32 %v2543, %v2544
      %v2546 = vand.u32 %v2545, 4294901760
      %2547 = vmatmul.mubr.f32.gmra.mrb[0].mxu0 %v2546
      %v2548 = vpop.f32.mrb[0].mxu0
      %v2549 = vadd.f32 0.0, %v2548
      %v2550 = vpop.f32.mrb[0].mxu0
      %2551 = vdwg.mxu0
      %2552 = vmatprep.subr.mxu0 0.0
      %v2553 = vand.u32 %v2460, 4294901760
      %v2554 = vsub.f32 %v2460, %v2553
      %v2555 = vand.u32 %v2554, 4294901760
      %v2556 = vsub.f32 %v2554, %v2555
      %v2557 = vand.u32 %v2556, 4294901760
      %2558 = vmatpush1.msra.mxu0 %v2557
      %2559 = vmatprep.subr.mxu0 0.0
      %v2560 = vand.u32 %v2462, 4294901760
      %v2561 = vsub.f32 %v2462, %v2560
      %v2562 = vand.u32 %v2561, 4294901760
      %v2563 = vsub.f32 %v2561, %v2562
      %v2564 = vand.u32 %v2563, 4294901760
      %2565 = vmatpush1.msra.mxu0 %v2564
      %2566 = vmatprep.subr.mxu0 0.0
      %v2567 = vand.u32 %v2472, 4294901760
      %v2568 = vsub.f32 %v2472, %v2567
      %v2569 = vand.u32 %v2568, 4294901760
      %v2570 = vsub.f32 %v2568, %v2569
      %v2571 = vand.u32 %v2570, 4294901760
      %2572 = vmatpush1.msra.mxu0 %v2571
      %2573 = vmatprep.subr.mxu0 0.0
      %2574 = vmatpush1.msra.mxu0 0.0
      %2575 = vmatprep.subr.mxu0 0.0
      %2576 = vmatpush1.msra.mxu0 0.0
      %2577 = vmatprep.subr.mxu0 0.0
      %2578 = vmatpush1.msra.mxu0 0.0
      %2579 = vmatprep.subr.mxu0 0.0
      %2580 = vmatpush1.msra.mxu0 0.0
      %2581 = vmatprep.subr.mxu0 0.0
      %2582 = vmatpush1.msra.mxu0 0.0
      %2583 = vmatprep.subr.mxu0 0.0
      %2584 = vmatpush1.msra.mxu0 0.0
      %2585 = vmatprep.subr.mxu0 0.0
      %2586 = vmatpush1.msra.mxu0 0.0
      %2587 = vmatprep.subr.mxu0 0.0
      %2588 = vmatpush1.msra.mxu0 0.0
      %2589 = vmatprep.subr.mxu0 0.0
      %2590 = vmatpush1.msra.mxu0 0.0
      %2591 = vmatprep.subr.mxu0 0.0
      %2592 = vmatpush1.msra.mxu0 0.0
      %2593 = vmatprep.subr.mxu0 0.0
      %2594 = vmatpush1.msra.mxu0 0.0
      %2595 = vmatprep.subr.mxu0 0.0
      %2596 = vmatpush1.msra.mxu0 0.0
      %2597 = vmatprep.subr.mxu0 0.0
      %2598 = vmatpush1.msra.mxu0 0.0
      %2599 = vmatprep.subr.mxu0 0.0
      %2600 = vmatpush1.msra.mxu0 0.0
      %2601 = vmatprep.subr.mxu0 0.0
      %2602 = vmatpush1.msra.mxu0 0.0
      %2603 = vmatprep.subr.mxu0 0.0
      %2604 = vmatpush1.msra.mxu0 0.0
      %2605 = vmatprep.subr.mxu0 0.0
      %2606 = vmatpush1.msra.mxu0 0.0
      %2607 = vmatprep.subr.mxu0 0.0
      %2608 = vmatpush1.msra.mxu0 0.0
      %2609 = vmatprep.subr.mxu0 0.0
      %2610 = vmatpush1.msra.mxu0 0.0
      %2611 = vmatprep.subr.mxu0 0.0
      %2612 = vmatpush1.msra.mxu0 0.0
      %2613 = vmatprep.subr.mxu0 0.0
      %2614 = vmatpush1.msra.mxu0 0.0
      %2615 = vmatprep.subr.mxu0 0.0
      %2616 = vmatpush1.msra.mxu0 0.0
      %2617 = vmatprep.subr.mxu0 0.0
      %2618 = vmatpush1.msra.mxu0 0.0
      %2619 = vmatprep.subr.mxu0 0.0
      %2620 = vmatpush1.msra.mxu0 0.0
      %2621 = vmatprep.subr.mxu0 0.0
      %2622 = vmatpush1.msra.mxu0 0.0
      %2623 = vmatprep.subr.mxu0 0.0
      %2624 = vmatpush1.msra.mxu0 0.0
      %2625 = vmatprep.subr.mxu0 0.0
      %2626 = vmatpush1.msra.mxu0 0.0
      %2627 = vmatprep.subr.mxu0 0.0
      %2628 = vmatpush1.msra.mxu0 0.0
      %2629 = vmatprep.subr.mxu0 0.0
      %2630 = vmatpush1.msra.mxu0 0.0
      %2631 = vmatprep.mubr.f32.mxu0 0.0
      %v2632 = vand.u32 %v2469, 4294901760
      %2633 = vmatmul.mubr.f32.gmra.mrb[0].mxu0 %v2632
      %v2634 = vpop.f32.mrb[0].mxu0
      %v2635 = vadd.f32 %v2549, %v2634
      %v2636 = vpop.f32.mrb[0].mxu0
      %2637 = vdwg.mxu0
      %2638 = vmatprep.subr.mxu0 0.0
      %v2639 = vand.u32 %v2460, 4294901760
      %v2640 = vsub.f32 %v2460, %v2639
      %2641 = vmatpush1.msra.mxu0 %v2640
      %2642 = vmatprep.subr.mxu0 0.0
      %v2643 = vand.u32 %v2462, 4294901760
      %v2644 = vsub.f32 %v2462, %v2643
      %2645 = vmatpush1.msra.mxu0 %v2644
      %2646 = vmatprep.subr.mxu0 0.0
      %v2647 = vand.u32 %v2472, 4294901760
      %v2648 = vsub.f32 %v2472, %v2647
      %2649 = vmatpush1.msra.mxu0 %v2648
      %2650 = vmatprep.subr.mxu0 0.0
      %2651 = vmatpush1.msra.mxu0 0.0
      %2652 = vmatprep.subr.mxu0 0.0
      %2653 = vmatpush1.msra.mxu0 0.0
      %2654 = vmatprep.subr.mxu0 0.0
      %2655 = vmatpush1.msra.mxu0 0.0
      %2656 = vmatprep.subr.mxu0 0.0
      %2657 = vmatpush1.msra.mxu0 0.0
      %2658 = vmatprep.subr.mxu0 0.0
      %2659 = vmatpush1.msra.mxu0 0.0
      %2660 = vmatprep.subr.mxu0 0.0
      %2661 = vmatpush1.msra.mxu0 0.0
      %2662 = vmatprep.subr.mxu0 0.0
      %2663 = vmatpush1.msra.mxu0 0.0
      %2664 = vmatprep.subr.mxu0 0.0
      %2665 = vmatpush1.msra.mxu0 0.0
      %2666 = vmatprep.subr.mxu0 0.0
      %2667 = vmatpush1.msra.mxu0 0.0
      %2668 = vmatprep.subr.mxu0 0.0
      %2669 = vmatpush1.msra.mxu0 0.0
      %2670 = vmatprep.subr.mxu0 0.0
      %2671 = vmatpush1.msra.mxu0 0.0
      %2672 = vmatprep.subr.mxu0 0.0
      %2673 = vmatpush1.msra.mxu0 0.0
      %2674 = vmatprep.subr.mxu0 0.0
      %2675 = vmatpush1.msra.mxu0 0.0
      %2676 = vmatprep.subr.mxu0 0.0
      %2677 = vmatpush1.msra.mxu0 0.0
      %2678 = vmatprep.subr.mxu0 0.0
      %2679 = vmatpush1.msra.mxu0 0.0
      %2680 = vmatprep.subr.mxu0 0.0
      %2681 = vmatpush1.msra.mxu0 0.0
      %2682 = vmatprep.subr.mxu0 0.0
      %2683 = vmatpush1.msra.mxu0 0.0
      %2684 = vmatprep.subr.mxu0 0.0
      %2685 = vmatpush1.msra.mxu0 0.0
      %2686 = vmatprep.subr.mxu0 0.0
      %2687 = vmatpush1.msra.mxu0 0.0
      %2688 = vmatprep.subr.mxu0 0.0
      %2689 = vmatpush1.msra.mxu0 0.0
      %2690 = vmatprep.subr.mxu0 0.0
      %2691 = vmatpush1.msra.mxu0 0.0
      %2692 = vmatprep.subr.mxu0 0.0
      %2693 = vmatpush1.msra.mxu0 0.0
      %2694 = vmatprep.subr.mxu0 0.0
      %2695 = vmatpush1.msra.mxu0 0.0
      %2696 = vmatprep.subr.mxu0 0.0
      %2697 = vmatpush1.msra.mxu0 0.0
      %2698 = vmatprep.subr.mxu0 0.0
      %2699 = vmatpush1.msra.mxu0 0.0
      %2700 = vmatprep.subr.mxu0 0.0
      %2701 = vmatpush1.msra.mxu0 0.0
      %2702 = vmatprep.subr.mxu0 0.0
      %2703 = vmatpush1.msra.mxu0 0.0
      %2704 = vmatprep.subr.mxu0 0.0
      %2705 = vmatpush1.msra.mxu0 0.0
      %2706 = vmatprep.subr.mxu0 0.0
      %2707 = vmatpush1.msra.mxu0 0.0
      %2708 = vmatprep.mubr.f32.mxu0 0.0
      %v2709 = vand.u32 %v2469, 4294901760
      %v2710 = vsub.f32 %v2469, %v2709
      %2711 = vmatmul.mubr.f32.gmra.mrb[0].mxu0 %v2710
      %v2712 = vpop.f32.mrb[0].mxu0
      %v2713 = vadd.f32 %v2635, %v2712
      %v2714 = vpop.f32.mrb[0].mxu0
      %2715 = vdwg.mxu0
      %2716 = vmatprep.subr.mxu0 0.0
      %v2717 = vand.u32 %v2460, 4294901760
      %2718 = vmatpush1.msra.mxu0 %v2717
      %2719 = vmatprep.subr.mxu0 0.0
      %v2720 = vand.u32 %v2462, 4294901760
      %2721 = vmatpush1.msra.mxu0 %v2720
      %2722 = vmatprep.subr.mxu0 0.0
      %v2723 = vand.u32 %v2472, 4294901760
      %2724 = vmatpush1.msra.mxu0 %v2723
      %2725 = vmatprep.subr.mxu0 0.0
      %2726 = vmatpush1.msra.mxu0 0.0
      %2727 = vmatprep.subr.mxu0 0.0
      %2728 = vmatpush1.msra.mxu0 0.0
      %2729 = vmatprep.subr.mxu0 0.0
      %2730 = vmatpush1.msra.mxu0 0.0
      %2731 = vmatprep.subr.mxu0 0.0
      %2732 = vmatpush1.msra.mxu0 0.0
      %2733 = vmatprep.subr.mxu0 0.0
      %2734 = vmatpush1.msra.mxu0 0.0
      %2735 = vmatprep.subr.mxu0 0.0
      %2736 = vmatpush1.msra.mxu0 0.0
      %2737 = vmatprep.subr.mxu0 0.0
      %2738 = vmatpush1.msra.mxu0 0.0
      %2739 = vmatprep.subr.mxu0 0.0
      %2740 = vmatpush1.msra.mxu0 0.0
      %2741 = vmatprep.subr.mxu0 0.0
      %2742 = vmatpush1.msra.mxu0 0.0
      %2743 = vmatprep.subr.mxu0 0.0
      %2744 = vmatpush1.msra.mxu0 0.0
      %2745 = vmatprep.subr.mxu0 0.0
      %2746 = vmatpush1.msra.mxu0 0.0
      %2747 = vmatprep.subr.mxu0 0.0
      %2748 = vmatpush1.msra.mxu0 0.0
      %2749 = vmatprep.subr.mxu0 0.0
      %2750 = vmatpush1.msra.mxu0 0.0
      %2751 = vmatprep.subr.mxu0 0.0
      %2752 = vmatpush1.msra.mxu0 0.0
      %2753 = vmatprep.subr.mxu0 0.0
      %2754 = vmatpush1.msra.mxu0 0.0
      %2755 = vmatprep.subr.mxu0 0.0
      %2756 = vmatpush1.msra.mxu0 0.0
      %2757 = vmatprep.subr.mxu0 0.0
      %2758 = vmatpush1.msra.mxu0 0.0
      %2759 = vmatprep.subr.mxu0 0.0
      %2760 = vmatpush1.msra.mxu0 0.0
      %2761 = vmatprep.subr.mxu0 0.0
      %2762 = vmatpush1.msra.mxu0 0.0
      %2763 = vmatprep.subr.mxu0 0.0
      %2764 = vmatpush1.msra.mxu0 0.0
      %2765 = vmatprep.subr.mxu0 0.0
      %2766 = vmatpush1.msra.mxu0 0.0
      %2767 = vmatprep.subr.mxu0 0.0
      %2768 = vmatpush1.msra.mxu0 0.0
      %2769 = vmatprep.subr.mxu0 0.0
      %2770 = vmatpush1.msra.mxu0 0.0
      %2771 = vmatprep.subr.mxu0 0.0
      %2772 = vmatpush1.msra.mxu0 0.0
      %2773 = vmatprep.subr.mxu0 0.0
      %2774 = vmatpush1.msra.mxu0 0.0
      %2775 = vmatprep.subr.mxu0 0.0
      %2776 = vmatpush1.msra.mxu0 0.0
      %2777 = vmatprep.subr.mxu0 0.0
      %2778 = vmatpush1.msra.mxu0 0.0
      %2779 = vmatprep.subr.mxu0 0.0
      %2780 = vmatpush1.msra.mxu0 0.0
      %2781 = vmatprep.subr.mxu0 0.0
      %2782 = vmatpush1.msra.mxu0 0.0
      %2783 = vmatprep.mubr.f32.mxu0 0.0
      %v2784 = vand.u32 %v2469, 4294901760
      %v2785 = vsub.f32 %v2469, %v2784
      %v2786 = vand.u32 %v2785, 4294901760
      %2787 = vmatmul.mubr.f32.gmra.mrb[0].mxu0 %v2786
      %v2788 = vpop.f32.mrb[0].mxu0
      %v2789 = vadd.f32 %v2713, %v2788
      %v2790 = vpop.f32.mrb[0].mxu0
      %2791 = vdwg.mxu0
      %2792 = vmatprep.subr.mxu0 0.0
      %v2793 = vand.u32 %v2460, 4294901760
      %v2794 = vsub.f32 %v2460, %v2793
      %v2795 = vand.u32 %v2794, 4294901760
      %2796 = vmatpush1.msra.mxu0 %v2795
      %2797 = vmatprep.subr.mxu0 0.0
      %v2798 = vand.u32 %v2462, 4294901760
      %v2799 = vsub.f32 %v2462, %v2798
      %v2800 = vand.u32 %v2799, 4294901760
      %2801 = vmatpush1.msra.mxu0 %v2800
      %2802 = vmatprep.subr.mxu0 0.0
      %v2803 = vand.u32 %v2472, 4294901760
      %v2804 = vsub.f32 %v2472, %v2803
      %v2805 = vand.u32 %v2804, 4294901760
      %2806 = vmatpush1.msra.mxu0 %v2805
      %2807 = vmatprep.subr.mxu0 0.0
      %2808 = vmatpush1.msra.mxu0 0.0
      %2809 = vmatprep.subr.mxu0 0.0
      %2810 = vmatpush1.msra.mxu0 0.0
      %2811 = vmatprep.subr.mxu0 0.0
      %2812 = vmatpush1.msra.mxu0 0.0
      %2813 = vmatprep.subr.mxu0 0.0
      %2814 = vmatpush1.msra.mxu0 0.0
      %2815 = vmatprep.subr.mxu0 0.0
      %2816 = vmatpush1.msra.mxu0 0.0
      %2817 = vmatprep.subr.mxu0 0.0
      %2818 = vmatpush1.msra.mxu0 0.0
      %2819 = vmatprep.subr.mxu0 0.0
      %2820 = vmatpush1.msra.mxu0 0.0
      %2821 = vmatprep.subr.mxu0 0.0
      %2822 = vmatpush1.msra.mxu0 0.0
      %2823 = vmatprep.subr.mxu0 0.0
      %2824 = vmatpush1.msra.mxu0 0.0
      %2825 = vmatprep.subr.mxu0 0.0
      %2826 = vmatpush1.msra.mxu0 0.0
      %2827 = vmatprep.subr.mxu0 0.0
      %2828 = vmatpush1.msra.mxu0 0.0
      %2829 = vmatprep.subr.mxu0 0.0
      %2830 = vmatpush1.msra.mxu0 0.0
      %2831 = vmatprep.subr.mxu0 0.0
      %2832 = vmatpush1.msra.mxu0 0.0
      %2833 = vmatprep.subr.mxu0 0.0
      %2834 = vmatpush1.msra.mxu0 0.0
      %2835 = vmatprep.subr.mxu0 0.0
      %2836 = vmatpush1.msra.mxu0 0.0
      %2837 = vmatprep.subr.mxu0 0.0
      %2838 = vmatpush1.msra.mxu0 0.0
      %2839 = vmatprep.subr.mxu0 0.0
      %2840 = vmatpush1.msra.mxu0 0.0
      %2841 = vmatprep.subr.mxu0 0.0
      %2842 = vmatpush1.msra.mxu0 0.0
      %2843 = vmatprep.subr.mxu0 0.0
      %2844 = vmatpush1.msra.mxu0 0.0
      %2845 = vmatprep.subr.mxu0 0.0
      %2846 = vmatpush1.msra.mxu0 0.0
      %2847 = vmatprep.subr.mxu0 0.0
      %2848 = vmatpush1.msra.mxu0 0.0
      %2849 = vmatprep.subr.mxu0 0.0
      %2850 = vmatpush1.msra.mxu0 0.0
      %2851 = vmatprep.subr.mxu0 0.0
      %2852 = vmatpush1.msra.mxu0 0.0
      %2853 = vmatprep.subr.mxu0 0.0
      %2854 = vmatpush1.msra.mxu0 0.0
      %2855 = vmatprep.subr.mxu0 0.0
      %2856 = vmatpush1.msra.mxu0 0.0
      %2857 = vmatprep.subr.mxu0 0.0
      %2858 = vmatpush1.msra.mxu0 0.0
      %2859 = vmatprep.subr.mxu0 0.0
      %2860 = vmatpush1.msra.mxu0 0.0
      %2861 = vmatprep.subr.mxu0 0.0
      %2862 = vmatpush1.msra.mxu0 0.0
      %2863 = vmatprep.subr.mxu0 0.0
      %2864 = vmatpush1.msra.mxu0 0.0
      %2865 = vmatprep.mubr.f32.mxu0 0.0
      %v2866 = vand.u32 %v2469, 4294901760
      %2867 = vmatmul.mubr.f32.gmra.mrb[0].mxu0 %v2866
      %v2868 = vpop.f32.mrb[0].mxu0
      %v2869 = vadd.f32 %v2789, %v2868
      %v2870 = vpop.f32.mrb[0].mxu0
      %2871 = vdwg.mxu0
      %2872 = vmatprep.subr.mxu0 0.0
      %v2873 = vand.u32 %v2460, 4294901760
      %2874 = vmatpush1.msra.mxu0 %v2873
      %2875 = vmatprep.subr.mxu0 0.0
      %v2876 = vand.u32 %v2462, 4294901760
      %2877 = vmatpush1.msra.mxu0 %v2876
      %2878 = vmatprep.subr.mxu0 0.0
      %v2879 = vand.u32 %v2472, 4294901760
      %2880 = vmatpush1.msra.mxu0 %v2879
      %2881 = vmatprep.subr.mxu0 0.0
      %2882 = vmatpush1.msra.mxu0 0.0
      %2883 = vmatprep.subr.mxu0 0.0
      %2884 = vmatpush1.msra.mxu0 0.0
      %2885 = vmatprep.subr.mxu0 0.0
      %2886 = vmatpush1.msra.mxu0 0.0
      %2887 = vmatprep.subr.mxu0 0.0
      %2888 = vmatpush1.msra.mxu0 0.0
      %2889 = vmatprep.subr.mxu0 0.0
      %2890 = vmatpush1.msra.mxu0 0.0
      %2891 = vmatprep.subr.mxu0 0.0
      %2892 = vmatpush1.msra.mxu0 0.0
      %2893 = vmatprep.subr.mxu0 0.0
      %2894 = vmatpush1.msra.mxu0 0.0
      %2895 = vmatprep.subr.mxu0 0.0
      %2896 = vmatpush1.msra.mxu0 0.0
      %2897 = vmatprep.subr.mxu0 0.0
      %2898 = vmatpush1.msra.mxu0 0.0
      %2899 = vmatprep.subr.mxu0 0.0
      %2900 = vmatpush1.msra.mxu0 0.0
      %2901 = vmatprep.subr.mxu0 0.0
      %2902 = vmatpush1.msra.mxu0 0.0
      %2903 = vmatprep.subr.mxu0 0.0
      %2904 = vmatpush1.msra.mxu0 0.0
      %2905 = vmatprep.subr.mxu0 0.0
      %2906 = vmatpush1.msra.mxu0 0.0
      %2907 = vmatprep.subr.mxu0 0.0
      %2908 = vmatpush1.msra.mxu0 0.0
      %2909 = vmatprep.subr.mxu0 0.0
      %2910 = vmatpush1.msra.mxu0 0.0
      %2911 = vmatprep.subr.mxu0 0.0
      %2912 = vmatpush1.msra.mxu0 0.0
      %2913 = vmatprep.subr.mxu0 0.0
      %2914 = vmatpush1.msra.mxu0 0.0
      %2915 = vmatprep.subr.mxu0 0.0
      %2916 = vmatpush1.msra.mxu0 0.0
      %2917 = vmatprep.subr.mxu0 0.0
      %2918 = vmatpush1.msra.mxu0 0.0
      %2919 = vmatprep.subr.mxu0 0.0
      %2920 = vmatpush1.msra.mxu0 0.0
      %2921 = vmatprep.subr.mxu0 0.0
      %2922 = vmatpush1.msra.mxu0 0.0
      %2923 = vmatprep.subr.mxu0 0.0
      %2924 = vmatpush1.msra.mxu0 0.0
      %2925 = vmatprep.subr.mxu0 0.0
      %2926 = vmatpush1.msra.mxu0 0.0
      %2927 = vmatprep.subr.mxu0 0.0
      %2928 = vmatpush1.msra.mxu0 0.0
      %2929 = vmatprep.subr.mxu0 0.0
      %2930 = vmatpush1.msra.mxu0 0.0
      %2931 = vmatprep.subr.mxu0 0.0
      %2932 = vmatpush1.msra.mxu0 0.0
      %2933 = vmatprep.subr.mxu0 0.0
      %2934 = vmatpush1.msra.mxu0 0.0
      %2935 = vmatprep.subr.mxu0 0.0
      %2936 = vmatpush1.msra.mxu0 0.0
      %2937 = vmatprep.subr.mxu0 0.0
      %2938 = vmatpush1.msra.mxu0 0.0
      %2939 = vmatprep.mubr.f32.mxu0 0.0
      %v2940 = vand.u32 %v2469, 4294901760
      %2941 = vmatmul.mubr.f32.gmra.mrb[0].mxu0 %v2940
      %v2942 = vpop.f32.mrb[0].mxu0
      %v2943 = vadd.f32 %v2869, %v2942
      %v2944 = vpop.f32.mrb[0].mxu0
      %2945 = vdwg.mxu0
      %v2947 = vsel %vm2467, %v2453, 0
      %v2949 = vsel %vm2471, %v2452, 0
      %2951 = vmatprep.subr.mxu0 0.0
      %v2952 = vand.u32 %v2448, 4294901760
      %2953 = vmatpush1.msra.mxu0 %v2952
      %2954 = vmatprep.subr.mxu0 0.0
      %v2955 = vand.u32 %v2450, 4294901760
      %2956 = vmatpush1.msra.mxu0 %v2955
      %2957 = vmatprep.subr.mxu0 0.0
      %v2958 = vand.u32 %v2949, 4294901760
      %2959 = vmatpush1.msra.mxu0 %v2958
      %2960 = vmatprep.subr.mxu0 0.0
      %2961 = vmatpush1.msra.mxu0 0.0
      %2962 = vmatprep.subr.mxu0 0.0
      %2963 = vmatpush1.msra.mxu0 0.0
      %2964 = vmatprep.subr.mxu0 0.0
      %2965 = vmatpush1.msra.mxu0 0.0
      %2966 = vmatprep.subr.mxu0 0.0
      %2967 = vmatpush1.msra.mxu0 0.0
      %2968 = vmatprep.subr.mxu0 0.0
      %2969 = vmatpush1.msra.mxu0 0.0
      %2970 = vmatprep.subr.mxu0 0.0
      %2971 = vmatpush1.msra.mxu0 0.0
      %2972 = vmatprep.subr.mxu0 0.0
      %2973 = vmatpush1.msra.mxu0 0.0
      %2974 = vmatprep.subr.mxu0 0.0
      %2975 = vmatpush1.msra.mxu0 0.0
      %2976 = vmatprep.subr.mxu0 0.0
      %2977 = vmatpush1.msra.mxu0 0.0
      %2978 = vmatprep.subr.mxu0 0.0
      %2979 = vmatpush1.msra.mxu0 0.0
      %2980 = vmatprep.subr.mxu0 0.0
      %2981 = vmatpush1.msra.mxu0 0.0
      %2982 = vmatprep.subr.mxu0 0.0
      %2983 = vmatpush1.msra.mxu0 0.0
      %2984 = vmatprep.subr.mxu0 0.0
      %2985 = vmatpush1.msra.mxu0 0.0
      %2986 = vmatprep.subr.mxu0 0.0
      %2987 = vmatpush1.msra.mxu0 0.0
      %2988 = vmatprep.subr.mxu0 0.0
      %2989 = vmatpush1.msra.mxu0 0.0
      %2990 = vmatprep.subr.mxu0 0.0
      %2991 = vmatpush1.msra.mxu0 0.0
      %2992 = vmatprep.subr.mxu0 0.0
      %2993 = vmatpush1.msra.mxu0 0.0
      %2994 = vmatprep.subr.mxu0 0.0
      %2995 = vmatpush1.msra.mxu0 0.0
      %2996 = vmatprep.subr.mxu0 0.0
      %2997 = vmatpush1.msra.mxu0 0.0
      %2998 = vmatprep.subr.mxu0 0.0
      %2999 = vmatpush1.msra.mxu0 0.0
      %3000 = vmatprep.subr.mxu0 0.0
      %3001 = vmatpush1.msra.mxu0 0.0
      %3002 = vmatprep.subr.mxu0 0.0
      %3003 = vmatpush1.msra.mxu0 0.0
      %3004 = vmatprep.subr.mxu0 0.0
      %3005 = vmatpush1.msra.mxu0 0.0
      %3006 = vmatprep.subr.mxu0 0.0
      %3007 = vmatpush1.msra.mxu0 0.0
      %3008 = vmatprep.subr.mxu0 0.0
      %3009 = vmatpush1.msra.mxu0 0.0
      %3010 = vmatprep.subr.mxu0 0.0
      %3011 = vmatpush1.msra.mxu0 0.0
      %3012 = vmatprep.subr.mxu0 0.0
      %3013 = vmatpush1.msra.mxu0 0.0
      %3014 = vmatprep.subr.mxu0 0.0
      %3015 = vmatpush1.msra.mxu0 0.0
      %3016 = vmatprep.subr.mxu0 0.0
      %3017 = vmatpush1.msra.mxu0 0.0
      %3018 = vmatprep.mubr.f32.mxu0 0.0
      %v3019 = vand.u32 %v2947, 4294901760
      %v3020 = vsub.f32 %v2947, %v3019
      %v3021 = vand.u32 %v3020, 4294901760
      %v3022 = vsub.f32 %v3020, %v3021
      %v3023 = vand.u32 %v3022, 4294901760
      %3024 = vmatmul.mubr.f32.gmra.mrb[0].mxu0 %v3023
      %v3025 = vpop.f32.mrb[0].mxu0
      %v3026 = vadd.f32 %v2943, %v3025
      %v3027 = vpop.f32.mrb[0].mxu0
      %3028 = vdwg.mxu0
      %3029 = vmatprep.subr.mxu0 0.0
      %v3030 = vand.u32 %v2448, 4294901760
      %v3031 = vsub.f32 %v2448, %v3030
      %v3032 = vand.u32 %v3031, 4294901760
      %v3033 = vsub.f32 %v3031, %v3032
      %v3034 = vand.u32 %v3033, 4294901760
      %3035 = vmatpush1.msra.mxu0 %v3034
      %3036 = vmatprep.subr.mxu0 0.0
      %v3037 = vand.u32 %v2450, 4294901760
      %v3038 = vsub.f32 %v2450, %v3037
      %v3039 = vand.u32 %v3038, 4294901760
      %v3040 = vsub.f32 %v3038, %v3039
      %v3041 = vand.u32 %v3040, 4294901760
      %3042 = vmatpush1.msra.mxu0 %v3041
      %3043 = vmatprep.subr.mxu0 0.0
      %v3044 = vand.u32 %v2949, 4294901760
      %v3045 = vsub.f32 %v2949, %v3044
      %v3046 = vand.u32 %v3045, 4294901760
      %v3047 = vsub.f32 %v3045, %v3046
      %v3048 = vand.u32 %v3047, 4294901760
      %3049 = vmatpush1.msra.mxu0 %v3048
      %3050 = vmatprep.subr.mxu0 0.0
      %3051 = vmatpush1.msra.mxu0 0.0
      %3052 = vmatprep.subr.mxu0 0.0
      %3053 = vmatpush1.msra.mxu0 0.0
      %3054 = vmatprep.subr.mxu0 0.0
      %3055 = vmatpush1.msra.mxu0 0.0
      %3056 = vmatprep.subr.mxu0 0.0
      %3057 = vmatpush1.msra.mxu0 0.0
      %3058 = vmatprep.subr.mxu0 0.0
      %3059 = vmatpush1.msra.mxu0 0.0
      %3060 = vmatprep.subr.mxu0 0.0
      %3061 = vmatpush1.msra.mxu0 0.0
      %3062 = vmatprep.subr.mxu0 0.0
      %3063 = vmatpush1.msra.mxu0 0.0
      %3064 = vmatprep.subr.mxu0 0.0
      %3065 = vmatpush1.msra.mxu0 0.0
      %3066 = vmatprep.subr.mxu0 0.0
      %3067 = vmatpush1.msra.mxu0 0.0
      %3068 = vmatprep.subr.mxu0 0.0
      %3069 = vmatpush1.msra.mxu0 0.0
      %3070 = vmatprep.subr.mxu0 0.0
      %3071 = vmatpush1.msra.mxu0 0.0
      %3072 = vmatprep.subr.mxu0 0.0
      %3073 = vmatpush1.msra.mxu0 0.0
      %3074 = vmatprep.subr.mxu0 0.0
      %3075 = vmatpush1.msra.mxu0 0.0
      %3076 = vmatprep.subr.mxu0 0.0
      %3077 = vmatpush1.msra.mxu0 0.0
      %3078 = vmatprep.subr.mxu0 0.0
      %3079 = vmatpush1.msra.mxu0 0.0
      %3080 = vmatprep.subr.mxu0 0.0
      %3081 = vmatpush1.msra.mxu0 0.0
      %3082 = vmatprep.subr.mxu0 0.0
      %3083 = vmatpush1.msra.mxu0 0.0
      %3084 = vmatprep.subr.mxu0 0.0
      %3085 = vmatpush1.msra.mxu0 0.0
      %3086 = vmatprep.subr.mxu0 0.0
      %3087 = vmatpush1.msra.mxu0 0.0
      %3088 = vmatprep.subr.mxu0 0.0
      %3089 = vmatpush1.msra.mxu0 0.0
      %3090 = vmatprep.subr.mxu0 0.0
      %3091 = vmatpush1.msra.mxu0 0.0
      %3092 = vmatprep.subr.mxu0 0.0
      %3093 = vmatpush1.msra.mxu0 0.0
      %3094 = vmatprep.subr.mxu0 0.0
      %3095 = vmatpush1.msra.mxu0 0.0
      %3096 = vmatprep.subr.mxu0 0.0
      %3097 = vmatpush1.msra.mxu0 0.0
      %3098 = vmatprep.subr.mxu0 0.0
      %3099 = vmatpush1.msra.mxu0 0.0
      %3100 = vmatprep.subr.mxu0 0.0
      %3101 = vmatpush1.msra.mxu0 0.0
      %3102 = vmatprep.subr.mxu0 0.0
      %3103 = vmatpush1.msra.mxu0 0.0
      %3104 = vmatprep.subr.mxu0 0.0
      %3105 = vmatpush1.msra.mxu0 0.0
      %3106 = vmatprep.subr.mxu0 0.0
      %3107 = vmatpush1.msra.mxu0 0.0
      %3108 = vmatprep.mubr.f32.mxu0 0.0
      %v3109 = vand.u32 %v2947, 4294901760
      %3110 = vmatmul.mubr.f32.gmra.mrb[0].mxu0 %v3109
      %v3111 = vpop.f32.mrb[0].mxu0
      %v3112 = vadd.f32 %v3026, %v3111
      %v3113 = vpop.f32.mrb[0].mxu0
      %3114 = vdwg.mxu0
      %3115 = vmatprep.subr.mxu0 0.0
      %v3116 = vand.u32 %v2448, 4294901760
      %v3117 = vsub.f32 %v2448, %v3116
      %3118 = vmatpush1.msra.mxu0 %v3117
      %3119 = vmatprep.subr.mxu0 0.0
      %v3120 = vand.u32 %v2450, 4294901760
      %v3121 = vsub.f32 %v2450, %v3120
      %3122 = vmatpush1.msra.mxu0 %v3121
      %3123 = vmatprep.subr.mxu0 0.0
      %v3124 = vand.u32 %v2949, 4294901760
      %v3125 = vsub.f32 %v2949, %v3124
      %3126 = vmatpush1.msra.mxu0 %v3125
      %3127 = vmatprep.subr.mxu0 0.0
      %3128 = vmatpush1.msra.mxu0 0.0
      %3129 = vmatprep.subr.mxu0 0.0
      %3130 = vmatpush1.msra.mxu0 0.0
      %3131 = vmatprep.subr.mxu0 0.0
      %3132 = vmatpush1.msra.mxu0 0.0
      %3133 = vmatprep.subr.mxu0 0.0
      %3134 = vmatpush1.msra.mxu0 0.0
      %3135 = vmatprep.subr.mxu0 0.0
      %3136 = vmatpush1.msra.mxu0 0.0
      %3137 = vmatprep.subr.mxu0 0.0
      %3138 = vmatpush1.msra.mxu0 0.0
      %3139 = vmatprep.subr.mxu0 0.0
      %3140 = vmatpush1.msra.mxu0 0.0
      %3141 = vmatprep.subr.mxu0 0.0
      %3142 = vmatpush1.msra.mxu0 0.0
      %3143 = vmatprep.subr.mxu0 0.0
      %3144 = vmatpush1.msra.mxu0 0.0
      %3145 = vmatprep.subr.mxu0 0.0
      %3146 = vmatpush1.msra.mxu0 0.0
      %3147 = vmatprep.subr.mxu0 0.0
      %3148 = vmatpush1.msra.mxu0 0.0
      %3149 = vmatprep.subr.mxu0 0.0
      %3150 = vmatpush1.msra.mxu0 0.0
      %3151 = vmatprep.subr.mxu0 0.0
      %3152 = vmatpush1.msra.mxu0 0.0
      %3153 = vmatprep.subr.mxu0 0.0
      %3154 = vmatpush1.msra.mxu0 0.0
      %3155 = vmatprep.subr.mxu0 0.0
      %3156 = vmatpush1.msra.mxu0 0.0
      %3157 = vmatprep.subr.mxu0 0.0
      %3158 = vmatpush1.msra.mxu0 0.0
      %3159 = vmatprep.subr.mxu0 0.0
      %3160 = vmatpush1.msra.mxu0 0.0
      %3161 = vmatprep.subr.mxu0 0.0
      %3162 = vmatpush1.msra.mxu0 0.0
      %3163 = vmatprep.subr.mxu0 0.0
      %3164 = vmatpush1.msra.mxu0 0.0
      %3165 = vmatprep.subr.mxu0 0.0
      %3166 = vmatpush1.msra.mxu0 0.0
      %3167 = vmatprep.subr.mxu0 0.0
      %3168 = vmatpush1.msra.mxu0 0.0
      %3169 = vmatprep.subr.mxu0 0.0
      %3170 = vmatpush1.msra.mxu0 0.0
      %3171 = vmatprep.subr.mxu0 0.0
      %3172 = vmatpush1.msra.mxu0 0.0
      %3173 = vmatprep.subr.mxu0 0.0
      %3174 = vmatpush1.msra.mxu0 0.0
      %3175 = vmatprep.subr.mxu0 0.0
      %3176 = vmatpush1.msra.mxu0 0.0
      %3177 = vmatprep.subr.mxu0 0.0
      %3178 = vmatpush1.msra.mxu0 0.0
      %3179 = vmatprep.subr.mxu0 0.0
      %3180 = vmatpush1.msra.mxu0 0.0
      %3181 = vmatprep.subr.mxu0 0.0
      %3182 = vmatpush1.msra.mxu0 0.0
      %3183 = vmatprep.subr.mxu0 0.0
      %3184 = vmatpush1.msra.mxu0 0.0
      %3185 = vmatprep.mubr.f32.mxu0 0.0
      %v3186 = vand.u32 %v2947, 4294901760
      %v3187 = vsub.f32 %v2947, %v3186
      %3188 = vmatmul.mubr.f32.gmra.mrb[0].mxu0 %v3187
      %v3189 = vpop.f32.mrb[0].mxu0
      %v3190 = vadd.f32 %v3112, %v3189
      %v3191 = vpop.f32.mrb[0].mxu0
      %3192 = vdwg.mxu0
      %3193 = vmatprep.subr.mxu0 0.0
      %v3194 = vand.u32 %v2448, 4294901760
      %3195 = vmatpush1.msra.mxu0 %v3194
      %3196 = vmatprep.subr.mxu0 0.0
      %v3197 = vand.u32 %v2450, 4294901760
      %3198 = vmatpush1.msra.mxu0 %v3197
      %3199 = vmatprep.subr.mxu0 0.0
      %v3200 = vand.u32 %v2949, 4294901760
      %3201 = vmatpush1.msra.mxu0 %v3200
      %3202 = vmatprep.subr.mxu0 0.0
      %3203 = vmatpush1.msra.mxu0 0.0
      %3204 = vmatprep.subr.mxu0 0.0
      %3205 = vmatpush1.msra.mxu0 0.0
      %3206 = vmatprep.subr.mxu0 0.0
      %3207 = vmatpush1.msra.mxu0 0.0
      %3208 = vmatprep.subr.mxu0 0.0
      %3209 = vmatpush1.msra.mxu0 0.0
      %3210 = vmatprep.subr.mxu0 0.0
      %3211 = vmatpush1.msra.mxu0 0.0
      %3212 = vmatprep.subr.mxu0 0.0
      %3213 = vmatpush1.msra.mxu0 0.0
      %3214 = vmatprep.subr.mxu0 0.0
      %3215 = vmatpush1.msra.mxu0 0.0
      %3216 = vmatprep.subr.mxu0 0.0
      %3217 = vmatpush1.msra.mxu0 0.0
      %3218 = vmatprep.subr.mxu0 0.0
      %3219 = vmatpush1.msra.mxu0 0.0
      %3220 = vmatprep.subr.mxu0 0.0
      %3221 = vmatpush1.msra.mxu0 0.0
      %3222 = vmatprep.subr.mxu0 0.0
      %3223 = vmatpush1.msra.mxu0 0.0
      %3224 = vmatprep.subr.mxu0 0.0
      %3225 = vmatpush1.msra.mxu0 0.0
      %3226 = vmatprep.subr.mxu0 0.0
      %3227 = vmatpush1.msra.mxu0 0.0
      %3228 = vmatprep.subr.mxu0 0.0
      %3229 = vmatpush1.msra.mxu0 0.0
      %3230 = vmatprep.subr.mxu0 0.0
      %3231 = vmatpush1.msra.mxu0 0.0
      %3232 = vmatprep.subr.mxu0 0.0
      %3233 = vmatpush1.msra.mxu0 0.0
      %3234 = vmatprep.subr.mxu0 0.0
      %3235 = vmatpush1.msra.mxu0 0.0
      %3236 = vmatprep.subr.mxu0 0.0
      %3237 = vmatpush1.msra.mxu0 0.0
      %3238 = vmatprep.subr.mxu0 0.0
      %3239 = vmatpush1.msra.mxu0 0.0
      %3240 = vmatprep.subr.mxu0 0.0
      %3241 = vmatpush1.msra.mxu0 0.0
      %3242 = vmatprep.subr.mxu0 0.0
      %3243 = vmatpush1.msra.mxu0 0.0
      %3244 = vmatprep.subr.mxu0 0.0
      %3245 = vmatpush1.msra.mxu0 0.0
      %3246 = vmatprep.subr.mxu0 0.0
      %3247 = vmatpush1.msra.mxu0 0.0
      %3248 = vmatprep.subr.mxu0 0.0
      %3249 = vmatpush1.msra.mxu0 0.0
      %3250 = vmatprep.subr.mxu0 0.0
      %3251 = vmatpush1.msra.mxu0 0.0
      %3252 = vmatprep.subr.mxu0 0.0
      %3253 = vmatpush1.msra.mxu0 0.0
      %3254 = vmatprep.subr.mxu0 0.0
      %3255 = vmatpush1.msra.mxu0 0.0
      %3256 = vmatprep.subr.mxu0 0.0
      %3257 = vmatpush1.msra.mxu0 0.0
      %3258 = vmatprep.subr.mxu0 0.0
      %3259 = vmatpush1.msra.mxu0 0.0
      %3260 = vmatprep.mubr.f32.mxu0 0.0
      %v3261 = vand.u32 %v2947, 4294901760
      %v3262 = vsub.f32 %v2947, %v3261
      %v3263 = vand.u32 %v3262, 4294901760
      %3264 = vmatmul.mubr.f32.gmra.mrb[0].mxu0 %v3263
      %v3265 = vpop.f32.mrb[0].mxu0
      %v3266 = vadd.f32 %v3190, %v3265
      %v3267 = vpop.f32.mrb[0].mxu0
      %3268 = vdwg.mxu0
      %3269 = vmatprep.subr.mxu0 0.0
      %v3270 = vand.u32 %v2448, 4294901760
      %v3271 = vsub.f32 %v2448, %v3270
      %v3272 = vand.u32 %v3271, 4294901760
      %3273 = vmatpush1.msra.mxu0 %v3272
      %3274 = vmatprep.subr.mxu0 0.0
      %v3275 = vand.u32 %v2450, 4294901760
      %v3276 = vsub.f32 %v2450, %v3275
      %v3277 = vand.u32 %v3276, 4294901760
      %3278 = vmatpush1.msra.mxu0 %v3277
      %3279 = vmatprep.subr.mxu0 0.0
      %v3280 = vand.u32 %v2949, 4294901760
      %v3281 = vsub.f32 %v2949, %v3280
      %v3282 = vand.u32 %v3281, 4294901760
      %3283 = vmatpush1.msra.mxu0 %v3282
      %3284 = vmatprep.subr.mxu0 0.0
      %3285 = vmatpush1.msra.mxu0 0.0
      %3286 = vmatprep.subr.mxu0 0.0
      %3287 = vmatpush1.msra.mxu0 0.0
      %3288 = vmatprep.subr.mxu0 0.0
      %3289 = vmatpush1.msra.mxu0 0.0
      %3290 = vmatprep.subr.mxu0 0.0
      %3291 = vmatpush1.msra.mxu0 0.0
      %3292 = vmatprep.subr.mxu0 0.0
      %3293 = vmatpush1.msra.mxu0 0.0
      %3294 = vmatprep.subr.mxu0 0.0
      %3295 = vmatpush1.msra.mxu0 0.0
      %3296 = vmatprep.subr.mxu0 0.0
      %3297 = vmatpush1.msra.mxu0 0.0
      %3298 = vmatprep.subr.mxu0 0.0
      %3299 = vmatpush1.msra.mxu0 0.0
      %3300 = vmatprep.subr.mxu0 0.0
      %3301 = vmatpush1.msra.mxu0 0.0
      %3302 = vmatprep.subr.mxu0 0.0
      %3303 = vmatpush1.msra.mxu0 0.0
      %3304 = vmatprep.subr.mxu0 0.0
      %3305 = vmatpush1.msra.mxu0 0.0
      %3306 = vmatprep.subr.mxu0 0.0
      %3307 = vmatpush1.msra.mxu0 0.0
      %3308 = vmatprep.subr.mxu0 0.0
      %3309 = vmatpush1.msra.mxu0 0.0
      %3310 = vmatprep.subr.mxu0 0.0
      %3311 = vmatpush1.msra.mxu0 0.0
      %3312 = vmatprep.subr.mxu0 0.0
      %3313 = vmatpush1.msra.mxu0 0.0
      %3314 = vmatprep.subr.mxu0 0.0
      %3315 = vmatpush1.msra.mxu0 0.0
      %3316 = vmatprep.subr.mxu0 0.0
      %3317 = vmatpush1.msra.mxu0 0.0
      %3318 = vmatprep.subr.mxu0 0.0
      %3319 = vmatpush1.msra.mxu0 0.0
      %3320 = vmatprep.subr.mxu0 0.0
      %3321 = vmatpush1.msra.mxu0 0.0
      %3322 = vmatprep.subr.mxu0 0.0
      %3323 = vmatpush1.msra.mxu0 0.0
      %3324 = vmatprep.subr.mxu0 0.0
      %3325 = vmatpush1.msra.mxu0 0.0
      %3326 = vmatprep.subr.mxu0 0.0
      %3327 = vmatpush1.msra.mxu0 0.0
      %3328 = vmatprep.subr.mxu0 0.0
      %3329 = vmatpush1.msra.mxu0 0.0
      %3330 = vmatprep.subr.mxu0 0.0
      %3331 = vmatpush1.msra.mxu0 0.0
      %3332 = vmatprep.subr.mxu0 0.0
      %3333 = vmatpush1.msra.mxu0 0.0
      %3334 = vmatprep.subr.mxu0 0.0
      %3335 = vmatpush1.msra.mxu0 0.0
      %3336 = vmatprep.subr.mxu0 0.0
      %3337 = vmatpush1.msra.mxu0 0.0
      %3338 = vmatprep.subr.mxu0 0.0
      %3339 = vmatpush1.msra.mxu0 0.0
      %3340 = vmatprep.subr.mxu0 0.0
      %3341 = vmatpush1.msra.mxu0 0.0
      %3342 = vmatprep.mubr.f32.mxu0 0.0
      %v3343 = vand.u32 %v2947, 4294901760
      %3344 = vmatmul.mubr.f32.gmra.mrb[0].mxu0 %v3343
      %v3345 = vpop.f32.mrb[0].mxu0
      %v3346 = vadd.f32 %v3266, %v3345
      %v3347 = vpop.f32.mrb[0].mxu0
      %3348 = vdwg.mxu0
      %3349 = vmatprep.subr.mxu0 0.0
      %v3350 = vand.u32 %v2448, 4294901760
      %3351 = vmatpush1.msra.mxu0 %v3350
      %3352 = vmatprep.subr.mxu0 0.0
      %v3353 = vand.u32 %v2450, 4294901760
      %3354 = vmatpush1.msra.mxu0 %v3353
      %3355 = vmatprep.subr.mxu0 0.0
      %v3356 = vand.u32 %v2949, 4294901760
      %3357 = vmatpush1.msra.mxu0 %v3356
      %3358 = vmatprep.subr.mxu0 0.0
      %3359 = vmatpush1.msra.mxu0 0.0
      %3360 = vmatprep.subr.mxu0 0.0
      %3361 = vmatpush1.msra.mxu0 0.0
      %3362 = vmatprep.subr.mxu0 0.0
      %3363 = vmatpush1.msra.mxu0 0.0
      %3364 = vmatprep.subr.mxu0 0.0
      %3365 = vmatpush1.msra.mxu0 0.0
      %3366 = vmatprep.subr.mxu0 0.0
      %3367 = vmatpush1.msra.mxu0 0.0
      %3368 = vmatprep.subr.mxu0 0.0
      %3369 = vmatpush1.msra.mxu0 0.0
      %3370 = vmatprep.subr.mxu0 0.0
      %3371 = vmatpush1.msra.mxu0 0.0
      %3372 = vmatprep.subr.mxu0 0.0
      %3373 = vmatpush1.msra.mxu0 0.0
      %3374 = vmatprep.subr.mxu0 0.0
      %3375 = vmatpush1.msra.mxu0 0.0
      %3376 = vmatprep.subr.mxu0 0.0
      %3377 = vmatpush1.msra.mxu0 0.0
      %3378 = vmatprep.subr.mxu0 0.0
      %3379 = vmatpush1.msra.mxu0 0.0
      %3380 = vmatprep.subr.mxu0 0.0
      %3381 = vmatpush1.msra.mxu0 0.0
      %3382 = vmatprep.subr.mxu0 0.0
      %3383 = vmatpush1.msra.mxu0 0.0
      %3384 = vmatprep.subr.mxu0 0.0
      %3385 = vmatpush1.msra.mxu0 0.0
      %3386 = vmatprep.subr.mxu0 0.0
      %3387 = vmatpush1.msra.mxu0 0.0
      %3388 = vmatprep.subr.mxu0 0.0
      %3389 = vmatpush1.msra.mxu0 0.0
      %3390 = vmatprep.subr.mxu0 0.0
      %3391 = vmatpush1.msra.mxu0 0.0
      %3392 = vmatprep.subr.mxu0 0.0
      %3393 = vmatpush1.msra.mxu0 0.0
      %3394 = vmatprep.subr.mxu0 0.0
      %3395 = vmatpush1.msra.mxu0 0.0
      %3396 = vmatprep.subr.mxu0 0.0
      %3397 = vmatpush1.msra.mxu0 0.0
      %3398 = vmatprep.subr.mxu0 0.0
      %3399 = vmatpush1.msra.mxu0 0.0
      %3400 = vmatprep.subr.mxu0 0.0
      %3401 = vmatpush1.msra.mxu0 0.0
      %3402 = vmatprep.subr.mxu0 0.0
      %3403 = vmatpush1.msra.mxu0 0.0
      %3404 = vmatprep.subr.mxu0 0.0
      %3405 = vmatpush1.msra.mxu0 0.0
      %3406 = vmatprep.subr.mxu0 0.0
      %3407 = vmatpush1.msra.mxu0 0.0
      %3408 = vmatprep.subr.mxu0 0.0
      %3409 = vmatpush1.msra.mxu0 0.0
      %3410 = vmatprep.subr.mxu0 0.0
      %3411 = vmatpush1.msra.mxu0 0.0
      %3412 = vmatprep.subr.mxu0 0.0
      %3413 = vmatpush1.msra.mxu0 0.0
      %3414 = vmatprep.subr.mxu0 0.0
      %3415 = vmatpush1.msra.mxu0 0.0
      %3416 = vmatprep.mubr.f32.mxu0 0.0
      %v3417 = vand.u32 %v2947, 4294901760
      %3418 = vmatmul.mubr.f32.gmra.mrb[0].mxu0 %v3417
      %v3419 = vpop.f32.mrb[0].mxu0
      %v3420 = vadd.f32 %v3346, %v3419
      %v3421 = vpop.f32.mrb[0].mxu0
      %3422 = vdwg.mxu0
      %s3423 = scalar_lea.vmem %s3, 4
      %v3424 = vld [vmem:[%s3423] sm:$0x3]
      %3425 = vrot.lane.b32.xlu0 %v2448, 126
      %v3426 = vpop.permute.xlu0 %3425
      %3427 = vrot.lane.b32.xlu0 %v2450, 126
      %v3428 = vpop.permute.xlu0 %3427
      %3429 = vrot.lane.b32.xlu0 %v2452, 126
      %v3430 = vpop.permute.xlu0 %3429
      %v3434 = vsel %vm2467, %v3424, 0
      %v3436 = vsel %vm2471, %v3430, 0
      %3438 = vmatprep.subr.mxu0 0.0
      %v3439 = vand.u32 %v3426, 4294901760
      %3440 = vmatpush1.msra.mxu0 %v3439
      %3441 = vmatprep.subr.mxu0 0.0
      %v3442 = vand.u32 %v3428, 4294901760
      %3443 = vmatpush1.msra.mxu0 %v3442
      %3444 = vmatprep.subr.mxu0 0.0
      %v3445 = vand.u32 %v3436, 4294901760
      %3446 = vmatpush1.msra.mxu0 %v3445
      %3447 = vmatprep.subr.mxu0 0.0
      %3448 = vmatpush1.msra.mxu0 0.0
      %3449 = vmatprep.subr.mxu0 0.0
      %3450 = vmatpush1.msra.mxu0 0.0
      %3451 = vmatprep.subr.mxu0 0.0
      %3452 = vmatpush1.msra.mxu0 0.0
      %3453 = vmatprep.subr.mxu0 0.0
      %3454 = vmatpush1.msra.mxu0 0.0
      %3455 = vmatprep.subr.mxu0 0.0
      %3456 = vmatpush1.msra.mxu0 0.0
      %3457 = vmatprep.subr.mxu0 0.0
      %3458 = vmatpush1.msra.mxu0 0.0
      %3459 = vmatprep.subr.mxu0 0.0
      %3460 = vmatpush1.msra.mxu0 0.0
      %3461 = vmatprep.subr.mxu0 0.0
      %3462 = vmatpush1.msra.mxu0 0.0
      %3463 = vmatprep.subr.mxu0 0.0
      %3464 = vmatpush1.msra.mxu0 0.0
      %3465 = vmatprep.subr.mxu0 0.0
      %3466 = vmatpush1.msra.mxu0 0.0
      %3467 = vmatprep.subr.mxu0 0.0
      %3468 = vmatpush1.msra.mxu0 0.0
      %3469 = vmatprep.subr.mxu0 0.0
      %3470 = vmatpush1.msra.mxu0 0.0
      %3471 = vmatprep.subr.mxu0 0.0
      %3472 = vmatpush1.msra.mxu0 0.0
      %3473 = vmatprep.subr.mxu0 0.0
      %3474 = vmatpush1.msra.mxu0 0.0
      %3475 = vmatprep.subr.mxu0 0.0
      %3476 = vmatpush1.msra.mxu0 0.0
      %3477 = vmatprep.subr.mxu0 0.0
      %3478 = vmatpush1.msra.mxu0 0.0
      %3479 = vmatprep.subr.mxu0 0.0
      %3480 = vmatpush1.msra.mxu0 0.0
      %3481 = vmatprep.subr.mxu0 0.0
      %3482 = vmatpush1.msra.mxu0 0.0
      %3483 = vmatprep.subr.mxu0 0.0
      %3484 = vmatpush1.msra.mxu0 0.0
      %3485 = vmatprep.subr.mxu0 0.0
      %3486 = vmatpush1.msra.mxu0 0.0
      %3487 = vmatprep.subr.mxu0 0.0
      %3488 = vmatpush1.msra.mxu0 0.0
      %3489 = vmatprep.subr.mxu0 0.0
      %3490 = vmatpush1.msra.mxu0 0.0
      %3491 = vmatprep.subr.mxu0 0.0
      %3492 = vmatpush1.msra.mxu0 0.0
      %3493 = vmatprep.subr.mxu0 0.0
      %3494 = vmatpush1.msra.mxu0 0.0
      %3495 = vmatprep.subr.mxu0 0.0
      %3496 = vmatpush1.msra.mxu0 0.0
      %3497 = vmatprep.subr.mxu0 0.0
      %3498 = vmatpush1.msra.mxu0 0.0
      %3499 = vmatprep.subr.mxu0 0.0
      %3500 = vmatpush1.msra.mxu0 0.0
      %3501 = vmatprep.subr.mxu0 0.0
      %3502 = vmatpush1.msra.mxu0 0.0
      %3503 = vmatprep.subr.mxu0 0.0
      %3504 = vmatpush1.msra.mxu0 0.0
      %3505 = vmatprep.mubr.f32.mxu0 0.0
      %v3506 = vand.u32 %v3434, 4294901760
      %v3507 = vsub.f32 %v3434, %v3506
      %v3508 = vand.u32 %v3507, 4294901760
      %v3509 = vsub.f32 %v3507, %v3508
      %v3510 = vand.u32 %v3509, 4294901760
      %3511 = vmatmul.mubr.f32.gmra.mrb[0].mxu0 %v3510
      %v3512 = vpop.f32.mrb[0].mxu0
      %v3513 = vadd.f32 0.0, %v3512
      %v3514 = vpop.f32.mrb[0].mxu0
      %3515 = vdwg.mxu0
      %3516 = vmatprep.subr.mxu0 0.0
      %v3517 = vand.u32 %v3426, 4294901760
      %v3518 = vsub.f32 %v3426, %v3517
      %v3519 = vand.u32 %v3518, 4294901760
      %v3520 = vsub.f32 %v3518, %v3519
      %v3521 = vand.u32 %v3520, 4294901760
      %3522 = vmatpush1.msra.mxu0 %v3521
      %3523 = vmatprep.subr.mxu0 0.0
      %v3524 = vand.u32 %v3428, 4294901760
      %v3525 = vsub.f32 %v3428, %v3524
      %v3526 = vand.u32 %v3525, 4294901760
      %v3527 = vsub.f32 %v3525, %v3526
      %v3528 = vand.u32 %v3527, 4294901760
      %3529 = vmatpush1.msra.mxu0 %v3528
      %3530 = vmatprep.subr.mxu0 0.0
      %v3531 = vand.u32 %v3436, 4294901760
      %v3532 = vsub.f32 %v3436, %v3531
      %v3533 = vand.u32 %v3532, 4294901760
      %v3534 = vsub.f32 %v3532, %v3533
      %v3535 = vand.u32 %v3534, 4294901760
      %3536 = vmatpush1.msra.mxu0 %v3535
      %3537 = vmatprep.subr.mxu0 0.0
      %3538 = vmatpush1.msra.mxu0 0.0
      %3539 = vmatprep.subr.mxu0 0.0
      %3540 = vmatpush1.msra.mxu0 0.0
      %3541 = vmatprep.subr.mxu0 0.0
      %3542 = vmatpush1.msra.mxu0 0.0
      %3543 = vmatprep.subr.mxu0 0.0
      %3544 = vmatpush1.msra.mxu0 0.0
      %3545 = vmatprep.subr.mxu0 0.0
      %3546 = vmatpush1.msra.mxu0 0.0
      %3547 = vmatprep.subr.mxu0 0.0
      %3548 = vmatpush1.msra.mxu0 0.0
      %3549 = vmatprep.subr.mxu0 0.0
      %3550 = vmatpush1.msra.mxu0 0.0
      %3551 = vmatprep.subr.mxu0 0.0
      %3552 = vmatpush1.msra.mxu0 0.0
      %3553 = vmatprep.subr.mxu0 0.0
      %3554 = vmatpush1.msra.mxu0 0.0
      %3555 = vmatprep.subr.mxu0 0.0
      %3556 = vmatpush1.msra.mxu0 0.0
      %3557 = vmatprep.subr.mxu0 0.0
      %3558 = vmatpush1.msra.mxu0 0.0
      %3559 = vmatprep.subr.mxu0 0.0
      %3560 = vmatpush1.msra.mxu0 0.0
      %3561 = vmatprep.subr.mxu0 0.0
      %3562 = vmatpush1.msra.mxu0 0.0
      %3563 = vmatprep.subr.mxu0 0.0
      %3564 = vmatpush1.msra.mxu0 0.0
      %3565 = vmatprep.subr.mxu0 0.0
      %3566 = vmatpush1.msra.mxu0 0.0
      %3567 = vmatprep.subr.mxu0 0.0
      %3568 = vmatpush1.msra.mxu0 0.0
      %3569 = vmatprep.subr.mxu0 0.0
      %3570 = vmatpush1.msra.mxu0 0.0
      %3571 = vmatprep.subr.mxu0 0.0
      %3572 = vmatpush1.msra.mxu0 0.0
      %3573 = vmatprep.subr.mxu0 0.0
      %3574 = vmatpush1.msra.mxu0 0.0
      %3575 = vmatprep.subr.mxu0 0.0
      %3576 = vmatpush1.msra.mxu0 0.0
      %3577 = vmatprep.subr.mxu0 0.0
      %3578 = vmatpush1.msra.mxu0 0.0
      %3579 = vmatprep.subr.mxu0 0.0
      %3580 = vmatpush1.msra.mxu0 0.0
      %3581 = vmatprep.subr.mxu0 0.0
      %3582 = vmatpush1.msra.mxu0 0.0
      %3583 = vmatprep.subr.mxu0 0.0
      %3584 = vmatpush1.msra.mxu0 0.0
      %3585 = vmatprep.subr.mxu0 0.0
      %3586 = vmatpush1.msra.mxu0 0.0
      %3587 = vmatprep.subr.mxu0 0.0
      %3588 = vmatpush1.msra.mxu0 0.0
      %3589 = vmatprep.subr.mxu0 0.0
      %3590 = vmatpush1.msra.mxu0 0.0
      %3591 = vmatprep.subr.mxu0 0.0
      %3592 = vmatpush1.msra.mxu0 0.0
      %3593 = vmatprep.subr.mxu0 0.0
      %3594 = vmatpush1.msra.mxu0 0.0
      %3595 = vmatprep.mubr.f32.mxu0 0.0
      %v3596 = vand.u32 %v3434, 4294901760
      %3597 = vmatmul.mubr.f32.gmra.mrb[0].mxu0 %v3596
      %v3598 = vpop.f32.mrb[0].mxu0
      %v3599 = vadd.f32 %v3513, %v3598
      %v3600 = vpop.f32.mrb[0].mxu0
      %3601 = vdwg.mxu0
      %3602 = vmatprep.subr.mxu0 0.0
      %v3603 = vand.u32 %v3426, 4294901760
      %v3604 = vsub.f32 %v3426, %v3603
      %3605 = vmatpush1.msra.mxu0 %v3604
      %3606 = vmatprep.subr.mxu0 0.0
      %v3607 = vand.u32 %v3428, 4294901760
      %v3608 = vsub.f32 %v3428, %v3607
      %3609 = vmatpush1.msra.mxu0 %v3608
      %3610 = vmatprep.subr.mxu0 0.0
      %v3611 = vand.u32 %v3436, 4294901760
      %v3612 = vsub.f32 %v3436, %v3611
      %3613 = vmatpush1.msra.mxu0 %v3612
      %3614 = vmatprep.subr.mxu0 0.0
      %3615 = vmatpush1.msra.mxu0 0.0
      %3616 = vmatprep.subr.mxu0 0.0
      %3617 = vmatpush1.msra.mxu0 0.0
      %3618 = vmatprep.subr.mxu0 0.0
      %3619 = vmatpush1.msra.mxu0 0.0
      %3620 = vmatprep.subr.mxu0 0.0
      %3621 = vmatpush1.msra.mxu0 0.0
      %3622 = vmatprep.subr.mxu0 0.0
      %3623 = vmatpush1.msra.mxu0 0.0
      %3624 = vmatprep.subr.mxu0 0.0
      %3625 = vmatpush1.msra.mxu0 0.0
      %3626 = vmatprep.subr.mxu0 0.0
      %3627 = vmatpush1.msra.mxu0 0.0
      %3628 = vmatprep.subr.mxu0 0.0
      %3629 = vmatpush1.msra.mxu0 0.0
      %3630 = vmatprep.subr.mxu0 0.0
      %3631 = vmatpush1.msra.mxu0 0.0
      %3632 = vmatprep.subr.mxu0 0.0
      %3633 = vmatpush1.msra.mxu0 0.0
      %3634 = vmatprep.subr.mxu0 0.0
      %3635 = vmatpush1.msra.mxu0 0.0
      %3636 = vmatprep.subr.mxu0 0.0
      %3637 = vmatpush1.msra.mxu0 0.0
      %3638 = vmatprep.subr.mxu0 0.0
      %3639 = vmatpush1.msra.mxu0 0.0
      %3640 = vmatprep.subr.mxu0 0.0
      %3641 = vmatpush1.msra.mxu0 0.0
      %3642 = vmatprep.subr.mxu0 0.0
      %3643 = vmatpush1.msra.mxu0 0.0
      %3644 = vmatprep.subr.mxu0 0.0
      %3645 = vmatpush1.msra.mxu0 0.0
      %3646 = vmatprep.subr.mxu0 0.0
      %3647 = vmatpush1.msra.mxu0 0.0
      %3648 = vmatprep.subr.mxu0 0.0
      %3649 = vmatpush1.msra.mxu0 0.0
      %3650 = vmatprep.subr.mxu0 0.0
      %3651 = vmatpush1.msra.mxu0 0.0
      %3652 = vmatprep.subr.mxu0 0.0
      %3653 = vmatpush1.msra.mxu0 0.0
      %3654 = vmatprep.subr.mxu0 0.0
      %3655 = vmatpush1.msra.mxu0 0.0
      %3656 = vmatprep.subr.mxu0 0.0
      %3657 = vmatpush1.msra.mxu0 0.0
      %3658 = vmatprep.subr.mxu0 0.0
      %3659 = vmatpush1.msra.mxu0 0.0
      %3660 = vmatprep.subr.mxu0 0.0
      %3661 = vmatpush1.msra.mxu0 0.0
      %3662 = vmatprep.subr.mxu0 0.0
      %3663 = vmatpush1.msra.mxu0 0.0
      %3664 = vmatprep.subr.mxu0 0.0
      %3665 = vmatpush1.msra.mxu0 0.0
      %3666 = vmatprep.subr.mxu0 0.0
      %3667 = vmatpush1.msra.mxu0 0.0
      %3668 = vmatprep.subr.mxu0 0.0
      %3669 = vmatpush1.msra.mxu0 0.0
      %3670 = vmatprep.subr.mxu0 0.0
      %3671 = vmatpush1.msra.mxu0 0.0
      %3672 = vmatprep.mubr.f32.mxu0 0.0
      %v3673 = vand.u32 %v3434, 4294901760
      %v3674 = vsub.f32 %v3434, %v3673
      %3675 = vmatmul.mubr.f32.gmra.mrb[0].mxu0 %v3674
      %v3676 = vpop.f32.mrb[0].mxu0
      %v3677 = vadd.f32 %v3599, %v3676
      %v3678 = vpop.f32.mrb[0].mxu0
      %3679 = vdwg.mxu0
      %3680 = vmatprep.subr.mxu0 0.0
      %v3681 = vand.u32 %v3426, 4294901760
      %3682 = vmatpush1.msra.mxu0 %v3681
      %3683 = vmatprep.subr.mxu0 0.0
      %v3684 = vand.u32 %v3428, 4294901760
      %3685 = vmatpush1.msra.mxu0 %v3684
      %3686 = vmatprep.subr.mxu0 0.0
      %v3687 = vand.u32 %v3436, 4294901760
      %3688 = vmatpush1.msra.mxu0 %v3687
      %3689 = vmatprep.subr.mxu0 0.0
      %3690 = vmatpush1.msra.mxu0 0.0
      %3691 = vmatprep.subr.mxu0 0.0
      %3692 = vmatpush1.msra.mxu0 0.0
      %3693 = vmatprep.subr.mxu0 0.0
      %3694 = vmatpush1.msra.mxu0 0.0
      %3695 = vmatprep.subr.mxu0 0.0
      %3696 = vmatpush1.msra.mxu0 0.0
      %3697 = vmatprep.subr.mxu0 0.0
      %3698 = vmatpush1.msra.mxu0 0.0
      %3699 = vmatprep.subr.mxu0 0.0
      %3700 = vmatpush1.msra.mxu0 0.0
      %3701 = vmatprep.subr.mxu0 0.0
      %3702 = vmatpush1.msra.mxu0 0.0
      %3703 = vmatprep.subr.mxu0 0.0
      %3704 = vmatpush1.msra.mxu0 0.0
      %3705 = vmatprep.subr.mxu0 0.0
      %3706 = vmatpush1.msra.mxu0 0.0
      %3707 = vmatprep.subr.mxu0 0.0
      %3708 = vmatpush1.msra.mxu0 0.0
      %3709 = vmatprep.subr.mxu0 0.0
      %3710 = vmatpush1.msra.mxu0 0.0
      %3711 = vmatprep.subr.mxu0 0.0
      %3712 = vmatpush1.msra.mxu0 0.0
      %3713 = vmatprep.subr.mxu0 0.0
      %3714 = vmatpush1.msra.mxu0 0.0
      %3715 = vmatprep.subr.mxu0 0.0
      %3716 = vmatpush1.msra.mxu0 0.0
      %3717 = vmatprep.subr.mxu0 0.0
      %3718 = vmatpush1.msra.mxu0 0.0
      %3719 = vmatprep.subr.mxu0 0.0
      %3720 = vmatpush1.msra.mxu0 0.0
      %3721 = vmatprep.subr.mxu0 0.0
      %3722 = vmatpush1.msra.mxu0 0.0
      %3723 = vmatprep.subr.mxu0 0.0
      %3724 = vmatpush1.msra.mxu0 0.0
      %3725 = vmatprep.subr.mxu0 0.0
      %3726 = vmatpush1.msra.mxu0 0.0
      %3727 = vmatprep.subr.mxu0 0.0
      %3728 = vmatpush1.msra.mxu0 0.0
      %3729 = vmatprep.subr.mxu0 0.0
      %3730 = vmatpush1.msra.mxu0 0.0
      %3731 = vmatprep.subr.mxu0 0.0
      %3732 = vmatpush1.msra.mxu0 0.0
      %3733 = vmatprep.subr.mxu0 0.0
      %3734 = vmatpush1.msra.mxu0 0.0
      %3735 = vmatprep.subr.mxu0 0.0
      %3736 = vmatpush1.msra.mxu0 0.0
      %3737 = vmatprep.subr.mxu0 0.0
      %3738 = vmatpush1.msra.mxu0 0.0
      %3739 = vmatprep.subr.mxu0 0.0
      %3740 = vmatpush1.msra.mxu0 0.0
      %3741 = vmatprep.subr.mxu0 0.0
      %3742 = vmatpush1.msra.mxu0 0.0
      %3743 = vmatprep.subr.mxu0 0.0
      %3744 = vmatpush1.msra.mxu0 0.0
      %3745 = vmatprep.subr.mxu0 0.0
      %3746 = vmatpush1.msra.mxu0 0.0
      %3747 = vmatprep.mubr.f32.mxu0 0.0
      %v3748 = vand.u32 %v3434, 4294901760
      %v3749 = vsub.f32 %v3434, %v3748
      %v3750 = vand.u32 %v3749, 4294901760
      %3751 = vmatmul.mubr.f32.gmra.mrb[0].mxu0 %v3750
      %v3752 = vpop.f32.mrb[0].mxu0
      %v3753 = vadd.f32 %v3677, %v3752
      %v3754 = vpop.f32.mrb[0].mxu0
      %3755 = vdwg.mxu0
      %3756 = vmatprep.subr.mxu0 0.0
      %v3757 = vand.u32 %v3426, 4294901760
      %v3758 = vsub.f32 %v3426, %v3757
      %v3759 = vand.u32 %v3758, 4294901760
      %3760 = vmatpush1.msra.mxu0 %v3759
      %3761 = vmatprep.subr.mxu0 0.0
      %v3762 = vand.u32 %v3428, 4294901760
      %v3763 = vsub.f32 %v3428, %v3762
      %v3764 = vand.u32 %v3763, 4294901760
      %3765 = vmatpush1.msra.mxu0 %v3764
      %3766 = vmatprep.subr.mxu0 0.0
      %v3767 = vand.u32 %v3436, 4294901760
      %v3768 = vsub.f32 %v3436, %v3767
      %v3769 = vand.u32 %v3768, 4294901760
      %3770 = vmatpush1.msra.mxu0 %v3769
      %3771 = vmatprep.subr.mxu0 0.0
      %3772 = vmatpush1.msra.mxu0 0.0
      %3773 = vmatprep.subr.mxu0 0.0
      %3774 = vmatpush1.msra.mxu0 0.0
      %3775 = vmatprep.subr.mxu0 0.0
      %3776 = vmatpush1.msra.mxu0 0.0
      %3777 = vmatprep.subr.mxu0 0.0
      %3778 = vmatpush1.msra.mxu0 0.0
      %3779 = vmatprep.subr.mxu0 0.0
      %3780 = vmatpush1.msra.mxu0 0.0
      %3781 = vmatprep.subr.mxu0 0.0
      %3782 = vmatpush1.msra.mxu0 0.0
      %3783 = vmatprep.subr.mxu0 0.0
      %3784 = vmatpush1.msra.mxu0 0.0
      %3785 = vmatprep.subr.mxu0 0.0
      %3786 = vmatpush1.msra.mxu0 0.0
      %3787 = vmatprep.subr.mxu0 0.0
      %3788 = vmatpush1.msra.mxu0 0.0
      %3789 = vmatprep.subr.mxu0 0.0
      %3790 = vmatpush1.msra.mxu0 0.0
      %3791 = vmatprep.subr.mxu0 0.0
      %3792 = vmatpush1.msra.mxu0 0.0
      %3793 = vmatprep.subr.mxu0 0.0
      %3794 = vmatpush1.msra.mxu0 0.0
      %3795 = vmatprep.subr.mxu0 0.0
      %3796 = vmatpush1.msra.mxu0 0.0
      %3797 = vmatprep.subr.mxu0 0.0
      %3798 = vmatpush1.msra.mxu0 0.0
      %3799 = vmatprep.subr.mxu0 0.0
      %3800 = vmatpush1.msra.mxu0 0.0
      %3801 = vmatprep.subr.mxu0 0.0
      %3802 = vmatpush1.msra.mxu0 0.0
      %3803 = vmatprep.subr.mxu0 0.0
      %3804 = vmatpush1.msra.mxu0 0.0
      %3805 = vmatprep.subr.mxu0 0.0
      %3806 = vmatpush1.msra.mxu0 0.0
      %3807 = vmatprep.subr.mxu0 0.0
      %3808 = vmatpush1.msra.mxu0 0.0
      %3809 = vmatprep.subr.mxu0 0.0
      %3810 = vmatpush1.msra.mxu0 0.0
      %3811 = vmatprep.subr.mxu0 0.0
      %3812 = vmatpush1.msra.mxu0 0.0
      %3813 = vmatprep.subr.mxu0 0.0
      %3814 = vmatpush1.msra.mxu0 0.0
      %3815 = vmatprep.subr.mxu0 0.0
      %3816 = vmatpush1.msra.mxu0 0.0
      %3817 = vmatprep.subr.mxu0 0.0
      %3818 = vmatpush1.msra.mxu0 0.0
      %3819 = vmatprep.subr.mxu0 0.0
      %3820 = vmatpush1.msra.mxu0 0.0
      %3821 = vmatprep.subr.mxu0 0.0
      %3822 = vmatpush1.msra.mxu0 0.0
      %3823 = vmatprep.subr.mxu0 0.0
      %3824 = vmatpush1.msra.mxu0 0.0
      %3825 = vmatprep.subr.mxu0 0.0
      %3826 = vmatpush1.msra.mxu0 0.0
      %3827 = vmatprep.subr.mxu0 0.0
      %3828 = vmatpush1.msra.mxu0 0.0
      %3829 = vmatprep.mubr.f32.mxu0 0.0
      %v3830 = vand.u32 %v3434, 4294901760
      %3831 = vmatmul.mubr.f32.gmra.mrb[0].mxu0 %v3830
      %v3832 = vpop.f32.mrb[0].mxu0
      %v3833 = vadd.f32 %v3753, %v3832
      %v3834 = vpop.f32.mrb[0].mxu0
      %3835 = vdwg.mxu0
      %3836 = vmatprep.subr.mxu0 0.0
      %v3837 = vand.u32 %v3426, 4294901760
      %3838 = vmatpush1.msra.mxu0 %v3837
      %3839 = vmatprep.subr.mxu0 0.0
      %v3840 = vand.u32 %v3428, 4294901760
      %3841 = vmatpush1.msra.mxu0 %v3840
      %3842 = vmatprep.subr.mxu0 0.0
      %v3843 = vand.u32 %v3436, 4294901760
      %3844 = vmatpush1.msra.mxu0 %v3843
      %3845 = vmatprep.subr.mxu0 0.0
      %3846 = vmatpush1.msra.mxu0 0.0
      %3847 = vmatprep.subr.mxu0 0.0
      %3848 = vmatpush1.msra.mxu0 0.0
      %3849 = vmatprep.subr.mxu0 0.0
      %3850 = vmatpush1.msra.mxu0 0.0
      %3851 = vmatprep.subr.mxu0 0.0
      %3852 = vmatpush1.msra.mxu0 0.0
      %3853 = vmatprep.subr.mxu0 0.0
      %3854 = vmatpush1.msra.mxu0 0.0
      %3855 = vmatprep.subr.mxu0 0.0
      %3856 = vmatpush1.msra.mxu0 0.0
      %3857 = vmatprep.subr.mxu0 0.0
      %3858 = vmatpush1.msra.mxu0 0.0
      %3859 = vmatprep.subr.mxu0 0.0
      %3860 = vmatpush1.msra.mxu0 0.0
      %3861 = vmatprep.subr.mxu0 0.0
      %3862 = vmatpush1.msra.mxu0 0.0
      %3863 = vmatprep.subr.mxu0 0.0
      %3864 = vmatpush1.msra.mxu0 0.0
      %3865 = vmatprep.subr.mxu0 0.0
      %3866 = vmatpush1.msra.mxu0 0.0
      %3867 = vmatprep.subr.mxu0 0.0
      %3868 = vmatpush1.msra.mxu0 0.0
      %3869 = vmatprep.subr.mxu0 0.0
      %3870 = vmatpush1.msra.mxu0 0.0
      %3871 = vmatprep.subr.mxu0 0.0
      %3872 = vmatpush1.msra.mxu0 0.0
      %3873 = vmatprep.subr.mxu0 0.0
      %3874 = vmatpush1.msra.mxu0 0.0
      %3875 = vmatprep.subr.mxu0 0.0
      %3876 = vmatpush1.msra.mxu0 0.0
      %3877 = vmatprep.subr.mxu0 0.0
      %3878 = vmatpush1.msra.mxu0 0.0
      %3879 = vmatprep.subr.mxu0 0.0
      %3880 = vmatpush1.msra.mxu0 0.0
      %3881 = vmatprep.subr.mxu0 0.0
      %3882 = vmatpush1.msra.mxu0 0.0
      %3883 = vmatprep.subr.mxu0 0.0
      %3884 = vmatpush1.msra.mxu0 0.0
      %3885 = vmatprep.subr.mxu0 0.0
      %3886 = vmatpush1.msra.mxu0 0.0
      %3887 = vmatprep.subr.mxu0 0.0
      %3888 = vmatpush1.msra.mxu0 0.0
      %3889 = vmatprep.subr.mxu0 0.0
      %3890 = vmatpush1.msra.mxu0 0.0
      %3891 = vmatprep.subr.mxu0 0.0
      %3892 = vmatpush1.msra.mxu0 0.0
      %3893 = vmatprep.subr.mxu0 0.0
      %3894 = vmatpush1.msra.mxu0 0.0
      %3895 = vmatprep.subr.mxu0 0.0
      %3896 = vmatpush1.msra.mxu0 0.0
      %3897 = vmatprep.subr.mxu0 0.0
      %3898 = vmatpush1.msra.mxu0 0.0
      %3899 = vmatprep.subr.mxu0 0.0
      %3900 = vmatpush1.msra.mxu0 0.0
      %3901 = vmatprep.subr.mxu0 0.0
      %3902 = vmatpush1.msra.mxu0 0.0
      %3903 = vmatprep.mubr.f32.mxu0 0.0
      %v3904 = vand.u32 %v3434, 4294901760
      %3905 = vmatmul.mubr.f32.gmra.mrb[0].mxu0 %v3904
      %v3906 = vpop.f32.mrb[0].mxu0
      %v3907 = vadd.f32 %v3833, %v3906
      %v3908 = vpop.f32.mrb[0].mxu0
      %3909 = vdwg.mxu0
      %v3910 = vadd.f32 %v3420, %v3907
      %s3911 = scalar_lea.vmem %s3, 6
      %v3912 = vld [vmem:[%s3911] sm:$0x3]
      %3913 = vrot.lane.b32.xlu0 %v2448, 125
      %v3914 = vpop.permute.xlu0 %3913
      %3915 = vrot.lane.b32.xlu0 %v2450, 125
      %v3916 = vpop.permute.xlu0 %3915
      %3917 = vrot.lane.b32.xlu0 %v2452, 125
      %v3918 = vpop.permute.xlu0 %3917
      %v3922 = vsel %vm2467, %v3912, 0
      %v3924 = vsel %vm2471, %v3918, 0
      %3926 = vmatprep.subr.mxu0 0.0
      %v3927 = vand.u32 %v3914, 4294901760
      %3928 = vmatpush1.msra.mxu0 %v3927
      %3929 = vmatprep.subr.mxu0 0.0
      %v3930 = vand.u32 %v3916, 4294901760
      %3931 = vmatpush1.msra.mxu0 %v3930
      %3932 = vmatprep.subr.mxu0 0.0
      %v3933 = vand.u32 %v3924, 4294901760
      %3934 = vmatpush1.msra.mxu0 %v3933
      %3935 = vmatprep.subr.mxu0 0.0
      %3936 = vmatpush1.msra.mxu0 0.0
      %3937 = vmatprep.subr.mxu0 0.0
      %3938 = vmatpush1.msra.mxu0 0.0
      %3939 = vmatprep.subr.mxu0 0.0
      %3940 = vmatpush1.msra.mxu0 0.0
      %3941 = vmatprep.subr.mxu0 0.0
      %3942 = vmatpush1.msra.mxu0 0.0
      %3943 = vmatprep.subr.mxu0 0.0
      %3944 = vmatpush1.msra.mxu0 0.0
      %3945 = vmatprep.subr.mxu0 0.0
      %3946 = vmatpush1.msra.mxu0 0.0
      %3947 = vmatprep.subr.mxu0 0.0
      %3948 = vmatpush1.msra.mxu0 0.0
      %3949 = vmatprep.subr.mxu0 0.0
      %3950 = vmatpush1.msra.mxu0 0.0
      %3951 = vmatprep.subr.mxu0 0.0
      %3952 = vmatpush1.msra.mxu0 0.0
      %3953 = vmatprep.subr.mxu0 0.0
      %3954 = vmatpush1.msra.mxu0 0.0
      %3955 = vmatprep.subr.mxu0 0.0
      %3956 = vmatpush1.msra.mxu0 0.0
      %3957 = vmatprep.subr.mxu0 0.0
      %3958 = vmatpush1.msra.mxu0 0.0
      %3959 = vmatprep.subr.mxu0 0.0
      %3960 = vmatpush1.msra.mxu0 0.0
      %3961 = vmatprep.subr.mxu0 0.0
      %3962 = vmatpush1.msra.mxu0 0.0
      %3963 = vmatprep.subr.mxu0 0.0
      %3964 = vmatpush1.msra.mxu0 0.0
      %3965 = vmatprep.subr.mxu0 0.0
      %3966 = vmatpush1.msra.mxu0 0.0
      %3967 = vmatprep.subr.mxu0 0.0
      %3968 = vmatpush1.msra.mxu0 0.0
      %3969 = vmatprep.subr.mxu0 0.0
      %3970 = vmatpush1.msra.mxu0 0.0
      %3971 = vmatprep.subr.mxu0 0.0
      %3972 = vmatpush1.msra.mxu0 0.0
      %3973 = vmatprep.subr.mxu0 0.0
      %3974 = vmatpush1.msra.mxu0 0.0
      %3975 = vmatprep.subr.mxu0 0.0
      %3976 = vmatpush1.msra.mxu0 0.0
      %3977 = vmatprep.subr.mxu0 0.0
      %3978 = vmatpush1.msra.mxu0 0.0
      %3979 = vmatprep.subr.mxu0 0.0
      %3980 = vmatpush1.msra.mxu0 0.0
      %3981 = vmatprep.subr.mxu0 0.0
      %3982 = vmatpush1.msra.mxu0 0.0
      %3983 = vmatprep.subr.mxu0 0.0
      %3984 = vmatpush1.msra.mxu0 0.0
      %3985 = vmatprep.subr.mxu0 0.0
      %3986 = vmatpush1.msra.mxu0 0.0
      %3987 = vmatprep.subr.mxu0 0.0
      %3988 = vmatpush1.msra.mxu0 0.0
      %3989 = vmatprep.subr.mxu0 0.0
      %3990 = vmatpush1.msra.mxu0 0.0
      %3991 = vmatprep.subr.mxu0 0.0
      %3992 = vmatpush1.msra.mxu0 0.0
      %3993 = vmatprep.mubr.f32.mxu0 0.0
      %v3994 = vand.u32 %v3922, 4294901760
      %v3995 = vsub.f32 %v3922, %v3994
      %v3996 = vand.u32 %v3995, 4294901760
      %v3997 = vsub.f32 %v3995, %v3996
      %v3998 = vand.u32 %v3997, 4294901760
      %3999 = vmatmul.mubr.f32.gmra.mrb[0].mxu0 %v3998
      %v4000 = vpop.f32.mrb[0].mxu0
      %v4001 = vadd.f32 0.0, %v4000
      %v4002 = vpop.f32.mrb[0].mxu0
      %4003 = vdwg.mxu0
      %4004 = vmatprep.subr.mxu0 0.0
      %v4005 = vand.u32 %v3914, 4294901760
      %v4006 = vsub.f32 %v3914, %v4005
      %v4007 = vand.u32 %v4006, 4294901760
      %v4008 = vsub.f32 %v4006, %v4007
      %v4009 = vand.u32 %v4008, 4294901760
      %4010 = vmatpush1.msra.mxu0 %v4009
      %4011 = vmatprep.subr.mxu0 0.0
      %v4012 = vand.u32 %v3916, 4294901760
      %v4013 = vsub.f32 %v3916, %v4012
      %v4014 = vand.u32 %v4013, 4294901760
      %v4015 = vsub.f32 %v4013, %v4014
      %v4016 = vand.u32 %v4015, 4294901760
      %4017 = vmatpush1.msra.mxu0 %v4016
      %4018 = vmatprep.subr.mxu0 0.0
      %v4019 = vand.u32 %v3924, 4294901760
      %v4020 = vsub.f32 %v3924, %v4019
      %v4021 = vand.u32 %v4020, 4294901760
      %v4022 = vsub.f32 %v4020, %v4021
      %v4023 = vand.u32 %v4022, 4294901760
      %4024 = vmatpush1.msra.mxu0 %v4023
      %4025 = vmatprep.subr.mxu0 0.0
      %4026 = vmatpush1.msra.mxu0 0.0
      %4027 = vmatprep.subr.mxu0 0.0
      %4028 = vmatpush1.msra.mxu0 0.0
      %4029 = vmatprep.subr.mxu0 0.0
      %4030 = vmatpush1.msra.mxu0 0.0
      %4031 = vmatprep.subr.mxu0 0.0
      %4032 = vmatpush1.msra.mxu0 0.0
      %4033 = vmatprep.subr.mxu0 0.0
      %4034 = vmatpush1.msra.mxu0 0.0
      %4035 = vmatprep.subr.mxu0 0.0
      %4036 = vmatpush1.msra.mxu0 0.0
      %4037 = vmatprep.subr.mxu0 0.0
      %4038 = vmatpush1.msra.mxu0 0.0
      %4039 = vmatprep.subr.mxu0 0.0
      %4040 = vmatpush1.msra.mxu0 0.0
      %4041 = vmatprep.subr.mxu0 0.0
      %4042 = vmatpush1.msra.mxu0 0.0
      %4043 = vmatprep.subr.mxu0 0.0
      %4044 = vmatpush1.msra.mxu0 0.0
      %4045 = vmatprep.subr.mxu0 0.0
      %4046 = vmatpush1.msra.mxu0 0.0
      %4047 = vmatprep.subr.mxu0 0.0
      %4048 = vmatpush1.msra.mxu0 0.0
      %4049 = vmatprep.subr.mxu0 0.0
      %4050 = vmatpush1.msra.mxu0 0.0
      %4051 = vmatprep.subr.mxu0 0.0
      %4052 = vmatpush1.msra.mxu0 0.0
      %4053 = vmatprep.subr.mxu0 0.0
      %4054 = vmatpush1.msra.mxu0 0.0
      %4055 = vmatprep.subr.mxu0 0.0
      %4056 = vmatpush1.msra.mxu0 0.0
      %4057 = vmatprep.subr.mxu0 0.0
      %4058 = vmatpush1.msra.mxu0 0.0
      %4059 = vmatprep.subr.mxu0 0.0
      %4060 = vmatpush1.msra.mxu0 0.0
      %4061 = vmatprep.subr.mxu0 0.0
      %4062 = vmatpush1.msra.mxu0 0.0
      %4063 = vmatprep.subr.mxu0 0.0
      %4064 = vmatpush1.msra.mxu0 0.0
      %4065 = vmatprep.subr.mxu0 0.0
      %4066 = vmatpush1.msra.mxu0 0.0
      %4067 = vmatprep.subr.mxu0 0.0
      %4068 = vmatpush1.msra.mxu0 0.0
      %4069 = vmatprep.subr.mxu0 0.0
      %4070 = vmatpush1.msra.mxu0 0.0
      %4071 = vmatprep.subr.mxu0 0.0
      %4072 = vmatpush1.msra.mxu0 0.0
      %4073 = vmatprep.subr.mxu0 0.0
      %4074 = vmatpush1.msra.mxu0 0.0
      %4075 = vmatprep.subr.mxu0 0.0
      %4076 = vmatpush1.msra.mxu0 0.0
      %4077 = vmatprep.subr.mxu0 0.0
      %4078 = vmatpush1.msra.mxu0 0.0
      %4079 = vmatprep.subr.mxu0 0.0
      %4080 = vmatpush1.msra.mxu0 0.0
      %4081 = vmatprep.subr.mxu0 0.0
      %4082 = vmatpush1.msra.mxu0 0.0
      %4083 = vmatprep.mubr.f32.mxu0 0.0
      %v4084 = vand.u32 %v3922, 4294901760
      %4085 = vmatmul.mubr.f32.gmra.mrb[0].mxu0 %v4084
      %v4086 = vpop.f32.mrb[0].mxu0
      %v4087 = vadd.f32 %v4001, %v4086
      %v4088 = vpop.f32.mrb[0].mxu0
      %4089 = vdwg.mxu0
      %4090 = vmatprep.subr.mxu0 0.0
      %v4091 = vand.u32 %v3914, 4294901760
      %v4092 = vsub.f32 %v3914, %v4091
      %4093 = vmatpush1.msra.mxu0 %v4092
      %4094 = vmatprep.subr.mxu0 0.0
      %v4095 = vand.u32 %v3916, 4294901760
      %v4096 = vsub.f32 %v3916, %v4095
      %4097 = vmatpush1.msra.mxu0 %v4096
      %4098 = vmatprep.subr.mxu0 0.0
      %v4099 = vand.u32 %v3924, 4294901760
      %v4100 = vsub.f32 %v3924, %v4099
      %4101 = vmatpush1.msra.mxu0 %v4100
      %4102 = vmatprep.subr.mxu0 0.0
      %4103 = vmatpush1.msra.mxu0 0.0
      %4104 = vmatprep.subr.mxu0 0.0
      %4105 = vmatpush1.msra.mxu0 0.0
      %4106 = vmatprep.subr.mxu0 0.0
      %4107 = vmatpush1.msra.mxu0 0.0
      %4108 = vmatprep.subr.mxu0 0.0
      %4109 = vmatpush1.msra.mxu0 0.0
      %4110 = vmatprep.subr.mxu0 0.0
      %4111 = vmatpush1.msra.mxu0 0.0
      %4112 = vmatprep.subr.mxu0 0.0
      %4113 = vmatpush1.msra.mxu0 0.0
      %4114 = vmatprep.subr.mxu0 0.0
      %4115 = vmatpush1.msra.mxu0 0.0
      %4116 = vmatprep.subr.mxu0 0.0
      %4117 = vmatpush1.msra.mxu0 0.0
      %4118 = vmatprep.subr.mxu0 0.0
      %4119 = vmatpush1.msra.mxu0 0.0
      %4120 = vmatprep.subr.mxu0 0.0
      %4121 = vmatpush1.msra.mxu0 0.0
      %4122 = vmatprep.subr.mxu0 0.0
      %4123 = vmatpush1.msra.mxu0 0.0
      %4124 = vmatprep.subr.mxu0 0.0
      %4125 = vmatpush1.msra.mxu0 0.0
      %4126 = vmatprep.subr.mxu0 0.0
      %4127 = vmatpush1.msra.mxu0 0.0
      %4128 = vmatprep.subr.mxu0 0.0
      %4129 = vmatpush1.msra.mxu0 0.0
      %4130 = vmatprep.subr.mxu0 0.0
      %4131 = vmatpush1.msra.mxu0 0.0
      %4132 = vmatprep.subr.mxu0 0.0
      %4133 = vmatpush1.msra.mxu0 0.0
      %4134 = vmatprep.subr.mxu0 0.0
      %4135 = vmatpush1.msra.mxu0 0.0
      %4136 = vmatprep.subr.mxu0 0.0
      %4137 = vmatpush1.msra.mxu0 0.0
      %4138 = vmatprep.subr.mxu0 0.0
      %4139 = vmatpush1.msra.mxu0 0.0
      %4140 = vmatprep.subr.mxu0 0.0
      %4141 = vmatpush1.msra.mxu0 0.0
      %4142 = vmatprep.subr.mxu0 0.0
      %4143 = vmatpush1.msra.mxu0 0.0
      %4144 = vmatprep.subr.mxu0 0.0
      %4145 = vmatpush1.msra.mxu0 0.0
      %4146 = vmatprep.subr.mxu0 0.0
      %4147 = vmatpush1.msra.mxu0 0.0
      %4148 = vmatprep.subr.mxu0 0.0
      %4149 = vmatpush1.msra.mxu0 0.0
      %4150 = vmatprep.subr.mxu0 0.0
      %4151 = vmatpush1.msra.mxu0 0.0
      %4152 = vmatprep.subr.mxu0 0.0
      %4153 = vmatpush1.msra.mxu0 0.0
      %4154 = vmatprep.subr.mxu0 0.0
      %4155 = vmatpush1.msra.mxu0 0.0
      %4156 = vmatprep.subr.mxu0 0.0
      %4157 = vmatpush1.msra.mxu0 0.0
      %4158 = vmatprep.subr.mxu0 0.0
      %4159 = vmatpush1.msra.mxu0 0.0
      %4160 = vmatprep.mubr.f32.mxu0 0.0
      %v4161 = vand.u32 %v3922, 4294901760
      %v4162 = vsub.f32 %v3922, %v4161
      %4163 = vmatmul.mubr.f32.gmra.mrb[0].mxu0 %v4162
      %v4164 = vpop.f32.mrb[0].mxu0
      %v4165 = vadd.f32 %v4087, %v4164
      %v4166 = vpop.f32.mrb[0].mxu0
      %4167 = vdwg.mxu0
      %4168 = vmatprep.subr.mxu0 0.0
      %v4169 = vand.u32 %v3914, 4294901760
      %4170 = vmatpush1.msra.mxu0 %v4169
      %4171 = vmatprep.subr.mxu0 0.0
      %v4172 = vand.u32 %v3916, 4294901760
      %4173 = vmatpush1.msra.mxu0 %v4172
      %4174 = vmatprep.subr.mxu0 0.0
      %v4175 = vand.u32 %v3924, 4294901760
      %4176 = vmatpush1.msra.mxu0 %v4175
      %4177 = vmatprep.subr.mxu0 0.0
      %4178 = vmatpush1.msra.mxu0 0.0
      %4179 = vmatprep.subr.mxu0 0.0
      %4180 = vmatpush1.msra.mxu0 0.0
      %4181 = vmatprep.subr.mxu0 0.0
      %4182 = vmatpush1.msra.mxu0 0.0
      %4183 = vmatprep.subr.mxu0 0.0
      %4184 = vmatpush1.msra.mxu0 0.0
      %4185 = vmatprep.subr.mxu0 0.0
      %4186 = vmatpush1.msra.mxu0 0.0
      %4187 = vmatprep.subr.mxu0 0.0
      %4188 = vmatpush1.msra.mxu0 0.0
      %4189 = vmatprep.subr.mxu0 0.0
      %4190 = vmatpush1.msra.mxu0 0.0
      %4191 = vmatprep.subr.mxu0 0.0
      %4192 = vmatpush1.msra.mxu0 0.0
      %4193 = vmatprep.subr.mxu0 0.0
      %4194 = vmatpush1.msra.mxu0 0.0
      %4195 = vmatprep.subr.mxu0 0.0
      %4196 = vmatpush1.msra.mxu0 0.0
      %4197 = vmatprep.subr.mxu0 0.0
      %4198 = vmatpush1.msra.mxu0 0.0
      %4199 = vmatprep.subr.mxu0 0.0
      %4200 = vmatpush1.msra.mxu0 0.0
      %4201 = vmatprep.subr.mxu0 0.0
      %4202 = vmatpush1.msra.mxu0 0.0
      %4203 = vmatprep.subr.mxu0 0.0
      %4204 = vmatpush1.msra.mxu0 0.0
      %4205 = vmatprep.subr.mxu0 0.0
      %4206 = vmatpush1.msra.mxu0 0.0
      %4207 = vmatprep.subr.mxu0 0.0
      %4208 = vmatpush1.msra.mxu0 0.0
      %4209 = vmatprep.subr.mxu0 0.0
      %4210 = vmatpush1.msra.mxu0 0.0
      %4211 = vmatprep.subr.mxu0 0.0
      %4212 = vmatpush1.msra.mxu0 0.0
      %4213 = vmatprep.subr.mxu0 0.0
      %4214 = vmatpush1.msra.mxu0 0.0
      %4215 = vmatprep.subr.mxu0 0.0
      %4216 = vmatpush1.msra.mxu0 0.0
      %4217 = vmatprep.subr.mxu0 0.0
      %4218 = vmatpush1.msra.mxu0 0.0
      %4219 = vmatprep.subr.mxu0 0.0
      %4220 = vmatpush1.msra.mxu0 0.0
      %4221 = vmatprep.subr.mxu0 0.0
      %4222 = vmatpush1.msra.mxu0 0.0
      %4223 = vmatprep.subr.mxu0 0.0
      %4224 = vmatpush1.msra.mxu0 0.0
      %4225 = vmatprep.subr.mxu0 0.0
      %4226 = vmatpush1.msra.mxu0 0.0
      %4227 = vmatprep.subr.mxu0 0.0
      %4228 = vmatpush1.msra.mxu0 0.0
      %4229 = vmatprep.subr.mxu0 0.0
      %4230 = vmatpush1.msra.mxu0 0.0
      %4231 = vmatprep.subr.mxu0 0.0
      %4232 = vmatpush1.msra.mxu0 0.0
      %4233 = vmatprep.subr.mxu0 0.0
      %4234 = vmatpush1.msra.mxu0 0.0
      %4235 = vmatprep.mubr.f32.mxu0 0.0
      %v4236 = vand.u32 %v3922, 4294901760
      %v4237 = vsub.f32 %v3922, %v4236
      %v4238 = vand.u32 %v4237, 4294901760
      %4239 = vmatmul.mubr.f32.gmra.mrb[0].mxu0 %v4238
      %v4240 = vpop.f32.mrb[0].mxu0
      %v4241 = vadd.f32 %v4165, %v4240
      %v4242 = vpop.f32.mrb[0].mxu0
      %4243 = vdwg.mxu0
      %4244 = vmatprep.subr.mxu0 0.0
      %v4245 = vand.u32 %v3914, 4294901760
      %v4246 = vsub.f32 %v3914, %v4245
      %v4247 = vand.u32 %v4246, 4294901760
      %4248 = vmatpush1.msra.mxu0 %v4247
      %4249 = vmatprep.subr.mxu0 0.0
      %v4250 = vand.u32 %v3916, 4294901760
      %v4251 = vsub.f32 %v3916, %v4250
      %v4252 = vand.u32 %v4251, 4294901760
      %4253 = vmatpush1.msra.mxu0 %v4252
      %4254 = vmatprep.subr.mxu0 0.0
      %v4255 = vand.u32 %v3924, 4294901760
      %v4256 = vsub.f32 %v3924, %v4255
      %v4257 = vand.u32 %v4256, 4294901760
      %4258 = vmatpush1.msra.mxu0 %v4257
      %4259 = vmatprep.subr.mxu0 0.0
      %4260 = vmatpush1.msra.mxu0 0.0
      %4261 = vmatprep.subr.mxu0 0.0
      %4262 = vmatpush1.msra.mxu0 0.0
      %4263 = vmatprep.subr.mxu0 0.0
      %4264 = vmatpush1.msra.mxu0 0.0
      %4265 = vmatprep.subr.mxu0 0.0
      %4266 = vmatpush1.msra.mxu0 0.0
      %4267 = vmatprep.subr.mxu0 0.0
      %4268 = vmatpush1.msra.mxu0 0.0
      %4269 = vmatprep.subr.mxu0 0.0
      %4270 = vmatpush1.msra.mxu0 0.0
      %4271 = vmatprep.subr.mxu0 0.0
      %4272 = vmatpush1.msra.mxu0 0.0
      %4273 = vmatprep.subr.mxu0 0.0
      %4274 = vmatpush1.msra.mxu0 0.0
      %4275 = vmatprep.subr.mxu0 0.0
      %4276 = vmatpush1.msra.mxu0 0.0
      %4277 = vmatprep.subr.mxu0 0.0
      %4278 = vmatpush1.msra.mxu0 0.0
      %4279 = vmatprep.subr.mxu0 0.0
      %4280 = vmatpush1.msra.mxu0 0.0
      %4281 = vmatprep.subr.mxu0 0.0
      %4282 = vmatpush1.msra.mxu0 0.0
      %4283 = vmatprep.subr.mxu0 0.0
      %4284 = vmatpush1.msra.mxu0 0.0
      %4285 = vmatprep.subr.mxu0 0.0
      %4286 = vmatpush1.msra.mxu0 0.0
      %4287 = vmatprep.subr.mxu0 0.0
      %4288 = vmatpush1.msra.mxu0 0.0
      %4289 = vmatprep.subr.mxu0 0.0
      %4290 = vmatpush1.msra.mxu0 0.0
      %4291 = vmatprep.subr.mxu0 0.0
      %4292 = vmatpush1.msra.mxu0 0.0
      %4293 = vmatprep.subr.mxu0 0.0
      %4294 = vmatpush1.msra.mxu0 0.0
      %4295 = vmatprep.subr.mxu0 0.0
      %4296 = vmatpush1.msra.mxu0 0.0
      %4297 = vmatprep.subr.mxu0 0.0
      %4298 = vmatpush1.msra.mxu0 0.0
      %4299 = vmatprep.subr.mxu0 0.0
      %4300 = vmatpush1.msra.mxu0 0.0
      %4301 = vmatprep.subr.mxu0 0.0
      %4302 = vmatpush1.msra.mxu0 0.0
      %4303 = vmatprep.subr.mxu0 0.0
      %4304 = vmatpush1.msra.mxu0 0.0
      %4305 = vmatprep.subr.mxu0 0.0
      %4306 = vmatpush1.msra.mxu0 0.0
      %4307 = vmatprep.subr.mxu0 0.0
      %4308 = vmatpush1.msra.mxu0 0.0
      %4309 = vmatprep.subr.mxu0 0.0
      %4310 = vmatpush1.msra.mxu0 0.0
      %4311 = vmatprep.subr.mxu0 0.0
      %4312 = vmatpush1.msra.mxu0 0.0
      %4313 = vmatprep.subr.mxu0 0.0
      %4314 = vmatpush1.msra.mxu0 0.0
      %4315 = vmatprep.subr.mxu0 0.0
      %4316 = vmatpush1.msra.mxu0 0.0
      %4317 = vmatprep.mubr.f32.mxu0 0.0
      %v4318 = vand.u32 %v3922, 4294901760
      %4319 = vmatmul.mubr.f32.gmra.mrb[0].mxu0 %v4318
      %v4320 = vpop.f32.mrb[0].mxu0
      %v4321 = vadd.f32 %v4241, %v4320
      %v4322 = vpop.f32.mrb[0].mxu0
      %4323 = vdwg.mxu0
      %4324 = vmatprep.subr.mxu0 0.0
      %v4325 = vand.u32 %v3914, 4294901760
      %4326 = vmatpush1.msra.mxu0 %v4325
      %4327 = vmatprep.subr.mxu0 0.0
      %v4328 = vand.u32 %v3916, 4294901760
      %4329 = vmatpush1.msra.mxu0 %v4328
      %4330 = vmatprep.subr.mxu0 0.0
      %v4331 = vand.u32 %v3924, 4294901760
      %4332 = vmatpush1.msra.mxu0 %v4331
      %4333 = vmatprep.subr.mxu0 0.0
      %4334 = vmatpush1.msra.mxu0 0.0
      %4335 = vmatprep.subr.mxu0 0.0
      %4336 = vmatpush1.msra.mxu0 0.0
      %4337 = vmatprep.subr.mxu0 0.0
      %4338 = vmatpush1.msra.mxu0 0.0
      %4339 = vmatprep.subr.mxu0 0.0
      %4340 = vmatpush1.msra.mxu0 0.0
      %4341 = vmatprep.subr.mxu0 0.0
      %4342 = vmatpush1.msra.mxu0 0.0
      %4343 = vmatprep.subr.mxu0 0.0
      %4344 = vmatpush1.msra.mxu0 0.0
      %4345 = vmatprep.subr.mxu0 0.0
      %4346 = vmatpush1.msra.mxu0 0.0
      %4347 = vmatprep.subr.mxu0 0.0
      %4348 = vmatpush1.msra.mxu0 0.0
      %4349 = vmatprep.subr.mxu0 0.0
      %4350 = vmatpush1.msra.mxu0 0.0
      %4351 = vmatprep.subr.mxu0 0.0
      %4352 = vmatpush1.msra.mxu0 0.0
      %4353 = vmatprep.subr.mxu0 0.0
      %4354 = vmatpush1.msra.mxu0 0.0
      %4355 = vmatprep.subr.mxu0 0.0
      %4356 = vmatpush1.msra.mxu0 0.0
      %4357 = vmatprep.subr.mxu0 0.0
      %4358 = vmatpush1.msra.mxu0 0.0
      %4359 = vmatprep.subr.mxu0 0.0
      %4360 = vmatpush1.msra.mxu0 0.0
      %4361 = vmatprep.subr.mxu0 0.0
      %4362 = vmatpush1.msra.mxu0 0.0
      %4363 = vmatprep.subr.mxu0 0.0
      %4364 = vmatpush1.msra.mxu0 0.0
      %4365 = vmatprep.subr.mxu0 0.0
      %4366 = vmatpush1.msra.mxu0 0.0
      %4367 = vmatprep.subr.mxu0 0.0
      %4368 = vmatpush1.msra.mxu0 0.0
      %4369 = vmatprep.subr.mxu0 0.0
      %4370 = vmatpush1.msra.mxu0 0.0
      %4371 = vmatprep.subr.mxu0 0.0
      %4372 = vmatpush1.msra.mxu0 0.0
      %4373 = vmatprep.subr.mxu0 0.0
      %4374 = vmatpush1.msra.mxu0 0.0
      %4375 = vmatprep.subr.mxu0 0.0
      %4376 = vmatpush1.msra.mxu0 0.0
      %4377 = vmatprep.subr.mxu0 0.0
      %4378 = vmatpush1.msra.mxu0 0.0
      %4379 = vmatprep.subr.mxu0 0.0
      %4380 = vmatpush1.msra.mxu0 0.0
      %4381 = vmatprep.subr.mxu0 0.0
      %4382 = vmatpush1.msra.mxu0 0.0
      %4383 = vmatprep.subr.mxu0 0.0
      %4384 = vmatpush1.msra.mxu0 0.0
      %4385 = vmatprep.subr.mxu0 0.0
      %4386 = vmatpush1.msra.mxu0 0.0
      %4387 = vmatprep.subr.mxu0 0.0
      %4388 = vmatpush1.msra.mxu0 0.0
      %4389 = vmatprep.subr.mxu0 0.0
      %4390 = vmatpush1.msra.mxu0 0.0
      %4391 = vmatprep.mubr.f32.mxu0 0.0
      %v4392 = vand.u32 %v3922, 4294901760
      %4393 = vmatmul.mubr.f32.gmra.mrb[0].mxu0 %v4392
      %v4394 = vpop.f32.mrb[0].mxu0
      %v4395 = vadd.f32 %v4321, %v4394
      %v4396 = vpop.f32.mrb[0].mxu0
      %4397 = vdwg.mxu0
      %v4398 = vadd.f32 %v3910, %v4395
      %s4399 = scalar_lea.vmem %s3, 8
      %v4400 = vld [vmem:[%s4399] sm:$0x3]
      %4401 = vrot.lane.b32.xlu0 %v2448, 124
      %v4402 = vpop.permute.xlu0 %4401
      %4403 = vrot.lane.b32.xlu0 %v2450, 124
      %v4404 = vpop.permute.xlu0 %4403
      %4405 = vrot.lane.b32.xlu0 %v2452, 124
      %v4406 = vpop.permute.xlu0 %4405
      %v4410 = vsel %vm2467, %v4400, 0
      %v4412 = vsel %vm2471, %v4406, 0
      %4414 = vmatprep.subr.mxu0 0.0
      %v4415 = vand.u32 %v4402, 4294901760
      %4416 = vmatpush1.msra.mxu0 %v4415
      %4417 = vmatprep.subr.mxu0 0.0
      %v4418 = vand.u32 %v4404, 4294901760
      %4419 = vmatpush1.msra.mxu0 %v4418
      %4420 = vmatprep.subr.mxu0 0.0
      %v4421 = vand.u32 %v4412, 4294901760
      %4422 = vmatpush1.msra.mxu0 %v4421
      %4423 = vmatprep.subr.mxu0 0.0
      %4424 = vmatpush1.msra.mxu0 0.0
      %4425 = vmatprep.subr.mxu0 0.0
      %4426 = vmatpush1.msra.mxu0 0.0
      %4427 = vmatprep.subr.mxu0 0.0
      %4428 = vmatpush1.msra.mxu0 0.0
      %4429 = vmatprep.subr.mxu0 0.0
      %4430 = vmatpush1.msra.mxu0 0.0
      %4431 = vmatprep.subr.mxu0 0.0
      %4432 = vmatpush1.msra.mxu0 0.0
      %4433 = vmatprep.subr.mxu0 0.0
      %4434 = vmatpush1.msra.mxu0 0.0
      %4435 = vmatprep.subr.mxu0 0.0
      %4436 = vmatpush1.msra.mxu0 0.0
      %4437 = vmatprep.subr.mxu0 0.0
      %4438 = vmatpush1.msra.mxu0 0.0
      %4439 = vmatprep.subr.mxu0 0.0
      %4440 = vmatpush1.msra.mxu0 0.0
      %4441 = vmatprep.subr.mxu0 0.0
      %4442 = vmatpush1.msra.mxu0 0.0
      %4443 = vmatprep.subr.mxu0 0.0
      %4444 = vmatpush1.msra.mxu0 0.0
      %4445 = vmatprep.subr.mxu0 0.0
      %4446 = vmatpush1.msra.mxu0 0.0
      %4447 = vmatprep.subr.mxu0 0.0
      %4448 = vmatpush1.msra.mxu0 0.0
      %4449 = vmatprep.subr.mxu0 0.0
      %4450 = vmatpush1.msra.mxu0 0.0
      %4451 = vmatprep.subr.mxu0 0.0
      %4452 = vmatpush1.msra.mxu0 0.0
      %4453 = vmatprep.subr.mxu0 0.0
      %4454 = vmatpush1.msra.mxu0 0.0
      %4455 = vmatprep.subr.mxu0 0.0
      %4456 = vmatpush1.msra.mxu0 0.0
      %4457 = vmatprep.subr.mxu0 0.0
      %4458 = vmatpush1.msra.mxu0 0.0
      %4459 = vmatprep.subr.mxu0 0.0
      %4460 = vmatpush1.msra.mxu0 0.0
      %4461 = vmatprep.subr.mxu0 0.0
      %4462 = vmatpush1.msra.mxu0 0.0
      %4463 = vmatprep.subr.mxu0 0.0
      %4464 = vmatpush1.msra.mxu0 0.0
      %4465 = vmatprep.subr.mxu0 0.0
      %4466 = vmatpush1.msra.mxu0 0.0
      %4467 = vmatprep.subr.mxu0 0.0
      %4468 = vmatpush1.msra.mxu0 0.0
      %4469 = vmatprep.subr.mxu0 0.0
      %4470 = vmatpush1.msra.mxu0 0.0
      %4471 = vmatprep.subr.mxu0 0.0
      %4472 = vmatpush1.msra.mxu0 0.0
      %4473 = vmatprep.subr.mxu0 0.0
      %4474 = vmatpush1.msra.mxu0 0.0
      %4475 = vmatprep.subr.mxu0 0.0
      %4476 = vmatpush1.msra.mxu0 0.0
      %4477 = vmatprep.subr.mxu0 0.0
      %4478 = vmatpush1.msra.mxu0 0.0
      %4479 = vmatprep.subr.mxu0 0.0
      %4480 = vmatpush1.msra.mxu0 0.0
      %4481 = vmatprep.mubr.f32.mxu0 0.0
      %v4482 = vand.u32 %v4410, 4294901760
      %v4483 = vsub.f32 %v4410, %v4482
      %v4484 = vand.u32 %v4483, 4294901760
      %v4485 = vsub.f32 %v4483, %v4484
      %v4486 = vand.u32 %v4485, 4294901760
      %4487 = vmatmul.mubr.f32.gmra.mrb[0].mxu0 %v4486
      %v4488 = vpop.f32.mrb[0].mxu0
      %v4489 = vadd.f32 0.0, %v4488
      %v4490 = vpop.f32.mrb[0].mxu0
      %4491 = vdwg.mxu0
      %4492 = vmatprep.subr.mxu0 0.0
      %v4493 = vand.u32 %v4402, 4294901760
      %v4494 = vsub.f32 %v4402, %v4493
      %v4495 = vand.u32 %v4494, 4294901760
      %v4496 = vsub.f32 %v4494, %v4495
      %v4497 = vand.u32 %v4496, 4294901760
      %4498 = vmatpush1.msra.mxu0 %v4497
      %4499 = vmatprep.subr.mxu0 0.0
      %v4500 = vand.u32 %v4404, 4294901760
      %v4501 = vsub.f32 %v4404, %v4500
      %v4502 = vand.u32 %v4501, 4294901760
      %v4503 = vsub.f32 %v4501, %v4502
      %v4504 = vand.u32 %v4503, 4294901760
      %4505 = vmatpush1.msra.mxu0 %v4504
      %4506 = vmatprep.subr.mxu0 0.0
      %v4507 = vand.u32 %v4412, 4294901760
      %v4508 = vsub.f32 %v4412, %v4507
      %v4509 = vand.u32 %v4508, 4294901760
      %v4510 = vsub.f32 %v4508, %v4509
      %v4511 = vand.u32 %v4510, 4294901760
      %4512 = vmatpush1.msra.mxu0 %v4511
      %4513 = vmatprep.subr.mxu0 0.0
      %4514 = vmatpush1.msra.mxu0 0.0
      %4515 = vmatprep.subr.mxu0 0.0
      %4516 = vmatpush1.msra.mxu0 0.0
      %4517 = vmatprep.subr.mxu0 0.0
      %4518 = vmatpush1.msra.mxu0 0.0
      %4519 = vmatprep.subr.mxu0 0.0
      %4520 = vmatpush1.msra.mxu0 0.0
      %4521 = vmatprep.subr.mxu0 0.0
      %4522 = vmatpush1.msra.mxu0 0.0
      %4523 = vmatprep.subr.mxu0 0.0
      %4524 = vmatpush1.msra.mxu0 0.0
      %4525 = vmatprep.subr.mxu0 0.0
      %4526 = vmatpush1.msra.mxu0 0.0
      %4527 = vmatprep.subr.mxu0 0.0
      %4528 = vmatpush1.msra.mxu0 0.0
      %4529 = vmatprep.subr.mxu0 0.0
      %4530 = vmatpush1.msra.mxu0 0.0
      %4531 = vmatprep.subr.mxu0 0.0
      %4532 = vmatpush1.msra.mxu0 0.0
      %4533 = vmatprep.subr.mxu0 0.0
      %4534 = vmatpush1.msra.mxu0 0.0
      %4535 = vmatprep.subr.mxu0 0.0
      %4536 = vmatpush1.msra.mxu0 0.0
      %4537 = vmatprep.subr.mxu0 0.0
      %4538 = vmatpush1.msra.mxu0 0.0
      %4539 = vmatprep.subr.mxu0 0.0
      %4540 = vmatpush1.msra.mxu0 0.0
      %4541 = vmatprep.subr.mxu0 0.0
      %4542 = vmatpush1.msra.mxu0 0.0
      %4543 = vmatprep.subr.mxu0 0.0
      %4544 = vmatpush1.msra.mxu0 0.0
      %4545 = vmatprep.subr.mxu0 0.0
      %4546 = vmatpush1.msra.mxu0 0.0
      %4547 = vmatprep.subr.mxu0 0.0
      %4548 = vmatpush1.msra.mxu0 0.0
      %4549 = vmatprep.subr.mxu0 0.0
      %4550 = vmatpush1.msra.mxu0 0.0
      %4551 = vmatprep.subr.mxu0 0.0
      %4552 = vmatpush1.msra.mxu0 0.0
      %4553 = vmatprep.subr.mxu0 0.0
      %4554 = vmatpush1.msra.mxu0 0.0
      %4555 = vmatprep.subr.mxu0 0.0
      %4556 = vmatpush1.msra.mxu0 0.0
      %4557 = vmatprep.subr.mxu0 0.0
      %4558 = vmatpush1.msra.mxu0 0.0
      %4559 = vmatprep.subr.mxu0 0.0
      %4560 = vmatpush1.msra.mxu0 0.0
      %4561 = vmatprep.subr.mxu0 0.0
      %4562 = vmatpush1.msra.mxu0 0.0
      %4563 = vmatprep.subr.mxu0 0.0
      %4564 = vmatpush1.msra.mxu0 0.0
      %4565 = vmatprep.subr.mxu0 0.0
      %4566 = vmatpush1.msra.mxu0 0.0
      %4567 = vmatprep.subr.mxu0 0.0
      %4568 = vmatpush1.msra.mxu0 0.0
      %4569 = vmatprep.subr.mxu0 0.0
      %4570 = vmatpush1.msra.mxu0 0.0
      %4571 = vmatprep.mubr.f32.mxu0 0.0
      %v4572 = vand.u32 %v4410, 4294901760
      %4573 = vmatmul.mubr.f32.gmra.mrb[0].mxu0 %v4572
      %v4574 = vpop.f32.mrb[0].mxu0
      %v4575 = vadd.f32 %v4489, %v4574
      %v4576 = vpop.f32.mrb[0].mxu0
      %4577 = vdwg.mxu0
      %4578 = vmatprep.subr.mxu0 0.0
      %v4579 = vand.u32 %v4402, 4294901760
      %v4580 = vsub.f32 %v4402, %v4579
      %4581 = vmatpush1.msra.mxu0 %v4580
      %4582 = vmatprep.subr.mxu0 0.0
      %v4583 = vand.u32 %v4404, 4294901760
      %v4584 = vsub.f32 %v4404, %v4583
      %4585 = vmatpush1.msra.mxu0 %v4584
      %4586 = vmatprep.subr.mxu0 0.0
      %v4587 = vand.u32 %v4412, 4294901760
      %v4588 = vsub.f32 %v4412, %v4587
      %4589 = vmatpush1.msra.mxu0 %v4588
      %4590 = vmatprep.subr.mxu0 0.0
      %4591 = vmatpush1.msra.mxu0 0.0
      %4592 = vmatprep.subr.mxu0 0.0
      %4593 = vmatpush1.msra.mxu0 0.0
      %4594 = vmatprep.subr.mxu0 0.0
      %4595 = vmatpush1.msra.mxu0 0.0
      %4596 = vmatprep.subr.mxu0 0.0
      %4597 = vmatpush1.msra.mxu0 0.0
      %4598 = vmatprep.subr.mxu0 0.0
      %4599 = vmatpush1.msra.mxu0 0.0
      %4600 = vmatprep.subr.mxu0 0.0
      %4601 = vmatpush1.msra.mxu0 0.0
      %4602 = vmatprep.subr.mxu0 0.0
      %4603 = vmatpush1.msra.mxu0 0.0
      %4604 = vmatprep.subr.mxu0 0.0
      %4605 = vmatpush1.msra.mxu0 0.0
      %4606 = vmatprep.subr.mxu0 0.0
      %4607 = vmatpush1.msra.mxu0 0.0
      %4608 = vmatprep.subr.mxu0 0.0
      %4609 = vmatpush1.msra.mxu0 0.0
      %4610 = vmatprep.subr.mxu0 0.0
      %4611 = vmatpush1.msra.mxu0 0.0
      %4612 = vmatprep.subr.mxu0 0.0
      %4613 = vmatpush1.msra.mxu0 0.0
      %4614 = vmatprep.subr.mxu0 0.0
      %4615 = vmatpush1.msra.mxu0 0.0
      %4616 = vmatprep.subr.mxu0 0.0
      %4617 = vmatpush1.msra.mxu0 0.0
      %4618 = vmatprep.subr.mxu0 0.0
      %4619 = vmatpush1.msra.mxu0 0.0
      %4620 = vmatprep.subr.mxu0 0.0
      %4621 = vmatpush1.msra.mxu0 0.0
      %4622 = vmatprep.subr.mxu0 0.0
      %4623 = vmatpush1.msra.mxu0 0.0
      %4624 = vmatprep.subr.mxu0 0.0
      %4625 = vmatpush1.msra.mxu0 0.0
      %4626 = vmatprep.subr.mxu0 0.0
      %4627 = vmatpush1.msra.mxu0 0.0
      %4628 = vmatprep.subr.mxu0 0.0
      %4629 = vmatpush1.msra.mxu0 0.0
      %4630 = vmatprep.subr.mxu0 0.0
      %4631 = vmatpush1.msra.mxu0 0.0
      %4632 = vmatprep.subr.mxu0 0.0
      %4633 = vmatpush1.msra.mxu0 0.0
      %4634 = vmatprep.subr.mxu0 0.0
      %4635 = vmatpush1.msra.mxu0 0.0
      %4636 = vmatprep.subr.mxu0 0.0
      %4637 = vmatpush1.msra.mxu0 0.0
      %4638 = vmatprep.subr.mxu0 0.0
      %4639 = vmatpush1.msra.mxu0 0.0
      %4640 = vmatprep.subr.mxu0 0.0
      %4641 = vmatpush1.msra.mxu0 0.0
      %4642 = vmatprep.subr.mxu0 0.0
      %4643 = vmatpush1.msra.mxu0 0.0
      %4644 = vmatprep.subr.mxu0 0.0
      %4645 = vmatpush1.msra.mxu0 0.0
      %4646 = vmatprep.subr.mxu0 0.0
      %4647 = vmatpush1.msra.mxu0 0.0
      %4648 = vmatprep.mubr.f32.mxu0 0.0
      %v4649 = vand.u32 %v4410, 4294901760
      %v4650 = vsub.f32 %v4410, %v4649
      %4651 = vmatmul.mubr.f32.gmra.mrb[0].mxu0 %v4650
      %v4652 = vpop.f32.mrb[0].mxu0
      %v4653 = vadd.f32 %v4575, %v4652
      %v4654 = vpop.f32.mrb[0].mxu0
      %4655 = vdwg.mxu0
      %4656 = vmatprep.subr.mxu0 0.0
      %v4657 = vand.u32 %v4402, 4294901760
      %4658 = vmatpush1.msra.mxu0 %v4657
      %4659 = vmatprep.subr.mxu0 0.0
      %v4660 = vand.u32 %v4404, 4294901760
      %4661 = vmatpush1.msra.mxu0 %v4660
      %4662 = vmatprep.subr.mxu0 0.0
      %v4663 = vand.u32 %v4412, 4294901760
      %4664 = vmatpush1.msra.mxu0 %v4663
      %4665 = vmatprep.subr.mxu0 0.0
      %4666 = vmatpush1.msra.mxu0 0.0
      %4667 = vmatprep.subr.mxu0 0.0
      %4668 = vmatpush1.msra.mxu0 0.0
      %4669 = vmatprep.subr.mxu0 0.0
      %4670 = vmatpush1.msra.mxu0 0.0
      %4671 = vmatprep.subr.mxu0 0.0
      %4672 = vmatpush1.msra.mxu0 0.0
      %4673 = vmatprep.subr.mxu0 0.0
      %4674 = vmatpush1.msra.mxu0 0.0
      %4675 = vmatprep.subr.mxu0 0.0
      %4676 = vmatpush1.msra.mxu0 0.0
      %4677 = vmatprep.subr.mxu0 0.0
      %4678 = vmatpush1.msra.mxu0 0.0
      %4679 = vmatprep.subr.mxu0 0.0
      %4680 = vmatpush1.msra.mxu0 0.0
      %4681 = vmatprep.subr.mxu0 0.0
      %4682 = vmatpush1.msra.mxu0 0.0
      %4683 = vmatprep.subr.mxu0 0.0
      %4684 = vmatpush1.msra.mxu0 0.0
      %4685 = vmatprep.subr.mxu0 0.0
      %4686 = vmatpush1.msra.mxu0 0.0
      %4687 = vmatprep.subr.mxu0 0.0
      %4688 = vmatpush1.msra.mxu0 0.0
      %4689 = vmatprep.subr.mxu0 0.0
      %4690 = vmatpush1.msra.mxu0 0.0
      %4691 = vmatprep.subr.mxu0 0.0
      %4692 = vmatpush1.msra.mxu0 0.0
      %4693 = vmatprep.subr.mxu0 0.0
      %4694 = vmatpush1.msra.mxu0 0.0
      %4695 = vmatprep.subr.mxu0 0.0
      %4696 = vmatpush1.msra.mxu0 0.0
      %4697 = vmatprep.subr.mxu0 0.0
      %4698 = vmatpush1.msra.mxu0 0.0
      %4699 = vmatprep.subr.mxu0 0.0
      %4700 = vmatpush1.msra.mxu0 0.0
      %4701 = vmatprep.subr.mxu0 0.0
      %4702 = vmatpush1.msra.mxu0 0.0
      %4703 = vmatprep.subr.mxu0 0.0
      %4704 = vmatpush1.msra.mxu0 0.0
      %4705 = vmatprep.subr.mxu0 0.0
      %4706 = vmatpush1.msra.mxu0 0.0
      %4707 = vmatprep.subr.mxu0 0.0
      %4708 = vmatpush1.msra.mxu0 0.0
      %4709 = vmatprep.subr.mxu0 0.0
      %4710 = vmatpush1.msra.mxu0 0.0
      %4711 = vmatprep.subr.mxu0 0.0
      %4712 = vmatpush1.msra.mxu0 0.0
      %4713 = vmatprep.subr.mxu0 0.0
      %4714 = vmatpush1.msra.mxu0 0.0
      %4715 = vmatprep.subr.mxu0 0.0
      %4716 = vmatpush1.msra.mxu0 0.0
      %4717 = vmatprep.subr.mxu0 0.0
      %4718 = vmatpush1.msra.mxu0 0.0
      %4719 = vmatprep.subr.mxu0 0.0
      %4720 = vmatpush1.msra.mxu0 0.0
      %4721 = vmatprep.subr.mxu0 0.0
      %4722 = vmatpush1.msra.mxu0 0.0
      %4723 = vmatprep.mubr.f32.mxu0 0.0
      %v4724 = vand.u32 %v4410, 4294901760
      %v4725 = vsub.f32 %v4410, %v4724
      %v4726 = vand.u32 %v4725, 4294901760
      %4727 = vmatmul.mubr.f32.gmra.mrb[0].mxu0 %v4726
      %v4728 = vpop.f32.mrb[0].mxu0
      %v4729 = vadd.f32 %v4653, %v4728
      %v4730 = vpop.f32.mrb[0].mxu0
      %4731 = vdwg.mxu0
      %4732 = vmatprep.subr.mxu0 0.0
      %v4733 = vand.u32 %v4402, 4294901760
      %v4734 = vsub.f32 %v4402, %v4733
      %v4735 = vand.u32 %v4734, 4294901760
      %4736 = vmatpush1.msra.mxu0 %v4735
      %4737 = vmatprep.subr.mxu0 0.0
      %v4738 = vand.u32 %v4404, 4294901760
      %v4739 = vsub.f32 %v4404, %v4738
      %v4740 = vand.u32 %v4739, 4294901760
      %4741 = vmatpush1.msra.mxu0 %v4740
      %4742 = vmatprep.subr.mxu0 0.0
      %v4743 = vand.u32 %v4412, 4294901760
      %v4744 = vsub.f32 %v4412, %v4743
      %v4745 = vand.u32 %v4744, 4294901760
      %4746 = vmatpush1.msra.mxu0 %v4745
      %4747 = vmatprep.subr.mxu0 0.0
      %4748 = vmatpush1.msra.mxu0 0.0
      %4749 = vmatprep.subr.mxu0 0.0
      %4750 = vmatpush1.msra.mxu0 0.0
      %4751 = vmatprep.subr.mxu0 0.0
      %4752 = vmatpush1.msra.mxu0 0.0
      %4753 = vmatprep.subr.mxu0 0.0
      %4754 = vmatpush1.msra.mxu0 0.0
      %4755 = vmatprep.subr.mxu0 0.0
      %4756 = vmatpush1.msra.mxu0 0.0
      %4757 = vmatprep.subr.mxu0 0.0
      %4758 = vmatpush1.msra.mxu0 0.0
      %4759 = vmatprep.subr.mxu0 0.0
      %4760 = vmatpush1.msra.mxu0 0.0
      %4761 = vmatprep.subr.mxu0 0.0
      %4762 = vmatpush1.msra.mxu0 0.0
      %4763 = vmatprep.subr.mxu0 0.0
      %4764 = vmatpush1.msra.mxu0 0.0
      %4765 = vmatprep.subr.mxu0 0.0
      %4766 = vmatpush1.msra.mxu0 0.0
      %4767 = vmatprep.subr.mxu0 0.0
      %4768 = vmatpush1.msra.mxu0 0.0
      %4769 = vmatprep.subr.mxu0 0.0
      %4770 = vmatpush1.msra.mxu0 0.0
      %4771 = vmatprep.subr.mxu0 0.0
      %4772 = vmatpush1.msra.mxu0 0.0
      %4773 = vmatprep.subr.mxu0 0.0
      %4774 = vmatpush1.msra.mxu0 0.0
      %4775 = vmatprep.subr.mxu0 0.0
      %4776 = vmatpush1.msra.mxu0 0.0
      %4777 = vmatprep.subr.mxu0 0.0
      %4778 = vmatpush1.msra.mxu0 0.0
      %4779 = vmatprep.subr.mxu0 0.0
      %4780 = vmatpush1.msra.mxu0 0.0
      %4781 = vmatprep.subr.mxu0 0.0
      %4782 = vmatpush1.msra.mxu0 0.0
      %4783 = vmatprep.subr.mxu0 0.0
      %4784 = vmatpush1.msra.mxu0 0.0
      %4785 = vmatprep.subr.mxu0 0.0
      %4786 = vmatpush1.msra.mxu0 0.0
      %4787 = vmatprep.subr.mxu0 0.0
      %4788 = vmatpush1.msra.mxu0 0.0
      %4789 = vmatprep.subr.mxu0 0.0
      %4790 = vmatpush1.msra.mxu0 0.0
      %4791 = vmatprep.subr.mxu0 0.0
      %4792 = vmatpush1.msra.mxu0 0.0
      %4793 = vmatprep.subr.mxu0 0.0
      %4794 = vmatpush1.msra.mxu0 0.0
      %4795 = vmatprep.subr.mxu0 0.0
      %4796 = vmatpush1.msra.mxu0 0.0
      %4797 = vmatprep.subr.mxu0 0.0
      %4798 = vmatpush1.msra.mxu0 0.0
      %4799 = vmatprep.subr.mxu0 0.0
      %4800 = vmatpush1.msra.mxu0 0.0
      %4801 = vmatprep.subr.mxu0 0.0
      %4802 = vmatpush1.msra.mxu0 0.0
      %4803 = vmatprep.subr.mxu0 0.0
      %4804 = vmatpush1.msra.mxu0 0.0
      %4805 = vmatprep.mubr.f32.mxu0 0.0
      %v4806 = vand.u32 %v4410, 4294901760
      %4807 = vmatmul.mubr.f32.gmra.mrb[0].mxu0 %v4806
      %v4808 = vpop.f32.mrb[0].mxu0
      %v4809 = vadd.f32 %v4729, %v4808
      %v4810 = vpop.f32.mrb[0].mxu0
      %4811 = vdwg.mxu0
      %4812 = vmatprep.subr.mxu0 0.0
      %v4813 = vand.u32 %v4402, 4294901760
      %4814 = vmatpush1.msra.mxu0 %v4813
      %4815 = vmatprep.subr.mxu0 0.0
      %v4816 = vand.u32 %v4404, 4294901760
      %4817 = vmatpush1.msra.mxu0 %v4816
      %4818 = vmatprep.subr.mxu0 0.0
      %v4819 = vand.u32 %v4412, 4294901760
      %4820 = vmatpush1.msra.mxu0 %v4819
      %4821 = vmatprep.subr.mxu0 0.0
      %4822 = vmatpush1.msra.mxu0 0.0
      %4823 = vmatprep.subr.mxu0 0.0
      %4824 = vmatpush1.msra.mxu0 0.0
      %4825 = vmatprep.subr.mxu0 0.0
      %4826 = vmatpush1.msra.mxu0 0.0
      %4827 = vmatprep.subr.mxu0 0.0
      %4828 = vmatpush1.msra.mxu0 0.0
      %4829 = vmatprep.subr.mxu0 0.0
      %4830 = vmatpush1.msra.mxu0 0.0
      %4831 = vmatprep.subr.mxu0 0.0
      %4832 = vmatpush1.msra.mxu0 0.0
      %4833 = vmatprep.subr.mxu0 0.0
      %4834 = vmatpush1.msra.mxu0 0.0
      %4835 = vmatprep.subr.mxu0 0.0
      %4836 = vmatpush1.msra.mxu0 0.0
      %4837 = vmatprep.subr.mxu0 0.0
      %4838 = vmatpush1.msra.mxu0 0.0
      %4839 = vmatprep.subr.mxu0 0.0
      %4840 = vmatpush1.msra.mxu0 0.0
      %4841 = vmatprep.subr.mxu0 0.0
      %4842 = vmatpush1.msra.mxu0 0.0
      %4843 = vmatprep.subr.mxu0 0.0
      %4844 = vmatpush1.msra.mxu0 0.0
      %4845 = vmatprep.subr.mxu0 0.0
      %4846 = vmatpush1.msra.mxu0 0.0
      %4847 = vmatprep.subr.mxu0 0.0
      %4848 = vmatpush1.msra.mxu0 0.0
      %4849 = vmatprep.subr.mxu0 0.0
      %4850 = vmatpush1.msra.mxu0 0.0
      %4851 = vmatprep.subr.mxu0 0.0
      %4852 = vmatpush1.msra.mxu0 0.0
      %4853 = vmatprep.subr.mxu0 0.0
      %4854 = vmatpush1.msra.mxu0 0.0
      %4855 = vmatprep.subr.mxu0 0.0
      %4856 = vmatpush1.msra.mxu0 0.0
      %4857 = vmatprep.subr.mxu0 0.0
      %4858 = vmatpush1.msra.mxu0 0.0
      %4859 = vmatprep.subr.mxu0 0.0
      %4860 = vmatpush1.msra.mxu0 0.0
      %4861 = vmatprep.subr.mxu0 0.0
      %4862 = vmatpush1.msra.mxu0 0.0
      %4863 = vmatprep.subr.mxu0 0.0
      %4864 = vmatpush1.msra.mxu0 0.0
      %4865 = vmatprep.subr.mxu0 0.0
      %4866 = vmatpush1.msra.mxu0 0.0
      %4867 = vmatprep.subr.mxu0 0.0
      %4868 = vmatpush1.msra.mxu0 0.0
      %4869 = vmatprep.subr.mxu0 0.0
      %4870 = vmatpush1.msra.mxu0 0.0
      %4871 = vmatprep.subr.mxu0 0.0
      %4872 = vmatpush1.msra.mxu0 0.0
      %4873 = vmatprep.subr.mxu0 0.0
      %4874 = vmatpush1.msra.mxu0 0.0
      %4875 = vmatprep.subr.mxu0 0.0
      %4876 = vmatpush1.msra.mxu0 0.0
      %4877 = vmatprep.subr.mxu0 0.0
      %4878 = vmatpush1.msra.mxu0 0.0
      %4879 = vmatprep.mubr.f32.mxu0 0.0
      %v4880 = vand.u32 %v4410, 4294901760
      %4881 = vmatmul.mubr.f32.gmra.mrb[0].mxu0 %v4880
      %v4882 = vpop.f32.mrb[0].mxu0
      %v4883 = vadd.f32 %v4809, %v4882
      %v4884 = vpop.f32.mrb[0].mxu0
      %4885 = vdwg.mxu0
      %v4886 = vadd.f32 %v4398, %v4883
      %s4887 = scalar_lea.vmem %s3, 10
      %v4888 = vld [vmem:[%s4887] sm:$0x3]
      %4889 = vrot.lane.b32.xlu0 %v2448, 123
      %v4890 = vpop.permute.xlu0 %4889
      %4891 = vrot.lane.b32.xlu0 %v2450, 123
      %v4892 = vpop.permute.xlu0 %4891
      %4893 = vrot.lane.b32.xlu0 %v2452, 123
      %v4894 = vpop.permute.xlu0 %4893
      %v4898 = vsel %vm2467, %v4888, 0
      %v4900 = vsel %vm2471, %v4894, 0
      %4902 = vmatprep.subr.mxu0 0.0
      %v4903 = vand.u32 %v4890, 4294901760
      %4904 = vmatpush1.msra.mxu0 %v4903
      %4905 = vmatprep.subr.mxu0 0.0
      %v4906 = vand.u32 %v4892, 4294901760
      %4907 = vmatpush1.msra.mxu0 %v4906
      %4908 = vmatprep.subr.mxu0 0.0
      %v4909 = vand.u32 %v4900, 4294901760
      %4910 = vmatpush1.msra.mxu0 %v4909
      %4911 = vmatprep.subr.mxu0 0.0
      %4912 = vmatpush1.msra.mxu0 0.0
      %4913 = vmatprep.subr.mxu0 0.0
      %4914 = vmatpush1.msra.mxu0 0.0
      %4915 = vmatprep.subr.mxu0 0.0
      %4916 = vmatpush1.msra.mxu0 0.0
      %4917 = vmatprep.subr.mxu0 0.0
      %4918 = vmatpush1.msra.mxu0 0.0
      %4919 = vmatprep.subr.mxu0 0.0
      %4920 = vmatpush1.msra.mxu0 0.0
      %4921 = vmatprep.subr.mxu0 0.0
      %4922 = vmatpush1.msra.mxu0 0.0
      %4923 = vmatprep.subr.mxu0 0.0
      %4924 = vmatpush1.msra.mxu0 0.0
      %4925 = vmatprep.subr.mxu0 0.0
      %4926 = vmatpush1.msra.mxu0 0.0
      %4927 = vmatprep.subr.mxu0 0.0
      %4928 = vmatpush1.msra.mxu0 0.0
      %4929 = vmatprep.subr.mxu0 0.0
      %4930 = vmatpush1.msra.mxu0 0.0
      %4931 = vmatprep.subr.mxu0 0.0
      %4932 = vmatpush1.msra.mxu0 0.0
      %4933 = vmatprep.subr.mxu0 0.0
      %4934 = vmatpush1.msra.mxu0 0.0
      %4935 = vmatprep.subr.mxu0 0.0
      %4936 = vmatpush1.msra.mxu0 0.0
      %4937 = vmatprep.subr.mxu0 0.0
      %4938 = vmatpush1.msra.mxu0 0.0
      %4939 = vmatprep.subr.mxu0 0.0
      %4940 = vmatpush1.msra.mxu0 0.0
      %4941 = vmatprep.subr.mxu0 0.0
      %4942 = vmatpush1.msra.mxu0 0.0
      %4943 = vmatprep.subr.mxu0 0.0
      %4944 = vmatpush1.msra.mxu0 0.0
      %4945 = vmatprep.subr.mxu0 0.0
      %4946 = vmatpush1.msra.mxu0 0.0
      %4947 = vmatprep.subr.mxu0 0.0
      %4948 = vmatpush1.msra.mxu0 0.0
      %4949 = vmatprep.subr.mxu0 0.0
      %4950 = vmatpush1.msra.mxu0 0.0
      %4951 = vmatprep.subr.mxu0 0.0
      %4952 = vmatpush1.msra.mxu0 0.0
      %4953 = vmatprep.subr.mxu0 0.0
      %4954 = vmatpush1.msra.mxu0 0.0
      %4955 = vmatprep.subr.mxu0 0.0
      %4956 = vmatpush1.msra.mxu0 0.0
      %4957 = vmatprep.subr.mxu0 0.0
      %4958 = vmatpush1.msra.mxu0 0.0
      %4959 = vmatprep.subr.mxu0 0.0
      %4960 = vmatpush1.msra.mxu0 0.0
      %4961 = vmatprep.subr.mxu0 0.0
      %4962 = vmatpush1.msra.mxu0 0.0
      %4963 = vmatprep.subr.mxu0 0.0
      %4964 = vmatpush1.msra.mxu0 0.0
      %4965 = vmatprep.subr.mxu0 0.0
      %4966 = vmatpush1.msra.mxu0 0.0
      %4967 = vmatprep.subr.mxu0 0.0
      %4968 = vmatpush1.msra.mxu0 0.0
      %4969 = vmatprep.mubr.f32.mxu0 0.0
      %v4970 = vand.u32 %v4898, 4294901760
      %v4971 = vsub.f32 %v4898, %v4970
      %v4972 = vand.u32 %v4971, 4294901760
      %v4973 = vsub.f32 %v4971, %v4972
      %v4974 = vand.u32 %v4973, 4294901760
      %4975 = vmatmul.mubr.f32.gmra.mrb[0].mxu0 %v4974
      %v4976 = vpop.f32.mrb[0].mxu0
      %v4977 = vadd.f32 0.0, %v4976
      %v4978 = vpop.f32.mrb[0].mxu0
      %4979 = vdwg.mxu0
      %4980 = vmatprep.subr.mxu0 0.0
      %v4981 = vand.u32 %v4890, 4294901760
      %v4982 = vsub.f32 %v4890, %v4981
      %v4983 = vand.u32 %v4982, 4294901760
      %v4984 = vsub.f32 %v4982, %v4983
      %v4985 = vand.u32 %v4984, 4294901760
      %4986 = vmatpush1.msra.mxu0 %v4985
      %4987 = vmatprep.subr.mxu0 0.0
      %v4988 = vand.u32 %v4892, 4294901760
      %v4989 = vsub.f32 %v4892, %v4988
      %v4990 = vand.u32 %v4989, 4294901760
      %v4991 = vsub.f32 %v4989, %v4990
      %v4992 = vand.u32 %v4991, 4294901760
      %4993 = vmatpush1.msra.mxu0 %v4992
      %4994 = vmatprep.subr.mxu0 0.0
      %v4995 = vand.u32 %v4900, 4294901760
      %v4996 = vsub.f32 %v4900, %v4995
      %v4997 = vand.u32 %v4996, 4294901760
      %v4998 = vsub.f32 %v4996, %v4997
      %v4999 = vand.u32 %v4998, 4294901760
      %5000 = vmatpush1.msra.mxu0 %v4999
      %5001 = vmatprep.subr.mxu0 0.0
      %5002 = vmatpush1.msra.mxu0 0.0
      %5003 = vmatprep.subr.mxu0 0.0
      %5004 = vmatpush1.msra.mxu0 0.0
      %5005 = vmatprep.subr.mxu0 0.0
      %5006 = vmatpush1.msra.mxu0 0.0
      %5007 = vmatprep.subr.mxu0 0.0
      %5008 = vmatpush1.msra.mxu0 0.0
      %5009 = vmatprep.subr.mxu0 0.0
      %5010 = vmatpush1.msra.mxu0 0.0
      %5011 = vmatprep.subr.mxu0 0.0
      %5012 = vmatpush1.msra.mxu0 0.0
      %5013 = vmatprep.subr.mxu0 0.0
      %5014 = vmatpush1.msra.mxu0 0.0
      %5015 = vmatprep.subr.mxu0 0.0
      %5016 = vmatpush1.msra.mxu0 0.0
      %5017 = vmatprep.subr.mxu0 0.0
      %5018 = vmatpush1.msra.mxu0 0.0
      %5019 = vmatprep.subr.mxu0 0.0
      %5020 = vmatpush1.msra.mxu0 0.0
      %5021 = vmatprep.subr.mxu0 0.0
      %5022 = vmatpush1.msra.mxu0 0.0
      %5023 = vmatprep.subr.mxu0 0.0
      %5024 = vmatpush1.msra.mxu0 0.0
      %5025 = vmatprep.subr.mxu0 0.0
      %5026 = vmatpush1.msra.mxu0 0.0
      %5027 = vmatprep.subr.mxu0 0.0
      %5028 = vmatpush1.msra.mxu0 0.0
      %5029 = vmatprep.subr.mxu0 0.0
      %5030 = vmatpush1.msra.mxu0 0.0
      %5031 = vmatprep.subr.mxu0 0.0
      %5032 = vmatpush1.msra.mxu0 0.0
      %5033 = vmatprep.subr.mxu0 0.0
      %5034 = vmatpush1.msra.mxu0 0.0
      %5035 = vmatprep.subr.mxu0 0.0
      %5036 = vmatpush1.msra.mxu0 0.0
      %5037 = vmatprep.subr.mxu0 0.0
      %5038 = vmatpush1.msra.mxu0 0.0
      %5039 = vmatprep.subr.mxu0 0.0
      %5040 = vmatpush1.msra.mxu0 0.0
      %5041 = vmatprep.subr.mxu0 0.0
      %5042 = vmatpush1.msra.mxu0 0.0
      %5043 = vmatprep.subr.mxu0 0.0
      %5044 = vmatpush1.msra.mxu0 0.0
      %5045 = vmatprep.subr.mxu0 0.0
      %5046 = vmatpush1.msra.mxu0 0.0
      %5047 = vmatprep.subr.mxu0 0.0
      %5048 = vmatpush1.msra.mxu0 0.0
      %5049 = vmatprep.subr.mxu0 0.0
      %5050 = vmatpush1.msra.mxu0 0.0
      %5051 = vmatprep.subr.mxu0 0.0
      %5052 = vmatpush1.msra.mxu0 0.0
      %5053 = vmatprep.subr.mxu0 0.0
      %5054 = vmatpush1.msra.mxu0 0.0
      %5055 = vmatprep.subr.mxu0 0.0
      %5056 = vmatpush1.msra.mxu0 0.0
      %5057 = vmatprep.subr.mxu0 0.0
      %5058 = vmatpush1.msra.mxu0 0.0
      %5059 = vmatprep.mubr.f32.mxu0 0.0
      %v5060 = vand.u32 %v4898, 4294901760
      %5061 = vmatmul.mubr.f32.gmra.mrb[0].mxu0 %v5060
      %v5062 = vpop.f32.mrb[0].mxu0
      %v5063 = vadd.f32 %v4977, %v5062
      %v5064 = vpop.f32.mrb[0].mxu0
      %5065 = vdwg.mxu0
      %5066 = vmatprep.subr.mxu0 0.0
      %v5067 = vand.u32 %v4890, 4294901760
      %v5068 = vsub.f32 %v4890, %v5067
      %5069 = vmatpush1.msra.mxu0 %v5068
      %5070 = vmatprep.subr.mxu0 0.0
      %v5071 = vand.u32 %v4892, 4294901760
      %v5072 = vsub.f32 %v4892, %v5071
      %5073 = vmatpush1.msra.mxu0 %v5072
      %5074 = vmatprep.subr.mxu0 0.0
      %v5075 = vand.u32 %v4900, 4294901760
      %v5076 = vsub.f32 %v4900, %v5075
      %5077 = vmatpush1.msra.mxu0 %v5076
      %5078 = vmatprep.subr.mxu0 0.0
      %5079 = vmatpush1.msra.mxu0 0.0
      %5080 = vmatprep.subr.mxu0 0.0
      %5081 = vmatpush1.msra.mxu0 0.0
      %5082 = vmatprep.subr.mxu0 0.0
      %5083 = vmatpush1.msra.mxu0 0.0
      %5084 = vmatprep.subr.mxu0 0.0
      %5085 = vmatpush1.msra.mxu0 0.0
      %5086 = vmatprep.subr.mxu0 0.0
      %5087 = vmatpush1.msra.mxu0 0.0
      %5088 = vmatprep.subr.mxu0 0.0
      %5089 = vmatpush1.msra.mxu0 0.0
      %5090 = vmatprep.subr.mxu0 0.0
      %5091 = vmatpush1.msra.mxu0 0.0
      %5092 = vmatprep.subr.mxu0 0.0
      %5093 = vmatpush1.msra.mxu0 0.0
      %5094 = vmatprep.subr.mxu0 0.0
      %5095 = vmatpush1.msra.mxu0 0.0
      %5096 = vmatprep.subr.mxu0 0.0
      %5097 = vmatpush1.msra.mxu0 0.0
      %5098 = vmatprep.subr.mxu0 0.0
      %5099 = vmatpush1.msra.mxu0 0.0
      %5100 = vmatprep.subr.mxu0 0.0
      %5101 = vmatpush1.msra.mxu0 0.0
      %5102 = vmatprep.subr.mxu0 0.0
      %5103 = vmatpush1.msra.mxu0 0.0
      %5104 = vmatprep.subr.mxu0 0.0
      %5105 = vmatpush1.msra.mxu0 0.0
      %5106 = vmatprep.subr.mxu0 0.0
      %5107 = vmatpush1.msra.mxu0 0.0
      %5108 = vmatprep.subr.mxu0 0.0
      %5109 = vmatpush1.msra.mxu0 0.0
      %5110 = vmatprep.subr.mxu0 0.0
      %5111 = vmatpush1.msra.mxu0 0.0
      %5112 = vmatprep.subr.mxu0 0.0
      %5113 = vmatpush1.msra.mxu0 0.0
      %5114 = vmatprep.subr.mxu0 0.0
      %5115 = vmatpush1.msra.mxu0 0.0
      %5116 = vmatprep.subr.mxu0 0.0
      %5117 = vmatpush1.msra.mxu0 0.0
      %5118 = vmatprep.subr.mxu0 0.0
      %5119 = vmatpush1.msra.mxu0 0.0
      %5120 = vmatprep.subr.mxu0 0.0
      %5121 = vmatpush1.msra.mxu0 0.0
      %5122 = vmatprep.subr.mxu0 0.0
      %5123 = vmatpush1.msra.mxu0 0.0
      %5124 = vmatprep.subr.mxu0 0.0
      %5125 = vmatpush1.msra.mxu0 0.0
      %5126 = vmatprep.subr.mxu0 0.0
      %5127 = vmatpush1.msra.mxu0 0.0
      %5128 = vmatprep.subr.mxu0 0.0
      %5129 = vmatpush1.msra.mxu0 0.0
      %5130 = vmatprep.subr.mxu0 0.0
      %5131 = vmatpush1.msra.mxu0 0.0
      %5132 = vmatprep.subr.mxu0 0.0
      %5133 = vmatpush1.msra.mxu0 0.0
      %5134 = vmatprep.subr.mxu0 0.0
      %5135 = vmatpush1.msra.mxu0 0.0
      %5136 = vmatprep.mubr.f32.mxu0 0.0
      %v5137 = vand.u32 %v4898, 4294901760
      %v5138 = vsub.f32 %v4898, %v5137
      %5139 = vmatmul.mubr.f32.gmra.mrb[0].mxu0 %v5138
      %v5140 = vpop.f32.mrb[0].mxu0
      %v5141 = vadd.f32 %v5063, %v5140
      %v5142 = vpop.f32.mrb[0].mxu0
      %5143 = vdwg.mxu0
      %5144 = vmatprep.subr.mxu0 0.0
      %v5145 = vand.u32 %v4890, 4294901760
      %5146 = vmatpush1.msra.mxu0 %v5145
      %5147 = vmatprep.subr.mxu0 0.0
      %v5148 = vand.u32 %v4892, 4294901760
      %5149 = vmatpush1.msra.mxu0 %v5148
      %5150 = vmatprep.subr.mxu0 0.0
      %v5151 = vand.u32 %v4900, 4294901760
      %5152 = vmatpush1.msra.mxu0 %v5151
      %5153 = vmatprep.subr.mxu0 0.0
      %5154 = vmatpush1.msra.mxu0 0.0
      %5155 = vmatprep.subr.mxu0 0.0
      %5156 = vmatpush1.msra.mxu0 0.0
      %5157 = vmatprep.subr.mxu0 0.0
      %5158 = vmatpush1.msra.mxu0 0.0
      %5159 = vmatprep.subr.mxu0 0.0
      %5160 = vmatpush1.msra.mxu0 0.0
      %5161 = vmatprep.subr.mxu0 0.0
      %5162 = vmatpush1.msra.mxu0 0.0
      %5163 = vmatprep.subr.mxu0 0.0
      %5164 = vmatpush1.msra.mxu0 0.0
      %5165 = vmatprep.subr.mxu0 0.0
      %5166 = vmatpush1.msra.mxu0 0.0
      %5167 = vmatprep.subr.mxu0 0.0
      %5168 = vmatpush1.msra.mxu0 0.0
      %5169 = vmatprep.subr.mxu0 0.0
      %5170 = vmatpush1.msra.mxu0 0.0
      %5171 = vmatprep.subr.mxu0 0.0
      %5172 = vmatpush1.msra.mxu0 0.0
      %5173 = vmatprep.subr.mxu0 0.0
      %5174 = vmatpush1.msra.mxu0 0.0
      %5175 = vmatprep.subr.mxu0 0.0
      %5176 = vmatpush1.msra.mxu0 0.0
      %5177 = vmatprep.subr.mxu0 0.0
      %5178 = vmatpush1.msra.mxu0 0.0
      %5179 = vmatprep.subr.mxu0 0.0
      %5180 = vmatpush1.msra.mxu0 0.0
      %5181 = vmatprep.subr.mxu0 0.0
      %5182 = vmatpush1.msra.mxu0 0.0
      %5183 = vmatprep.subr.mxu0 0.0
      %5184 = vmatpush1.msra.mxu0 0.0
      %5185 = vmatprep.subr.mxu0 0.0
      %5186 = vmatpush1.msra.mxu0 0.0
      %5187 = vmatprep.subr.mxu0 0.0
      %5188 = vmatpush1.msra.mxu0 0.0
      %5189 = vmatprep.subr.mxu0 0.0
      %5190 = vmatpush1.msra.mxu0 0.0
      %5191 = vmatprep.subr.mxu0 0.0
      %5192 = vmatpush1.msra.mxu0 0.0
      %5193 = vmatprep.subr.mxu0 0.0
      %5194 = vmatpush1.msra.mxu0 0.0
      %5195 = vmatprep.subr.mxu0 0.0
      %5196 = vmatpush1.msra.mxu0 0.0
      %5197 = vmatprep.subr.mxu0 0.0
      %5198 = vmatpush1.msra.mxu0 0.0
      %5199 = vmatprep.subr.mxu0 0.0
      %5200 = vmatpush1.msra.mxu0 0.0
      %5201 = vmatprep.subr.mxu0 0.0
      %5202 = vmatpush1.msra.mxu0 0.0
      %5203 = vmatprep.subr.mxu0 0.0
      %5204 = vmatpush1.msra.mxu0 0.0
      %5205 = vmatprep.subr.mxu0 0.0
      %5206 = vmatpush1.msra.mxu0 0.0
      %5207 = vmatprep.subr.mxu0 0.0
      %5208 = vmatpush1.msra.mxu0 0.0
      %5209 = vmatprep.subr.mxu0 0.0
      %5210 = vmatpush1.msra.mxu0 0.0
      %5211 = vmatprep.mubr.f32.mxu0 0.0
      %v5212 = vand.u32 %v4898, 4294901760
      %v5213 = vsub.f32 %v4898, %v5212
      %v5214 = vand.u32 %v5213, 4294901760
      %5215 = vmatmul.mubr.f32.gmra.mrb[0].mxu0 %v5214
      %v5216 = vpop.f32.mrb[0].mxu0
      %v5217 = vadd.f32 %v5141, %v5216
      %v5218 = vpop.f32.mrb[0].mxu0
      %5219 = vdwg.mxu0
      %5220 = vmatprep.subr.mxu0 0.0
      %v5221 = vand.u32 %v4890, 4294901760
      %v5222 = vsub.f32 %v4890, %v5221
      %v5223 = vand.u32 %v5222, 4294901760
      %5224 = vmatpush1.msra.mxu0 %v5223
      %5225 = vmatprep.subr.mxu0 0.0
      %v5226 = vand.u32 %v4892, 4294901760
      %v5227 = vsub.f32 %v4892, %v5226
      %v5228 = vand.u32 %v5227, 4294901760
      %5229 = vmatpush1.msra.mxu0 %v5228
      %5230 = vmatprep.subr.mxu0 0.0
      %v5231 = vand.u32 %v4900, 4294901760
      %v5232 = vsub.f32 %v4900, %v5231
      %v5233 = vand.u32 %v5232, 4294901760
      %5234 = vmatpush1.msra.mxu0 %v5233
      %5235 = vmatprep.subr.mxu0 0.0
      %5236 = vmatpush1.msra.mxu0 0.0
      %5237 = vmatprep.subr.mxu0 0.0
      %5238 = vmatpush1.msra.mxu0 0.0
      %5239 = vmatprep.subr.mxu0 0.0
      %5240 = vmatpush1.msra.mxu0 0.0
      %5241 = vmatprep.subr.mxu0 0.0
      %5242 = vmatpush1.msra.mxu0 0.0
      %5243 = vmatprep.subr.mxu0 0.0
      %5244 = vmatpush1.msra.mxu0 0.0
      %5245 = vmatprep.subr.mxu0 0.0
      %5246 = vmatpush1.msra.mxu0 0.0
      %5247 = vmatprep.subr.mxu0 0.0
      %5248 = vmatpush1.msra.mxu0 0.0
      %5249 = vmatprep.subr.mxu0 0.0
      %5250 = vmatpush1.msra.mxu0 0.0
      %5251 = vmatprep.subr.mxu0 0.0
      %5252 = vmatpush1.msra.mxu0 0.0
      %5253 = vmatprep.subr.mxu0 0.0
      %5254 = vmatpush1.msra.mxu0 0.0
      %5255 = vmatprep.subr.mxu0 0.0
      %5256 = vmatpush1.msra.mxu0 0.0
      %5257 = vmatprep.subr.mxu0 0.0
      %5258 = vmatpush1.msra.mxu0 0.0
      %5259 = vmatprep.subr.mxu0 0.0
      %5260 = vmatpush1.msra.mxu0 0.0
      %5261 = vmatprep.subr.mxu0 0.0
      %5262 = vmatpush1.msra.mxu0 0.0
      %5263 = vmatprep.subr.mxu0 0.0
      %5264 = vmatpush1.msra.mxu0 0.0
      %5265 = vmatprep.subr.mxu0 0.0
      %5266 = vmatpush1.msra.mxu0 0.0
      %5267 = vmatprep.subr.mxu0 0.0
      %5268 = vmatpush1.msra.mxu0 0.0
      %5269 = vmatprep.subr.mxu0 0.0
      %5270 = vmatpush1.msra.mxu0 0.0
      %5271 = vmatprep.subr.mxu0 0.0
      %5272 = vmatpush1.msra.mxu0 0.0
      %5273 = vmatprep.subr.mxu0 0.0
      %5274 = vmatpush1.msra.mxu0 0.0
      %5275 = vmatprep.subr.mxu0 0.0
      %5276 = vmatpush1.msra.mxu0 0.0
      %5277 = vmatprep.subr.mxu0 0.0
      %5278 = vmatpush1.msra.mxu0 0.0
      %5279 = vmatprep.subr.mxu0 0.0
      %5280 = vmatpush1.msra.mxu0 0.0
      %5281 = vmatprep.subr.mxu0 0.0
      %5282 = vmatpush1.msra.mxu0 0.0
      %5283 = vmatprep.subr.mxu0 0.0
      %5284 = vmatpush1.msra.mxu0 0.0
      %5285 = vmatprep.subr.mxu0 0.0
      %5286 = vmatpush1.msra.mxu0 0.0
      %5287 = vmatprep.subr.mxu0 0.0
      %5288 = vmatpush1.msra.mxu0 0.0
      %5289 = vmatprep.subr.mxu0 0.0
      %5290 = vmatpush1.msra.mxu0 0.0
      %5291 = vmatprep.subr.mxu0 0.0
      %5292 = vmatpush1.msra.mxu0 0.0
      %5293 = vmatprep.mubr.f32.mxu0 0.0
      %v5294 = vand.u32 %v4898, 4294901760
      %5295 = vmatmul.mubr.f32.gmra.mrb[0].mxu0 %v5294
      %v5296 = vpop.f32.mrb[0].mxu0
      %v5297 = vadd.f32 %v5217, %v5296
      %v5298 = vpop.f32.mrb[0].mxu0
      %5299 = vdwg.mxu0
      %5300 = vmatprep.subr.mxu0 0.0
      %v5301 = vand.u32 %v4890, 4294901760
      %5302 = vmatpush1.msra.mxu0 %v5301
      %5303 = vmatprep.subr.mxu0 0.0
      %v5304 = vand.u32 %v4892, 4294901760
      %5305 = vmatpush1.msra.mxu0 %v5304
      %5306 = vmatprep.subr.mxu0 0.0
      %v5307 = vand.u32 %v4900, 4294901760
      %5308 = vmatpush1.msra.mxu0 %v5307
      %5309 = vmatprep.subr.mxu0 0.0
      %5310 = vmatpush1.msra.mxu0 0.0
      %5311 = vmatprep.subr.mxu0 0.0
      %5312 = vmatpush1.msra.mxu0 0.0
      %5313 = vmatprep.subr.mxu0 0.0
      %5314 = vmatpush1.msra.mxu0 0.0
      %5315 = vmatprep.subr.mxu0 0.0
      %5316 = vmatpush1.msra.mxu0 0.0
      %5317 = vmatprep.subr.mxu0 0.0
      %5318 = vmatpush1.msra.mxu0 0.0
      %5319 = vmatprep.subr.mxu0 0.0
      %5320 = vmatpush1.msra.mxu0 0.0
      %5321 = vmatprep.subr.mxu0 0.0
      %5322 = vmatpush1.msra.mxu0 0.0
      %5323 = vmatprep.subr.mxu0 0.0
      %5324 = vmatpush1.msra.mxu0 0.0
      %5325 = vmatprep.subr.mxu0 0.0
      %5326 = vmatpush1.msra.mxu0 0.0
      %5327 = vmatprep.subr.mxu0 0.0
      %5328 = vmatpush1.msra.mxu0 0.0
      %5329 = vmatprep.subr.mxu0 0.0
      %5330 = vmatpush1.msra.mxu0 0.0
      %5331 = vmatprep.subr.mxu0 0.0
      %5332 = vmatpush1.msra.mxu0 0.0
      %5333 = vmatprep.subr.mxu0 0.0
      %5334 = vmatpush1.msra.mxu0 0.0
      %5335 = vmatprep.subr.mxu0 0.0
      %5336 = vmatpush1.msra.mxu0 0.0
      %5337 = vmatprep.subr.mxu0 0.0
      %5338 = vmatpush1.msra.mxu0 0.0
      %5339 = vmatprep.subr.mxu0 0.0
      %5340 = vmatpush1.msra.mxu0 0.0
      %5341 = vmatprep.subr.mxu0 0.0
      %5342 = vmatpush1.msra.mxu0 0.0
      %5343 = vmatprep.subr.mxu0 0.0
      %5344 = vmatpush1.msra.mxu0 0.0
      %5345 = vmatprep.subr.mxu0 0.0
      %5346 = vmatpush1.msra.mxu0 0.0
      %5347 = vmatprep.subr.mxu0 0.0
      %5348 = vmatpush1.msra.mxu0 0.0
      %5349 = vmatprep.subr.mxu0 0.0
      %5350 = vmatpush1.msra.mxu0 0.0
      %5351 = vmatprep.subr.mxu0 0.0
      %5352 = vmatpush1.msra.mxu0 0.0
      %5353 = vmatprep.subr.mxu0 0.0
      %5354 = vmatpush1.msra.mxu0 0.0
      %5355 = vmatprep.subr.mxu0 0.0
      %5356 = vmatpush1.msra.mxu0 0.0
      %5357 = vmatprep.subr.mxu0 0.0
      %5358 = vmatpush1.msra.mxu0 0.0
      %5359 = vmatprep.subr.mxu0 0.0
      %5360 = vmatpush1.msra.mxu0 0.0
      %5361 = vmatprep.subr.mxu0 0.0
      %5362 = vmatpush1.msra.mxu0 0.0
      %5363 = vmatprep.subr.mxu0 0.0
      %5364 = vmatpush1.msra.mxu0 0.0
      %5365 = vmatprep.subr.mxu0 0.0
      %5366 = vmatpush1.msra.mxu0 0.0
      %5367 = vmatprep.mubr.f32.mxu0 0.0
      %v5368 = vand.u32 %v4898, 4294901760
      %5369 = vmatmul.mubr.f32.gmra.mrb[0].mxu0 %v5368
      %v5370 = vpop.f32.mrb[0].mxu0
      %v5371 = vadd.f32 %v5297, %v5370
      %v5372 = vpop.f32.mrb[0].mxu0
      %5373 = vdwg.mxu0
      %v5374 = vadd.f32 %v4886, %v5371
      %s5375 = scalar_lea.vmem %s3, 12
      %v5376 = vld [vmem:[%s5375] sm:$0x3]
      %5377 = vrot.lane.b32.xlu0 %v2448, 122
      %v5378 = vpop.permute.xlu0 %5377
      %5379 = vrot.lane.b32.xlu0 %v2450, 122
      %v5380 = vpop.permute.xlu0 %5379
      %5381 = vrot.lane.b32.xlu0 %v2452, 122
      %v5382 = vpop.permute.xlu0 %5381
      %v5386 = vsel %vm2467, %v5376, 0
      %v5388 = vsel %vm2471, %v5382, 0
      %5390 = vmatprep.subr.mxu0 0.0
      %v5391 = vand.u32 %v5378, 4294901760
      %5392 = vmatpush1.msra.mxu0 %v5391
      %5393 = vmatprep.subr.mxu0 0.0
      %v5394 = vand.u32 %v5380, 4294901760
      %5395 = vmatpush1.msra.mxu0 %v5394
      %5396 = vmatprep.subr.mxu0 0.0
      %v5397 = vand.u32 %v5388, 4294901760
      %5398 = vmatpush1.msra.mxu0 %v5397
      %5399 = vmatprep.subr.mxu0 0.0
      %5400 = vmatpush1.msra.mxu0 0.0
      %5401 = vmatprep.subr.mxu0 0.0
      %5402 = vmatpush1.msra.mxu0 0.0
      %5403 = vmatprep.subr.mxu0 0.0
      %5404 = vmatpush1.msra.mxu0 0.0
      %5405 = vmatprep.subr.mxu0 0.0
      %5406 = vmatpush1.msra.mxu0 0.0
      %5407 = vmatprep.subr.mxu0 0.0
      %5408 = vmatpush1.msra.mxu0 0.0
      %5409 = vmatprep.subr.mxu0 0.0
      %5410 = vmatpush1.msra.mxu0 0.0
      %5411 = vmatprep.subr.mxu0 0.0
      %5412 = vmatpush1.msra.mxu0 0.0
      %5413 = vmatprep.subr.mxu0 0.0
      %5414 = vmatpush1.msra.mxu0 0.0
      %5415 = vmatprep.subr.mxu0 0.0
      %5416 = vmatpush1.msra.mxu0 0.0
      %5417 = vmatprep.subr.mxu0 0.0
      %5418 = vmatpush1.msra.mxu0 0.0
      %5419 = vmatprep.subr.mxu0 0.0
      %5420 = vmatpush1.msra.mxu0 0.0
      %5421 = vmatprep.subr.mxu0 0.0
      %5422 = vmatpush1.msra.mxu0 0.0
      %5423 = vmatprep.subr.mxu0 0.0
      %5424 = vmatpush1.msra.mxu0 0.0
      %5425 = vmatprep.subr.mxu0 0.0
      %5426 = vmatpush1.msra.mxu0 0.0
      %5427 = vmatprep.subr.mxu0 0.0
      %5428 = vmatpush1.msra.mxu0 0.0
      %5429 = vmatprep.subr.mxu0 0.0
      %5430 = vmatpush1.msra.mxu0 0.0
      %5431 = vmatprep.subr.mxu0 0.0
      %5432 = vmatpush1.msra.mxu0 0.0
      %5433 = vmatprep.subr.mxu0 0.0
      %5434 = vmatpush1.msra.mxu0 0.0
      %5435 = vmatprep.subr.mxu0 0.0
      %5436 = vmatpush1.msra.mxu0 0.0
      %5437 = vmatprep.subr.mxu0 0.0
      %5438 = vmatpush1.msra.mxu0 0.0
      %5439 = vmatprep.subr.mxu0 0.0
      %5440 = vmatpush1.msra.mxu0 0.0
      %5441 = vmatprep.subr.mxu0 0.0
      %5442 = vmatpush1.msra.mxu0 0.0
      %5443 = vmatprep.subr.mxu0 0.0
      %5444 = vmatpush1.msra.mxu0 0.0
      %5445 = vmatprep.subr.mxu0 0.0
      %5446 = vmatpush1.msra.mxu0 0.0
      %5447 = vmatprep.subr.mxu0 0.0
      %5448 = vmatpush1.msra.mxu0 0.0
      %5449 = vmatprep.subr.mxu0 0.0
      %5450 = vmatpush1.msra.mxu0 0.0
      %5451 = vmatprep.subr.mxu0 0.0
      %5452 = vmatpush1.msra.mxu0 0.0
      %5453 = vmatprep.subr.mxu0 0.0
      %5454 = vmatpush1.msra.mxu0 0.0
      %5455 = vmatprep.subr.mxu0 0.0
      %5456 = vmatpush1.msra.mxu0 0.0
      %5457 = vmatprep.mubr.f32.mxu0 0.0
      %v5458 = vand.u32 %v5386, 4294901760
      %v5459 = vsub.f32 %v5386, %v5458
      %v5460 = vand.u32 %v5459, 4294901760
      %v5461 = vsub.f32 %v5459, %v5460
      %v5462 = vand.u32 %v5461, 4294901760
      %5463 = vmatmul.mubr.f32.gmra.mrb[0].mxu0 %v5462
      %v5464 = vpop.f32.mrb[0].mxu0
      %v5465 = vadd.f32 0.0, %v5464
      %v5466 = vpop.f32.mrb[0].mxu0
      %5467 = vdwg.mxu0
      %5468 = vmatprep.subr.mxu0 0.0
      %v5469 = vand.u32 %v5378, 4294901760
      %v5470 = vsub.f32 %v5378, %v5469
      %v5471 = vand.u32 %v5470, 4294901760
      %v5472 = vsub.f32 %v5470, %v5471
      %v5473 = vand.u32 %v5472, 4294901760
      %5474 = vmatpush1.msra.mxu0 %v5473
      %5475 = vmatprep.subr.mxu0 0.0
      %v5476 = vand.u32 %v5380, 4294901760
      %v5477 = vsub.f32 %v5380, %v5476
      %v5478 = vand.u32 %v5477, 4294901760
      %v5479 = vsub.f32 %v5477, %v5478
      %v5480 = vand.u32 %v5479, 4294901760
      %5481 = vmatpush1.msra.mxu0 %v5480
      %5482 = vmatprep.subr.mxu0 0.0
      %v5483 = vand.u32 %v5388, 4294901760
      %v5484 = vsub.f32 %v5388, %v5483
      %v5485 = vand.u32 %v5484, 4294901760
      %v5486 = vsub.f32 %v5484, %v5485
      %v5487 = vand.u32 %v5486, 4294901760
      %5488 = vmatpush1.msra.mxu0 %v5487
      %5489 = vmatprep.subr.mxu0 0.0
      %5490 = vmatpush1.msra.mxu0 0.0
      %5491 = vmatprep.subr.mxu0 0.0
      %5492 = vmatpush1.msra.mxu0 0.0
      %5493 = vmatprep.subr.mxu0 0.0
      %5494 = vmatpush1.msra.mxu0 0.0
      %5495 = vmatprep.subr.mxu0 0.0
      %5496 = vmatpush1.msra.mxu0 0.0
      %5497 = vmatprep.subr.mxu0 0.0
      %5498 = vmatpush1.msra.mxu0 0.0
      %5499 = vmatprep.subr.mxu0 0.0
      %5500 = vmatpush1.msra.mxu0 0.0
      %5501 = vmatprep.subr.mxu0 0.0
      %5502 = vmatpush1.msra.mxu0 0.0
      %5503 = vmatprep.subr.mxu0 0.0
      %5504 = vmatpush1.msra.mxu0 0.0
      %5505 = vmatprep.subr.mxu0 0.0
      %5506 = vmatpush1.msra.mxu0 0.0
      %5507 = vmatprep.subr.mxu0 0.0
      %5508 = vmatpush1.msra.mxu0 0.0
      %5509 = vmatprep.subr.mxu0 0.0
      %5510 = vmatpush1.msra.mxu0 0.0
      %5511 = vmatprep.subr.mxu0 0.0
      %5512 = vmatpush1.msra.mxu0 0.0
      %5513 = vmatprep.subr.mxu0 0.0
      %5514 = vmatpush1.msra.mxu0 0.0
      %5515 = vmatprep.subr.mxu0 0.0
      %5516 = vmatpush1.msra.mxu0 0.0
      %5517 = vmatprep.subr.mxu0 0.0
      %5518 = vmatpush1.msra.mxu0 0.0
      %5519 = vmatprep.subr.mxu0 0.0
      %5520 = vmatpush1.msra.mxu0 0.0
      %5521 = vmatprep.subr.mxu0 0.0
      %5522 = vmatpush1.msra.mxu0 0.0
      %5523 = vmatprep.subr.mxu0 0.0
      %5524 = vmatpush1.msra.mxu0 0.0
      %5525 = vmatprep.subr.mxu0 0.0
      %5526 = vmatpush1.msra.mxu0 0.0
      %5527 = vmatprep.subr.mxu0 0.0
      %5528 = vmatpush1.msra.mxu0 0.0
      %5529 = vmatprep.subr.mxu0 0.0
      %5530 = vmatpush1.msra.mxu0 0.0
      %5531 = vmatprep.subr.mxu0 0.0
      %5532 = vmatpush1.msra.mxu0 0.0
      %5533 = vmatprep.subr.mxu0 0.0
      %5534 = vmatpush1.msra.mxu0 0.0
      %5535 = vmatprep.subr.mxu0 0.0
      %5536 = vmatpush1.msra.mxu0 0.0
      %5537 = vmatprep.subr.mxu0 0.0
      %5538 = vmatpush1.msra.mxu0 0.0
      %5539 = vmatprep.subr.mxu0 0.0
      %5540 = vmatpush1.msra.mxu0 0.0
      %5541 = vmatprep.subr.mxu0 0.0
      %5542 = vmatpush1.msra.mxu0 0.0
      %5543 = vmatprep.subr.mxu0 0.0
      %5544 = vmatpush1.msra.mxu0 0.0
      %5545 = vmatprep.subr.mxu0 0.0
      %5546 = vmatpush1.msra.mxu0 0.0
      %5547 = vmatprep.mubr.f32.mxu0 0.0
      %v5548 = vand.u32 %v5386, 4294901760
      %5549 = vmatmul.mubr.f32.gmra.mrb[0].mxu0 %v5548
      %v5550 = vpop.f32.mrb[0].mxu0
      %v5551 = vadd.f32 %v5465, %v5550
      %v5552 = vpop.f32.mrb[0].mxu0
      %5553 = vdwg.mxu0
      %5554 = vmatprep.subr.mxu0 0.0
      %v5555 = vand.u32 %v5378, 4294901760
      %v5556 = vsub.f32 %v5378, %v5555
      %5557 = vmatpush1.msra.mxu0 %v5556
      %5558 = vmatprep.subr.mxu0 0.0
      %v5559 = vand.u32 %v5380, 4294901760
      %v5560 = vsub.f32 %v5380, %v5559
      %5561 = vmatpush1.msra.mxu0 %v5560
      %5562 = vmatprep.subr.mxu0 0.0
      %v5563 = vand.u32 %v5388, 4294901760
      %v5564 = vsub.f32 %v5388, %v5563
      %5565 = vmatpush1.msra.mxu0 %v5564
      %5566 = vmatprep.subr.mxu0 0.0
      %5567 = vmatpush1.msra.mxu0 0.0
      %5568 = vmatprep.subr.mxu0 0.0
      %5569 = vmatpush1.msra.mxu0 0.0
      %5570 = vmatprep.subr.mxu0 0.0
      %5571 = vmatpush1.msra.mxu0 0.0
      %5572 = vmatprep.subr.mxu0 0.0
      %5573 = vmatpush1.msra.mxu0 0.0
      %5574 = vmatprep.subr.mxu0 0.0
      %5575 = vmatpush1.msra.mxu0 0.0
      %5576 = vmatprep.subr.mxu0 0.0
      %5577 = vmatpush1.msra.mxu0 0.0
      %5578 = vmatprep.subr.mxu0 0.0
      %5579 = vmatpush1.msra.mxu0 0.0
      %5580 = vmatprep.subr.mxu0 0.0
      %5581 = vmatpush1.msra.mxu0 0.0
      %5582 = vmatprep.subr.mxu0 0.0
      %5583 = vmatpush1.msra.mxu0 0.0
      %5584 = vmatprep.subr.mxu0 0.0
      %5585 = vmatpush1.msra.mxu0 0.0
      %5586 = vmatprep.subr.mxu0 0.0
      %5587 = vmatpush1.msra.mxu0 0.0
      %5588 = vmatprep.subr.mxu0 0.0
      %5589 = vmatpush1.msra.mxu0 0.0
      %5590 = vmatprep.subr.mxu0 0.0
      %5591 = vmatpush1.msra.mxu0 0.0
      %5592 = vmatprep.subr.mxu0 0.0
      %5593 = vmatpush1.msra.mxu0 0.0
      %5594 = vmatprep.subr.mxu0 0.0
      %5595 = vmatpush1.msra.mxu0 0.0
      %5596 = vmatprep.subr.mxu0 0.0
      %5597 = vmatpush1.msra.mxu0 0.0
      %5598 = vmatprep.subr.mxu0 0.0
      %5599 = vmatpush1.msra.mxu0 0.0
      %5600 = vmatprep.subr.mxu0 0.0
      %5601 = vmatpush1.msra.mxu0 0.0
      %5602 = vmatprep.subr.mxu0 0.0
      %5603 = vmatpush1.msra.mxu0 0.0
      %5604 = vmatprep.subr.mxu0 0.0
      %5605 = vmatpush1.msra.mxu0 0.0
      %5606 = vmatprep.subr.mxu0 0.0
      %5607 = vmatpush1.msra.mxu0 0.0
      %5608 = vmatprep.subr.mxu0 0.0
      %5609 = vmatpush1.msra.mxu0 0.0
      %5610 = vmatprep.subr.mxu0 0.0
      %5611 = vmatpush1.msra.mxu0 0.0
      %5612 = vmatprep.subr.mxu0 0.0
      %5613 = vmatpush1.msra.mxu0 0.0
      %5614 = vmatprep.subr.mxu0 0.0
      %5615 = vmatpush1.msra.mxu0 0.0
      %5616 = vmatprep.subr.mxu0 0.0
      %5617 = vmatpush1.msra.mxu0 0.0
      %5618 = vmatprep.subr.mxu0 0.0
      %5619 = vmatpush1.msra.mxu0 0.0
      %5620 = vmatprep.subr.mxu0 0.0
      %5621 = vmatpush1.msra.mxu0 0.0
      %5622 = vmatprep.subr.mxu0 0.0
      %5623 = vmatpush1.msra.mxu0 0.0
      %5624 = vmatprep.mubr.f32.mxu0 0.0
      %v5625 = vand.u32 %v5386, 4294901760
      %v5626 = vsub.f32 %v5386, %v5625
      %5627 = vmatmul.mubr.f32.gmra.mrb[0].mxu0 %v5626
      %v5628 = vpop.f32.mrb[0].mxu0
      %v5629 = vadd.f32 %v5551, %v5628
      %v5630 = vpop.f32.mrb[0].mxu0
      %5631 = vdwg.mxu0
      %5632 = vmatprep.subr.mxu0 0.0
      %v5633 = vand.u32 %v5378, 4294901760
      %5634 = vmatpush1.msra.mxu0 %v5633
      %5635 = vmatprep.subr.mxu0 0.0
      %v5636 = vand.u32 %v5380, 4294901760
      %5637 = vmatpush1.msra.mxu0 %v5636
      %5638 = vmatprep.subr.mxu0 0.0
      %v5639 = vand.u32 %v5388, 4294901760
      %5640 = vmatpush1.msra.mxu0 %v5639
      %5641 = vmatprep.subr.mxu0 0.0
      %5642 = vmatpush1.msra.mxu0 0.0
      %5643 = vmatprep.subr.mxu0 0.0
      %5644 = vmatpush1.msra.mxu0 0.0
      %5645 = vmatprep.subr.mxu0 0.0
      %5646 = vmatpush1.msra.mxu0 0.0
      %5647 = vmatprep.subr.mxu0 0.0
      %5648 = vmatpush1.msra.mxu0 0.0
      %5649 = vmatprep.subr.mxu0 0.0
      %5650 = vmatpush1.msra.mxu0 0.0
      %5651 = vmatprep.subr.mxu0 0.0
      %5652 = vmatpush1.msra.mxu0 0.0
      %5653 = vmatprep.subr.mxu0 0.0
      %5654 = vmatpush1.msra.mxu0 0.0
      %5655 = vmatprep.subr.mxu0 0.0
      %5656 = vmatpush1.msra.mxu0 0.0
      %5657 = vmatprep.subr.mxu0 0.0
      %5658 = vmatpush1.msra.mxu0 0.0
      %5659 = vmatprep.subr.mxu0 0.0
      %5660 = vmatpush1.msra.mxu0 0.0
      %5661 = vmatprep.subr.mxu0 0.0
      %5662 = vmatpush1.msra.mxu0 0.0
      %5663 = vmatprep.subr.mxu0 0.0
      %5664 = vmatpush1.msra.mxu0 0.0
      %5665 = vmatprep.subr.mxu0 0.0
      %5666 = vmatpush1.msra.mxu0 0.0
      %5667 = vmatprep.subr.mxu0 0.0
      %5668 = vmatpush1.msra.mxu0 0.0
      %5669 = vmatprep.subr.mxu0 0.0
      %5670 = vmatpush1.msra.mxu0 0.0
      %5671 = vmatprep.subr.mxu0 0.0
      %5672 = vmatpush1.msra.mxu0 0.0
      %5673 = vmatprep.subr.mxu0 0.0
      %5674 = vmatpush1.msra.mxu0 0.0
      %5675 = vmatprep.subr.mxu0 0.0
      %5676 = vmatpush1.msra.mxu0 0.0
      %5677 = vmatprep.subr.mxu0 0.0
      %5678 = vmatpush1.msra.mxu0 0.0
      %5679 = vmatprep.subr.mxu0 0.0
      %5680 = vmatpush1.msra.mxu0 0.0
      %5681 = vmatprep.subr.mxu0 0.0
      %5682 = vmatpush1.msra.mxu0 0.0
      %5683 = vmatprep.subr.mxu0 0.0
      %5684 = vmatpush1.msra.mxu0 0.0
      %5685 = vmatprep.subr.mxu0 0.0
      %5686 = vmatpush1.msra.mxu0 0.0
      %5687 = vmatprep.subr.mxu0 0.0
      %5688 = vmatpush1.msra.mxu0 0.0
      %5689 = vmatprep.subr.mxu0 0.0
      %5690 = vmatpush1.msra.mxu0 0.0
      %5691 = vmatprep.subr.mxu0 0.0
      %5692 = vmatpush1.msra.mxu0 0.0
      %5693 = vmatprep.subr.mxu0 0.0
      %5694 = vmatpush1.msra.mxu0 0.0
      %5695 = vmatprep.subr.mxu0 0.0
      %5696 = vmatpush1.msra.mxu0 0.0
      %5697 = vmatprep.subr.mxu0 0.0
      %5698 = vmatpush1.msra.mxu0 0.0
      %5699 = vmatprep.mubr.f32.mxu0 0.0
      %v5700 = vand.u32 %v5386, 4294901760
      %v5701 = vsub.f32 %v5386, %v5700
      %v5702 = vand.u32 %v5701, 4294901760
      %5703 = vmatmul.mubr.f32.gmra.mrb[0].mxu0 %v5702
      %v5704 = vpop.f32.mrb[0].mxu0
      %v5705 = vadd.f32 %v5629, %v5704
      %v5706 = vpop.f32.mrb[0].mxu0
      %5707 = vdwg.mxu0
      %5708 = vmatprep.subr.mxu0 0.0
      %v5709 = vand.u32 %v5378, 4294901760
      %v5710 = vsub.f32 %v5378, %v5709
      %v5711 = vand.u32 %v5710, 4294901760
      %5712 = vmatpush1.msra.mxu0 %v5711
      %5713 = vmatprep.subr.mxu0 0.0
      %v5714 = vand.u32 %v5380, 4294901760
      %v5715 = vsub.f32 %v5380, %v5714
      %v5716 = vand.u32 %v5715, 4294901760
      %5717 = vmatpush1.msra.mxu0 %v5716
      %5718 = vmatprep.subr.mxu0 0.0
      %v5719 = vand.u32 %v5388, 4294901760
      %v5720 = vsub.f32 %v5388, %v5719
      %v5721 = vand.u32 %v5720, 4294901760
      %5722 = vmatpush1.msra.mxu0 %v5721
      %5723 = vmatprep.subr.mxu0 0.0
      %5724 = vmatpush1.msra.mxu0 0.0
      %5725 = vmatprep.subr.mxu0 0.0
      %5726 = vmatpush1.msra.mxu0 0.0
      %5727 = vmatprep.subr.mxu0 0.0
      %5728 = vmatpush1.msra.mxu0 0.0
      %5729 = vmatprep.subr.mxu0 0.0
      %5730 = vmatpush1.msra.mxu0 0.0
      %5731 = vmatprep.subr.mxu0 0.0
      %5732 = vmatpush1.msra.mxu0 0.0
      %5733 = vmatprep.subr.mxu0 0.0
      %5734 = vmatpush1.msra.mxu0 0.0
      %5735 = vmatprep.subr.mxu0 0.0
      %5736 = vmatpush1.msra.mxu0 0.0
      %5737 = vmatprep.subr.mxu0 0.0
      %5738 = vmatpush1.msra.mxu0 0.0
      %5739 = vmatprep.subr.mxu0 0.0
      %5740 = vmatpush1.msra.mxu0 0.0
      %5741 = vmatprep.subr.mxu0 0.0
      %5742 = vmatpush1.msra.mxu0 0.0
      %5743 = vmatprep.subr.mxu0 0.0
      %5744 = vmatpush1.msra.mxu0 0.0
      %5745 = vmatprep.subr.mxu0 0.0
      %5746 = vmatpush1.msra.mxu0 0.0
      %5747 = vmatprep.subr.mxu0 0.0
      %5748 = vmatpush1.msra.mxu0 0.0
      %5749 = vmatprep.subr.mxu0 0.0
      %5750 = vmatpush1.msra.mxu0 0.0
      %5751 = vmatprep.subr.mxu0 0.0
      %5752 = vmatpush1.msra.mxu0 0.0
      %5753 = vmatprep.subr.mxu0 0.0
      %5754 = vmatpush1.msra.mxu0 0.0
      %5755 = vmatprep.subr.mxu0 0.0
      %5756 = vmatpush1.msra.mxu0 0.0
      %5757 = vmatprep.subr.mxu0 0.0
      %5758 = vmatpush1.msra.mxu0 0.0
      %5759 = vmatprep.subr.mxu0 0.0
      %5760 = vmatpush1.msra.mxu0 0.0
      %5761 = vmatprep.subr.mxu0 0.0
      %5762 = vmatpush1.msra.mxu0 0.0
      %5763 = vmatprep.subr.mxu0 0.0
      %5764 = vmatpush1.msra.mxu0 0.0
      %5765 = vmatprep.subr.mxu0 0.0
      %5766 = vmatpush1.msra.mxu0 0.0
      %5767 = vmatprep.subr.mxu0 0.0
      %5768 = vmatpush1.msra.mxu0 0.0
      %5769 = vmatprep.subr.mxu0 0.0
      %5770 = vmatpush1.msra.mxu0 0.0
      %5771 = vmatprep.subr.mxu0 0.0
      %5772 = vmatpush1.msra.mxu0 0.0
      %5773 = vmatprep.subr.mxu0 0.0
      %5774 = vmatpush1.msra.mxu0 0.0
      %5775 = vmatprep.subr.mxu0 0.0
      %5776 = vmatpush1.msra.mxu0 0.0
      %5777 = vmatprep.subr.mxu0 0.0
      %5778 = vmatpush1.msra.mxu0 0.0
      %5779 = vmatprep.subr.mxu0 0.0
      %5780 = vmatpush1.msra.mxu0 0.0
      %5781 = vmatprep.mubr.f32.mxu0 0.0
      %v5782 = vand.u32 %v5386, 4294901760
      %5783 = vmatmul.mubr.f32.gmra.mrb[0].mxu0 %v5782
      %v5784 = vpop.f32.mrb[0].mxu0
      %v5785 = vadd.f32 %v5705, %v5784
      %v5786 = vpop.f32.mrb[0].mxu0
      %5787 = vdwg.mxu0
      %5788 = vmatprep.subr.mxu0 0.0
      %v5789 = vand.u32 %v5378, 4294901760
      %5790 = vmatpush1.msra.mxu0 %v5789
      %5791 = vmatprep.subr.mxu0 0.0
      %v5792 = vand.u32 %v5380, 4294901760
      %5793 = vmatpush1.msra.mxu0 %v5792
      %5794 = vmatprep.subr.mxu0 0.0
      %v5795 = vand.u32 %v5388, 4294901760
      %5796 = vmatpush1.msra.mxu0 %v5795
      %5797 = vmatprep.subr.mxu0 0.0
      %5798 = vmatpush1.msra.mxu0 0.0
      %5799 = vmatprep.subr.mxu0 0.0
      %5800 = vmatpush1.msra.mxu0 0.0
      %5801 = vmatprep.subr.mxu0 0.0
      %5802 = vmatpush1.msra.mxu0 0.0
      %5803 = vmatprep.subr.mxu0 0.0
      %5804 = vmatpush1.msra.mxu0 0.0
      %5805 = vmatprep.subr.mxu0 0.0
      %5806 = vmatpush1.msra.mxu0 0.0
      %5807 = vmatprep.subr.mxu0 0.0
      %5808 = vmatpush1.msra.mxu0 0.0
      %5809 = vmatprep.subr.mxu0 0.0
      %5810 = vmatpush1.msra.mxu0 0.0
      %5811 = vmatprep.subr.mxu0 0.0
      %5812 = vmatpush1.msra.mxu0 0.0
      %5813 = vmatprep.subr.mxu0 0.0
      %5814 = vmatpush1.msra.mxu0 0.0
      %5815 = vmatprep.subr.mxu0 0.0
      %5816 = vmatpush1.msra.mxu0 0.0
      %5817 = vmatprep.subr.mxu0 0.0
      %5818 = vmatpush1.msra.mxu0 0.0
      %5819 = vmatprep.subr.mxu0 0.0
      %5820 = vmatpush1.msra.mxu0 0.0
      %5821 = vmatprep.subr.mxu0 0.0
      %5822 = vmatpush1.msra.mxu0 0.0
      %5823 = vmatprep.subr.mxu0 0.0
      %5824 = vmatpush1.msra.mxu0 0.0
      %5825 = vmatprep.subr.mxu0 0.0
      %5826 = vmatpush1.msra.mxu0 0.0
      %5827 = vmatprep.subr.mxu0 0.0
      %5828 = vmatpush1.msra.mxu0 0.0
      %5829 = vmatprep.subr.mxu0 0.0
      %5830 = vmatpush1.msra.mxu0 0.0
      %5831 = vmatprep.subr.mxu0 0.0
      %5832 = vmatpush1.msra.mxu0 0.0
      %5833 = vmatprep.subr.mxu0 0.0
      %5834 = vmatpush1.msra.mxu0 0.0
      %5835 = vmatprep.subr.mxu0 0.0
      %5836 = vmatpush1.msra.mxu0 0.0
      %5837 = vmatprep.subr.mxu0 0.0
      %5838 = vmatpush1.msra.mxu0 0.0
      %5839 = vmatprep.subr.mxu0 0.0
      %5840 = vmatpush1.msra.mxu0 0.0
      %5841 = vmatprep.subr.mxu0 0.0
      %5842 = vmatpush1.msra.mxu0 0.0
      %5843 = vmatprep.subr.mxu0 0.0
      %5844 = vmatpush1.msra.mxu0 0.0
      %5845 = vmatprep.subr.mxu0 0.0
      %5846 = vmatpush1.msra.mxu0 0.0
      %5847 = vmatprep.subr.mxu0 0.0
      %5848 = vmatpush1.msra.mxu0 0.0
      %5849 = vmatprep.subr.mxu0 0.0
      %5850 = vmatpush1.msra.mxu0 0.0
      %5851 = vmatprep.subr.mxu0 0.0
      %5852 = vmatpush1.msra.mxu0 0.0
      %5853 = vmatprep.subr.mxu0 0.0
      %5854 = vmatpush1.msra.mxu0 0.0
      %5855 = vmatprep.mubr.f32.mxu0 0.0
      %v5856 = vand.u32 %v5386, 4294901760
      %5857 = vmatmul.mubr.f32.gmra.mrb[0].mxu0 %v5856
      %v5858 = vpop.f32.mrb[0].mxu0
      %v5859 = vadd.f32 %v5785, %v5858
      %v5860 = vpop.f32.mrb[0].mxu0
      %5861 = vdwg.mxu0
      %v5862 = vadd.f32 %v5374, %v5859
      %v5863 = vld [vmem:[%s4] sm:$0x3]
      %5865 = vrot.lane.b32.xlu0 %v5863, 127
      %v5866 = vpop.permute.xlu0 %5865
      %v5868 = vadd.f32 %v5862, %v5866
      %vm5869 = vcmask 1024
      %v5870 = vsel %vm5869, %v5868, -inf
      %v5871 = vrot.slane %v5870, 4
      %v5872 = vmax.f32 %v5870, %v5871
      %v5873 = vrot.slane %v5872, 2
      %v5874 = vmax.f32 %v5872, %v5873
      %v5875 = vrot.slane %v5874, 1
      %v5876 = vmax.f32 %v5874, %v5875
      %v5877 = vsub.f32 %v5868, %v5876
      %v5878 = vmul.f32 %v5877, 1.442695
      %v5879 = vpow.pop %v5878
      %v5880 = vsel %vm5869, %v5879, 0.0
      %v5881 = vrot.slane %v5880, 4
      %v5882 = vadd.f32 %v5880, %v5881
      %v5883 = vrot.slane %v5882, 2
      %v5884 = vadd.f32 %v5882, %v5883
      %v5885 = vrot.slane %v5884, 1
      %v5886 = vadd.f32 %v5884, %v5885
      %v5887 = vlog2.pop %v5886
      %v5888 = vmul.f32 %v5887, 0.6931472
      %v5889 = vsub.f32 %v5877, %v5888
      %5890 = vst.msk [vmem:[%s222] sm:$0x3] %vm5869, %v5889
      %p5891 = scmp.lt.s32.totalorder %s16, 1
      %s5892 = scalar_select %p5891, %s16, 1
      %s5893 = smul.addr %s5892, 2
      %s5894 = scalar_lea.vmem %s5, %s5893
      // Predicated region
      $region41: #{shallow_erp_net_pallas.1} parent=39 // pred_check
        %p5895 = pneg %p144
      $region42: #{shallow_erp_net_pallas.1} parent=39 // pred_check_branch
        %5897 = sbr.rel (%p5895) target = $region44
      $region43: #{shallow_erp_net_pallas.1} parent=39 // pred_region
        _
      $region44: #{shallow_erp_net_pallas.1} parent=39 // pred_fallthru
        _
    $region40: #{shallow_erp_net_pallas.1} parent=5 // pred_fallthru
      _
    %p5898 = scmp.le.s32.totalorder 2, %s11
    // Predicated region
    $region45: #{shallow_erp_net_pallas.1} parent=5 // pred_check
      %p5899 = pneg %p5898
    $region46: #{shallow_erp_net_pallas.1} parent=5 // pred_check_branch
      %5901 = sbr.rel (%p5899) target = $region48
    $region47: #{shallow_erp_net_pallas.1} parent=5 // pred_region
      %s5902 = ssub.s32 %s11, 2
      // Predicated region
      $region49: #{shallow_erp_net_pallas.1} parent=47 // pred_check
        %p5903 = pneg %p150
      $region50: #{shallow_erp_net_pallas.1} parent=47 // pred_check_branch
        %5905 = sbr.rel (%p5903) target = $region52
      $region51: #{shallow_erp_net_pallas.1} parent=47 // pred_region
        %p5906 = scmp.lt.s32.totalorder %s17, 1
        %s5907 = scalar_select %p5906, %s17, 1
        %s5908 = smul.addr %s5907, 2
        %s5909 = scalar_lea.vmem %s5, %s5908
      $region52: #{shallow_erp_net_pallas.1} parent=47 // pred_fallthru
        _
    $region48: #{shallow_erp_net_pallas.1} parent=5 // pred_fallthru
      _
  $region6: #{shallow_erp_net_pallas.1} parent=0 // loop_footer
    %s15 = sadd.s32 1, %s11
  $region7: #{shallow_erp_net_pallas.1} parent=0 // loop_footer_branch
    %10 = sbr.rel target = $region3
  $region8: #{shallow_erp_net_pallas.1} parent=0 // loop_exit
    _

</llo_original>
